<compile_context>
chip_gen: v7x
topology: tpu7x:2x2x1
jax: 0.10.0
libtpu: 0.0.40
codegen_flags: <defaults>
</compile_context>

<pallas_src>
import functools
import math

import jax
import jax.numpy as jnp
from jax.experimental import pallas as pl
from jax.experimental.pallas import tpu as pltpu


# ---------------------------------------------------------------------------
# Fused embedding kernel: LN(C) -> Linear(C, D) -> LN(D) -> + pos + time_emb.
# ---------------------------------------------------------------------------
def _embed_kernel(x_ref, g1_ref, b1_ref, w_ref, bias_ref, g2_ref, b2_ref,
                  pos_ref, temb_ref, o_ref, *, eps):
    # x_ref: (1, tile_rows, C). Params are small broadcast blocks.
    x = x_ref[0].astype(jnp.float32)                           # (tm, C)

    # LayerNorm over channels (single-pass variance, f32 accumulation).
    g1 = g1_ref[...].astype(jnp.float32)
    b1 = b1_ref[...].astype(jnp.float32)
    m1 = jnp.mean(x, axis=-1, keepdims=True)
    v1 = jnp.maximum(jnp.mean(x * x, axis=-1, keepdims=True) - m1 * m1, 0.0)
    xn = (x - m1) * jax.lax.rsqrt(v1 + eps) * g1 + b1          # (tm, C)

    # Linear C -> D on the MXU, f32 accumulation.
    h = jnp.dot(xn, w_ref[...].astype(jnp.float32),
                preferred_element_type=jnp.float32)
    h = h + bias_ref[...].astype(jnp.float32)                  # (tm, D)

    # LayerNorm over the embedding dim.
    g2 = g2_ref[...].astype(jnp.float32)
    b2 = b2_ref[...].astype(jnp.float32)
    m2 = jnp.mean(h, axis=-1, keepdims=True)
    v2 = jnp.maximum(jnp.mean(h * h, axis=-1, keepdims=True) - m2 * m2, 0.0)
    y = (h - m2) * jax.lax.rsqrt(v2 + eps) * g2 + b2           # (tm, D)

    # + positional embedding (same vector for every row)
    # + per-batch diffusion-time embedding.
    y = y + pos_ref[...].astype(jnp.float32) + temb_ref[0].astype(jnp.float32)
    o_ref[0] = y.astype(o_ref.dtype)


def fused_embedding(x, ln1_g, ln1_b, w, bias, ln2_g, ln2_b, pos, temb,
                    *, eps=1e-5, tile_rows=512):
    """x: (B, R, C) rows; temb: (B, D) per-batch vector.  Returns (B, R, D)."""
    B, R, C = x.shape
    D = w.shape[1]

    tiles = pl.cdiv(R, tile_rows)
    R_pad = tiles * tile_rows
    if R_pad != R:
        # Pad the row tail instead of forcing tiny divisor tiles (zero rows
        # produce finite garbage that is sliced off below).
        x = jnp.pad(x, ((0, 0), (0, R_pad - R), (0, 0)))

    ln1_g = ln1_g.reshape(1, C)
    ln1_b = ln1_b.reshape(1, C)
    bias = bias.reshape(1, D)
    ln2_g = ln2_g.reshape(1, D)
    ln2_b = ln2_b.reshape(1, D)
    pos = pos.reshape(1, D)
    temb = temb.reshape(B, 1, D)

    # VMEM budget: double-buffered f32 in/out row tiles + tiny params.
    # 32 MiB scoped request is safe on v5e (128 MiB), v6e (128 MiB) and
    # v7x (64 MiB physical); only grow toward 64 MiB if the tiles need it.
    tile_bytes = 4 * tile_rows * (C + D) * 4
    vmem_limit = int(min(64 * 1024 * 1024,
                         max(32 * 1024 * 1024, 2 * tile_bytes)))

    out = pl.pallas_call(
        functools.partial(_embed_kernel, eps=eps),
        out_shape=jax.ShapeDtypeStruct((B, R_pad, D), x.dtype),
        grid_spec=pltpu.PrefetchScalarGridSpec(
            num_scalar_prefetch=0,
            grid=(B, tiles),
            in_specs=[
                pl.BlockSpec((1, tile_rows, C), lambda b, i: (b, i, 0)),
                pl.BlockSpec((1, C), lambda b, i: (0, 0)),
                pl.BlockSpec((1, C), lambda b, i: (0, 0)),
                pl.BlockSpec((C, D), lambda b, i: (0, 0)),
                pl.BlockSpec((1, D), lambda b, i: (0, 0)),
                pl.BlockSpec((1, D), lambda b, i: (0, 0)),
                pl.BlockSpec((1, D), lambda b, i: (0, 0)),
                pl.BlockSpec((1, D), lambda b, i: (0, 0)),
                pl.BlockSpec((1, 1, D), lambda b, i: (b, 0, 0)),
            ],
            out_specs=pl.BlockSpec((1, tile_rows, D), lambda b, i: (b, i, 0)),
        ),
        compiler_params=pltpu.CompilerParams(
            dimension_semantics=("parallel", "parallel"),
            vmem_limit_bytes=vmem_limit),
    )(x, ln1_g, ln1_b, w, bias, ln2_g, ln2_b, pos, temb)

    return out[:, :R, :]


# ---------------------------------------------------------------------------
# mixste forward (JAX/Pallas port).
# ---------------------------------------------------------------------------
class MixstePallas:
    def __init__(self, num_clusters, dim, channels, key, dtype=jnp.float32):
        self.num_clusters = num_clusters
        self.dim = dim
        self.channels = channels

        k = jax.random.split(key, 5)
        # Embedding: LayerNorm(channels) -> Linear(channels, dim) -> LayerNorm(dim)
        self.ln1_g = jnp.ones((channels,), dtype)
        self.ln1_b = jnp.zeros((channels,), dtype)
        lim1 = 1.0 / math.sqrt(channels)
        self.w_embed = jax.random.uniform(k[0], (channels, dim), dtype, -lim1, lim1)
        self.b_embed = jax.random.uniform(k[1], (dim,), dtype, -lim1, lim1)
        self.ln2_g = jnp.ones((dim,), dtype)
        self.ln2_b = jnp.zeros((dim,), dtype)
        self.pos_embedding = jax.random.normal(k[2], (1, 1, dim), dtype)
        # time_mlp: Sinusoidal -> Linear(dim, 2*dim) -> GELU -> Linear(2*dim, dim)
        lim2 = 1.0 / math.sqrt(dim)
        self.w_t1 = jax.random.uniform(k[3], (dim, 2 * dim), dtype, -lim2, lim2)
        self.b_t1 = jnp.zeros((2 * dim,), dtype)
        lim3 = 1.0 / math.sqrt(2 * dim)
        self.w_t2 = jax.random.uniform(k[4], (2 * dim, dim), dtype, -lim3, lim3)
        self.b_t2 = jnp.zeros((dim,), dtype)

    # Tiny (B, dim) time embedding -- negligible work, kept in JAX glue.
    def _time_mlp(self, time_cond):
        half = self.dim // 2
        scale = math.log(10000.0) / (half - 1)
        freqs = jnp.exp(jnp.arange(half, dtype=jnp.float32) * -scale)
        args = time_cond.astype(jnp.float32)[:, None] * freqs[None, :]
        emb = jnp.concatenate([jnp.sin(args), jnp.cos(args)], axis=-1)   # (B, dim)
        h = emb @ self.w_t1 + self.b_t1
        h = jax.nn.gelu(h, approximate=False)      # nn.GELU() default = exact erf
        return h @ self.w_t2 + self.b_t2           # (B, dim)

    def __call__(self, noise_bvps, mstmaps, time_cond):
        B = mstmaps.shape[0]
        N = mstmaps.shape[-2]      # 63 joints in the original forward
        T = mstmaps.shape[-1]      # 300 frames in the original forward

        # cat(mstmaps, expanded noise bvps) along channel axis.
        reshaped = noise_bvps.reshape(B, 1, 1, T)
        repeat = jnp.broadcast_to(reshaped, (B, 1, N, T))
        x = jnp.concatenate([mstmaps, repeat], axis=1)          # (B, C, N, T)
        x = x.astype(jnp.float32)                               # stmap.to(float32)

        # 'B C N T -> (B T) N C', expressed kernel-friendly as (B, T*N, C).
        x = jnp.transpose(x, (0, 3, 2, 1)).reshape(B, T * N, self.channels)

        temb = self._time_mlp(time_cond)                        # (B, dim)
        # pos_embedding[:, :num_clusters] over a size-1 axis -> a single (dim,) vector.
        pos = self.pos_embedding[:, :self.num_clusters].reshape(1, self.dim)

        y = fused_embedding(x, self.ln1_g, self.ln1_b, self.w_embed,
                            self.b_embed, self.ln2_g, self.ln2_b,
                            pos, temb)                          # (B, T*N, dim)
        y = y.reshape(B, T, N, self.dim)                        # 'B T N C'

        # nn.Dropout(emb_dropout): identity in eval/inference mode.
        # TODO(synk): stcModel (spatial_temporal_interaction) not provided; identity.
        return y


# ---------------------------------------------------------------------------
# Pure-JAX reference for correctness checking.
# ---------------------------------------------------------------------------
def _reference_forward(model, noise_bvps, mstmaps, time_cond, eps=1e-5):
    B = mstmaps.shape[0]
    N = mstmaps.shape[-2]
    T = mstmaps.shape[-1]
    x = jnp.concatenate(
        [mstmaps,
         jnp.broadcast_to(noise_bvps.reshape(B, 1, 1, T), (B, 1, N, T))],
        axis=1).astype(jnp.float32)
    x = jnp.transpose(x, (0, 3, 2, 1))                          # (B, T, N, C)

    def ln(v, g, b):
        m = jnp.mean(v, axis=-1, keepdims=True)
        var = jnp.mean((v - m) ** 2, axis=-1, keepdims=True)
        return (v - m) * jax.lax.rsqrt(var + eps) * g + b

    h = ln(x, model.ln1_g, model.ln1_b)
    h = jnp.matmul(h, model.w_embed,
                   precision=jax.lax.Precision.HIGHEST) + model.b_embed
    h = ln(h, model.ln2_g, model.ln2_b)
    h = h + model.pos_embedding[:, :model.num_clusters].reshape(1, 1, 1, model.dim)
    temb = model._time_mlp(time_cond)[:, None, None, :]
    return h + temb


if __name__ == "__main__":
    # Small but forward-consistent shapes: the original forward hardcodes
    # 63 joints and 300 frames; concat adds one channel to mstmaps.
    B, C_map = 2, 4
    N, T = 63, 300
    dim = 32
    channels = C_map + 1
    num_clusters = N

    key = jax.random.PRNGKey(0)
    k_model, k_m, k_n, k_t = jax.random.split(key, 4)
    mstmaps = jax.random.normal(k_m, (B, C_map, N, T), jnp.float32)
    noise_bvps = jax.random.normal(k_n, (B, T), jnp.float32)
    time_cond = jax.random.uniform(k_t, (B,), jnp.float32, 0.0, 1000.0)

    model = MixstePallas(num_clusters, dim, channels, k_model)

    out = model(noise_bvps, mstmaps, time_cond)
    jax.block_until_ready(out)
    assert out.shape == (B, T, N, dim), out.shape

    ref = _reference_forward(model, noise_bvps, mstmaps, time_cond)
    max_err = float(jnp.max(jnp.abs(out - ref)))
    assert jnp.allclose(out, ref, atol=2e-3, rtol=2e-3), max_err

    print("KERNEL_OK")
</pallas_src>

<mosaic_0001>
module attributes {stable_mosaic.version = 11 : i64} {
  func.func @_embed_kernel(%arg0: i32, %arg1: i32, %arg2: memref<1x512x5xf32, #tpu.memory_space<vmem>>, %arg3: memref<1x5xf32, #tpu.memory_space<vmem>>, %arg4: memref<1x5xf32, #tpu.memory_space<vmem>>, %arg5: memref<5x32xf32, #tpu.memory_space<vmem>>, %arg6: memref<1x32xf32, #tpu.memory_space<vmem>>, %arg7: memref<1x32xf32, #tpu.memory_space<vmem>>, %arg8: memref<1x32xf32, #tpu.memory_space<vmem>>, %arg9: memref<1x32xf32, #tpu.memory_space<vmem>>, %arg10: memref<1x1x32xf32, #tpu.memory_space<vmem>>, %arg11: memref<1x512x32xf32, #tpu.memory_space<vmem>>) attributes {dimension_semantics = [#tpu.dimension_semantics<parallel>, #tpu.dimension_semantics<parallel>], iteration_bounds = array<i64: 2, 37>, scalar_prefetch = 0 : i64, scratch_operands = 0 : i64, tpu.core_type = #tpu.core_type<tc>, window_params = [{transform_indices = @transform_0, window_bounds = array<i64: 1, 512, 5>}, {pipeline_mode = #tpu.pipeline_mode<synchronous>, transform_indices = @transform_1, window_bounds = array<i64: 1, 5>}, {pipeline_mode = #tpu.pipeline_mode<synchronous>, transform_indices = @transform_2, window_bounds = array<i64: 1, 5>}, {pipeline_mode = #tpu.pipeline_mode<synchronous>, transform_indices = @transform_3, window_bounds = array<i64: 5, 32>}, {pipeline_mode = #tpu.pipeline_mode<synchronous>, transform_indices = @transform_4, window_bounds = array<i64: 1, 32>}, {pipeline_mode = #tpu.pipeline_mode<synchronous>, transform_indices = @transform_5, window_bounds = array<i64: 1, 32>}, {pipeline_mode = #tpu.pipeline_mode<synchronous>, transform_indices = @transform_6, window_bounds = array<i64: 1, 32>}, {pipeline_mode = #tpu.pipeline_mode<synchronous>, transform_indices = @transform_7, window_bounds = array<i64: 1, 32>}, {transform_indices = @transform_8, window_bounds = array<i64: 1, 1, 32>}, {transform_indices = @transform_9, window_bounds = array<i64: 1, 512, 32>}]} {
    %c0 = arith.constant 0 : index
    %c0_0 = arith.constant 0 : index
    %c0_1 = arith.constant 0 : index
    %0 = vector.load %arg2[%c0, %c0_0, %c0_1] : memref<1x512x5xf32, #tpu.memory_space<vmem>>, vector<1x512x5xf32>
    %1 = vector.shape_cast %0 : vector<1x512x5xf32> to vector<512x5xf32>
    %c0_2 = arith.constant 0 : index
    %c0_3 = arith.constant 0 : index
    %2 = vector.load %arg3[%c0_2, %c0_3] : memref<1x5xf32, #tpu.memory_space<vmem>>, vector<1x5xf32>
    %c0_4 = arith.constant 0 : index
    %c0_5 = arith.constant 0 : index
    %3 = vector.load %arg4[%c0_4, %c0_5] : memref<1x5xf32, #tpu.memory_space<vmem>>, vector<1x5xf32>
    %cst = arith.constant dense<0.000000e+00> : vector<512xf32>
    %4 = vector.multi_reduction <add>, %1, %cst [1] : vector<512x5xf32> to vector<512xf32>
    %5 = vector.shape_cast %4 : vector<512xf32> to vector<512x1xf32>
    %cst_6 = arith.constant 5.000000e+00 : f32
    %6 = vector.broadcast %cst_6 : f32 to vector<512x1xf32>
    %7 = arith.divf %5, %6 : vector<512x1xf32>
    %8 = arith.mulf %1, %1 : vector<512x5xf32>
    %cst_7 = arith.constant dense<0.000000e+00> : vector<512xf32>
    %9 = vector.multi_reduction <add>, %8, %cst_7 [1] : vector<512x5xf32> to vector<512xf32>
    %10 = vector.shape_cast %9 : vector<512xf32> to vector<512x1xf32>
    %cst_8 = arith.constant 5.000000e+00 : f32
    %11 = vector.broadcast %cst_8 : f32 to vector<512x1xf32>
    %12 = arith.divf %10, %11 : vector<512x1xf32>
    %13 = arith.mulf %7, %7 : vector<512x1xf32>
    %14 = arith.subf %12, %13 : vector<512x1xf32>
    %cst_9 = arith.constant 0.000000e+00 : f32
    %15 = vector.broadcast %cst_9 : f32 to vector<512x1xf32>
    %16 = arith.maximumf %14, %15 : vector<512x1xf32>
    %17 = vector.broadcast %7 : vector<512x1xf32> to vector<512x5xf32>
    %18 = arith.subf %1, %17 : vector<512x5xf32>
    %cst_10 = arith.constant 9.99999974E-6 : f32
    %19 = vector.broadcast %cst_10 : f32 to vector<512x1xf32>
    %20 = arith.addf %16, %19 : vector<512x1xf32>
    %21 = math.rsqrt %20 : vector<512x1xf32>
    %22 = vector.broadcast %21 : vector<512x1xf32> to vector<512x5xf32>
    %23 = arith.mulf %18, %22 : vector<512x5xf32>
    %24 = vector.broadcast %2 : vector<1x5xf32> to vector<512x5xf32>
    %25 = arith.mulf %23, %24 : vector<512x5xf32>
    %26 = vector.broadcast %3 : vector<1x5xf32> to vector<512x5xf32>
    %27 = arith.addf %25, %26 : vector<512x5xf32>
    %c0_11 = arith.constant 0 : index
    %c0_12 = arith.constant 0 : index
    %28 = vector.load %arg5[%c0_11, %c0_12] : memref<5x32xf32, #tpu.memory_space<vmem>>, vector<5x32xf32>
    %cst_13 = arith.constant dense<0.000000e+00> : vector<512x32xf32>
    %29 = tpu.matmul %27, %28, %cst_13 {dimension_numbers = #tpu.dot_dimension_numbers<[1], [0], [0], [1], [0, 0, 1, 1], [], []>} : vector<512x5xf32>, vector<5x32xf32>, vector<512x32xf32> -> vector<512x32xf32>
    %c0_14 = arith.constant 0 : index
    %c0_15 = arith.constant 0 : index
    %30 = vector.load %arg6[%c0_14, %c0_15] : memref<1x32xf32, #tpu.memory_space<vmem>>, vector<1x32xf32>
    %31 = vector.broadcast %30 : vector<1x32xf32> to vector<512x32xf32>
    %32 = arith.addf %29, %31 : vector<512x32xf32>
    %c0_16 = arith.constant 0 : index
    %c0_17 = arith.constant 0 : index
    %33 = vector.load %arg7[%c0_16, %c0_17] : memref<1x32xf32, #tpu.memory_space<vmem>>, vector<1x32xf32>
    %c0_18 = arith.constant 0 : index
    %c0_19 = arith.constant 0 : index
    %34 = vector.load %arg8[%c0_18, %c0_19] : memref<1x32xf32, #tpu.memory_space<vmem>>, vector<1x32xf32>
    %cst_20 = arith.constant dense<0.000000e+00> : vector<512xf32>
    %35 = vector.multi_reduction <add>, %32, %cst_20 [1] : vector<512x32xf32> to vector<512xf32>
    %36 = vector.shape_cast %35 : vector<512xf32> to vector<512x1xf32>
    %cst_21 = arith.constant 3.200000e+01 : f32
    %37 = vector.broadcast %cst_21 : f32 to vector<512x1xf32>
    %38 = arith.divf %36, %37 : vector<512x1xf32>
    %39 = arith.mulf %32, %32 : vector<512x32xf32>
    %cst_22 = arith.constant dense<0.000000e+00> : vector<512xf32>
    %40 = vector.multi_reduction <add>, %39, %cst_22 [1] : vector<512x32xf32> to vector<512xf32>
    %41 = vector.shape_cast %40 : vector<512xf32> to vector<512x1xf32>
    %cst_23 = arith.constant 3.200000e+01 : f32
    %42 = vector.broadcast %cst_23 : f32 to vector<512x1xf32>
    %43 = arith.divf %41, %42 : vector<512x1xf32>
    %44 = arith.mulf %38, %38 : vector<512x1xf32>
    %45 = arith.subf %43, %44 : vector<512x1xf32>
    %cst_24 = arith.constant 0.000000e+00 : f32
    %46 = vector.broadcast %cst_24 : f32 to vector<512x1xf32>
    %47 = arith.maximumf %45, %46 : vector<512x1xf32>
    %48 = vector.broadcast %38 : vector<512x1xf32> to vector<512x32xf32>
    %49 = arith.subf %32, %48 : vector<512x32xf32>
    %cst_25 = arith.constant 9.99999974E-6 : f32
    %50 = vector.broadcast %cst_25 : f32 to vector<512x1xf32>
    %51 = arith.addf %47, %50 : vector<512x1xf32>
    %52 = math.rsqrt %51 : vector<512x1xf32>
    %53 = vector.broadcast %52 : vector<512x1xf32> to vector<512x32xf32>
    %54 = arith.mulf %49, %53 : vector<512x32xf32>
    %55 = vector.broadcast %33 : vector<1x32xf32> to vector<512x32xf32>
    %56 = arith.mulf %54, %55 : vector<512x32xf32>
    %57 = vector.broadcast %34 : vector<1x32xf32> to vector<512x32xf32>
    %58 = arith.addf %56, %57 : vector<512x32xf32>
    %c0_26 = arith.constant 0 : index
    %c0_27 = arith.constant 0 : index
    %59 = vector.load %arg9[%c0_26, %c0_27] : memref<1x32xf32, #tpu.memory_space<vmem>>, vector<1x32xf32>
    %60 = vector.broadcast %59 : vector<1x32xf32> to vector<512x32xf32>
    %61 = arith.addf %58, %60 : vector<512x32xf32>
    %c0_28 = arith.constant 0 : index
    %c0_29 = arith.constant 0 : index
    %c0_30 = arith.constant 0 : index
    %62 = vector.load %arg10[%c0_28, %c0_29, %c0_30] : memref<1x1x32xf32, #tpu.memory_space<vmem>>, vector<1x1x32xf32>
    %63 = vector.shape_cast %62 : vector<1x1x32xf32> to vector<1x32xf32>
    %64 = vector.broadcast %63 : vector<1x32xf32> to vector<512x32xf32>
    %65 = arith.addf %61, %64 : vector<512x32xf32>
    %c0_31 = arith.constant 0 : index
    %c0_32 = arith.constant 0 : index
    %c0_33 = arith.constant 0 : index
    %66 = vector.load %arg11[%c0_31, %c0_32, %c0_33] : memref<1x512x32xf32, #tpu.memory_space<vmem>>, vector<1x512x32xf32>
    %67 = vector.shape_cast %66 : vector<1x512x32xf32> to vector<512x32xf32>
    %68 = vector.shape_cast %65 : vector<512x32xf32> to vector<1x512x32xf32>
    tpu.vector_store %arg11[%c0_31, %c0_32, %c0_33], %68 {strides = array<i32>} : memref<1x512x32xf32, #tpu.memory_space<vmem>>, vector<1x512x32xf32>,
    return
  }
  func.func @transform_0(%arg0: i32, %arg1: i32) -> (i32, i32, i32) {
    %c0_i32 = arith.constant 0 : i32
    %c0_i32_0 = arith.constant 0 : i32
    return %arg0, %arg1, %c0_i32 : i32, i32, i32
  }
  func.func @transform_1(%arg0: i32, %arg1: i32) -> (i32, i32) {
    %c0_i32 = arith.constant 0 : i32
    %c0_i32_0 = arith.constant 0 : i32
    %c0_i32_1 = arith.constant 0 : i32
    return %c0_i32, %c0_i32_0 : i32, i32
  }
  func.func @transform_2(%arg0: i32, %arg1: i32) -> (i32, i32) {
    %c0_i32 = arith.constant 0 : i32
    %c0_i32_0 = arith.constant 0 : i32
    %c0_i32_1 = arith.constant 0 : i32
    return %c0_i32, %c0_i32_0 : i32, i32
  }
  func.func @transform_3(%arg0: i32, %arg1: i32) -> (i32, i32) {
    %c0_i32 = arith.constant 0 : i32
    %c0_i32_0 = arith.constant 0 : i32
    %c0_i32_1 = arith.constant 0 : i32
    return %c0_i32, %c0_i32_0 : i32, i32
  }
  func.func @transform_4(%arg0: i32, %arg1: i32) -> (i32, i32) {
    %c0_i32 = arith.constant 0 : i32
    %c0_i32_0 = arith.constant 0 : i32
    %c0_i32_1 = arith.constant 0 : i32
    return %c0_i32, %c0_i32_0 : i32, i32
  }
  func.func @transform_5(%arg0: i32, %arg1: i32) -> (i32, i32) {
    %c0_i32 = arith.constant 0 : i32
    %c0_i32_0 = arith.constant 0 : i32
    %c0_i32_1 = arith.constant 0 : i32
    return %c0_i32, %c0_i32_0 : i32, i32
  }
  func.func @transform_6(%arg0: i32, %arg1: i32) -> (i32, i32) {
    %c0_i32 = arith.constant 0 : i32
    %c0_i32_0 = arith.constant 0 : i32
    %c0_i32_1 = arith.constant 0 : i32
    return %c0_i32, %c0_i32_0 : i32, i32
  }
  func.func @transform_7(%arg0: i32, %arg1: i32) -> (i32, i32) {
    %c0_i32 = arith.constant 0 : i32
    %c0_i32_0 = arith.constant 0 : i32
    %c0_i32_1 = arith.constant 0 : i32
    return %c0_i32, %c0_i32_0 : i32, i32
  }
  func.func @transform_8(%arg0: i32, %arg1: i32) -> (i32, i32, i32) {
    %c0_i32 = arith.constant 0 : i32
    %c0_i32_0 = arith.constant 0 : i32
    %c0_i32_1 = arith.constant 0 : i32
    return %arg0, %c0_i32, %c0_i32_0 : i32, i32, i32
  }
  func.func @transform_9(%arg0: i32, %arg1: i32) -> (i32, i32, i32) {
    %c0_i32 = arith.constant 0 : i32
    %c0_i32_0 = arith.constant 0 : i32
    return %arg0, %arg1, %c0_i32 : i32, i32, i32
  }
}

</mosaic_0001>

<llo_original>
// kernel: tpu_custom_call.1
$region0: #{tpu_custom_call.1}
  #allocation0 [shape = 'u32[]', space=smem, size = 0x4, offset = 0x4, fixed_abs, tag = 'smem constant byte address 0x4 - core index']
  #allocation1 [shape = 'u32[144,128]{1,0:T(1,128)}', space=vmem, size = 0x12000, scoped, tag = 'internal scratch']
  %s0 = inlined_call_operand.hbm [shape: f32[2,18944,5], index: 0, kind: input, shape index: {}]
  %s1 = inlined_call_operand.vmem [shape: f32[1,5], index: 1, kind: input, shape index: {}]
  %s2 = inlined_call_operand.vmem [shape: f32[1,5], index: 2, kind: input, shape index: {}]
  %s3 = inlined_call_operand.vmem [shape: f32[5,32], index: 3, kind: input, shape index: {}]
  %s4 = inlined_call_operand.vmem [shape: f32[1,32], index: 4, kind: input, shape index: {}]
  %s5 = inlined_call_operand.vmem [shape: f32[1,32], index: 5, kind: input, shape index: {}]
  %s6 = inlined_call_operand.vmem [shape: f32[1,32], index: 6, kind: input, shape index: {}]
  %s7 = inlined_call_operand.vmem [shape: f32[1,32], index: 7, kind: input, shape index: {}]
  %s8 = inlined_call_operand.vmem [shape: f32[2,1,32], index: 8, kind: input, shape index: {}]
  %s9 = inlined_call_operand.vmem [shape: f32[2,18944,32], index: 9, kind: output, shape index: {}]
  %s10 = sld [smem:[#allocation0]]
  $region73: #{tpu_custom_call.1} parent=0
    _
  %s12 = ssub.s32 1, %s10
  %s13 = scalar_select 0, %s12, %s10
  $region1: #{tpu_custom_call.1} parent=0
    #allocation2 [shape = 'u8[524288]{0}', space=vmem, size = 0x80000, scoped, tag = 'input window, operand 0']
    #allocation3 [shape = 's32[2]{0}', space=sflag, size = 0x8, scoped, tag = 'scoped memory for tpu_custom_call.1']
    %14 = vsyncpa [#allocation3], 0
    %s15 = scalar_lea.sflag [#allocation3], 1
    %16 = vsyncpa %s15, 0
    loop: start=0, step=1, limit=76
    $region2: #{tpu_custom_call.1} parent=1 // loop_pre_header
      _
    $region3: #{tpu_custom_call.1} parent=1 // loop_header
      %s18 = sphi 0, %s22
      %p19 = scmp.ge.s32.totalorder %s18, 76
      %s25 = sphi 0, %s37
      %s26 = sphi 0, %s33
      %s27 = sphi 0, %s25
      %s28 = sphi 0, %s26
      %s29 = sphi 0, %s27
      %s30 = sphi 0, %s28
      %s42 = sphi 0, %s44
      %s45 = sphi 0, %s42
      %s46 = sphi 0, %s45
      %s62 = sphi 0, %s46
      %s66 = sphi 0, %s66
      %s68 = sphi 0, %s66
      %s69 = sphi 0, %s68
      %s83 = sphi 0, %s69
      %s87 = sphi 0, %s87
      %s89 = sphi 0, %s87
      %s90 = sphi 0, %s89
      %s104 = sphi 0, %s90
      %s108 = sphi 0, %s108
      %s110 = sphi 0, %s108
      %s111 = sphi 0, %s110
      %s125 = sphi 0, %s111
      %s129 = sphi 0, %s129
      %s131 = sphi 0, %s129
      %s132 = sphi 0, %s131
      %s146 = sphi 0, %s132
      %s150 = sphi 0, %s150
      %s152 = sphi 0, %s150
      %s153 = sphi 0, %s152
      %s167 = sphi 0, %s153
      %s171 = sphi 0, %s171
      %s173 = sphi 0, %s171
      %s174 = sphi 0, %s173
      %s188 = sphi 0, %s174
      %s192 = sphi 0, %s192
      %s194 = sphi 0, %s192
      %s195 = sphi 0, %s194
      %s209 = sphi 0, %s195
      %s215 = sphi 0, %s217
      %s218 = sphi 0, %s215
      %s219 = sphi 0, %s218
      %s235 = sphi 0, %s219
      %s243 = sphi 0, %s245
      %s246 = sphi 0, %s243
      %s247 = sphi 0, %s246
      %s263 = sphi 0, %s247
    $region4: #{tpu_custom_call.1} parent=1 // loop_header_branch
      %21 = sbr.rel (%p19) target = $region8
    $region5: #{tpu_custom_call.1} parent=1 // loop_body
      %s23 = ssub.s32 %s18, 1
      %s24 = ssub.s32 %s18, 2
      %s31 = sadd.s32 1, %s26
      %p32 = scmp.ge.s32.totalorder %s31, 37
      %s33 = scalar_select %p32, 0, %s31
      %s34 = sadd.s32 1, %s25
      %s35 = scalar_select %p32, %s34, %s25
      %p36 = scmp.ge.s32.totalorder %s35, 2
      %s37 = scalar_select %p36, 0, %s35
      %s38 = ssub.s32 %s25, %s37
      %s39 = ssub.s32 %s26, %s33
      %s40 = sor.u32 %s38, %s39
      %p41 = scmp.eq.s32.totalorder %s40, 0
      %s43 = sadd.s32 %s42, 1
      %s44 = scalar_select %p41, %s42, %s43
      %p47 = pneg %p41
      %p48 = scmp.eq.s32.totalorder %s18, 73
      %p49 = por %p47, %p48
      %p50 = scmp.ne.s32.totalorder %s42, %s45
      %p51 = scmp.eq.s32.totalorder %s18, 0
      %p52 = por %p50, %p51
      %p53 = scmp.ne.s32.totalorder %s42, %s45
      %p54 = scmp.eq.s32.totalorder %s23, 73
      %p55 = por %p53, %p54
      %p56 = scmp.ne.s32.totalorder %s45, %s46
      %p57 = scmp.eq.s32.totalorder %s23, 0
      %p58 = por %p56, %p57
      %p59 = scmp.ne.s32.totalorder %s45, %s46
      %p60 = scmp.eq.s32.totalorder %s24, 73
      %p61 = por %p59, %p60
      %p63 = scmp.ne.s32.totalorder %s46, %s62
      %p64 = scmp.eq.s32.totalorder %s24, 0
      %p65 = por %p63, %p64
      %s67 = sadd.s32 %s66, 1
      %p70 = scmp.eq.s32.totalorder %s18, 73
      %p71 = scmp.ne.s32.totalorder %s66, %s68
      %p72 = scmp.eq.s32.totalorder %s18, 0
      %p73 = por %p71, %p72
      %p74 = scmp.ne.s32.totalorder %s66, %s68
      %p75 = scmp.eq.s32.totalorder %s23, 73
      %p76 = por %p74, %p75
      %p77 = scmp.ne.s32.totalorder %s68, %s69
      %p78 = scmp.eq.s32.totalorder %s23, 0
      %p79 = por %p77, %p78
      %p80 = scmp.ne.s32.totalorder %s68, %s69
      %p81 = scmp.eq.s32.totalorder %s24, 73
      %p82 = por %p80, %p81
      %p84 = scmp.ne.s32.totalorder %s69, %s83
      %p85 = scmp.eq.s32.totalorder %s24, 0
      %p86 = por %p84, %p85
      %s88 = sadd.s32 %s87, 1
      %p91 = scmp.eq.s32.totalorder %s18, 73
      %p92 = scmp.ne.s32.totalorder %s87, %s89
      %p93 = scmp.eq.s32.totalorder %s18, 0
      %p94 = por %p92, %p93
      %p95 = scmp.ne.s32.totalorder %s87, %s89
      %p96 = scmp.eq.s32.totalorder %s23, 73
      %p97 = por %p95, %p96
      %p98 = scmp.ne.s32.totalorder %s89, %s90
      %p99 = scmp.eq.s32.totalorder %s23, 0
      %p100 = por %p98, %p99
      %p101 = scmp.ne.s32.totalorder %s89, %s90
      %p102 = scmp.eq.s32.totalorder %s24, 73
      %p103 = por %p101, %p102
      %p105 = scmp.ne.s32.totalorder %s90, %s104
      %p106 = scmp.eq.s32.totalorder %s24, 0
      %p107 = por %p105, %p106
      %s109 = sadd.s32 %s108, 1
      %p112 = scmp.eq.s32.totalorder %s18, 73
      %p113 = scmp.ne.s32.totalorder %s108, %s110
      %p114 = scmp.eq.s32.totalorder %s18, 0
      %p115 = por %p113, %p114
      %p116 = scmp.ne.s32.totalorder %s108, %s110
      %p117 = scmp.eq.s32.totalorder %s23, 73
      %p118 = por %p116, %p117
      %p119 = scmp.ne.s32.totalorder %s110, %s111
      %p120 = scmp.eq.s32.totalorder %s23, 0
      %p121 = por %p119, %p120
      %p122 = scmp.ne.s32.totalorder %s110, %s111
      %p123 = scmp.eq.s32.totalorder %s24, 73
      %p124 = por %p122, %p123
      %p126 = scmp.ne.s32.totalorder %s111, %s125
      %p127 = scmp.eq.s32.totalorder %s24, 0
      %p128 = por %p126, %p127
      %s130 = sadd.s32 %s129, 1
      %p133 = scmp.eq.s32.totalorder %s18, 73
      %p134 = scmp.ne.s32.totalorder %s129, %s131
      %p135 = scmp.eq.s32.totalorder %s18, 0
      %p136 = por %p134, %p135
      %p137 = scmp.ne.s32.totalorder %s129, %s131
      %p138 = scmp.eq.s32.totalorder %s23, 73
      %p139 = por %p137, %p138
      %p140 = scmp.ne.s32.totalorder %s131, %s132
      %p141 = scmp.eq.s32.totalorder %s23, 0
      %p142 = por %p140, %p141
      %p143 = scmp.ne.s32.totalorder %s131, %s132
      %p144 = scmp.eq.s32.totalorder %s24, 73
      %p145 = por %p143, %p144
      %p147 = scmp.ne.s32.totalorder %s132, %s146
      %p148 = scmp.eq.s32.totalorder %s24, 0
      %p149 = por %p147, %p148
      %s151 = sadd.s32 %s150, 1
      %p154 = scmp.eq.s32.totalorder %s18, 73
      %p155 = scmp.ne.s32.totalorder %s150, %s152
      %p156 = scmp.eq.s32.totalorder %s18, 0
      %p157 = por %p155, %p156
      %p158 = scmp.ne.s32.totalorder %s150, %s152
      %p159 = scmp.eq.s32.totalorder %s23, 73
      %p160 = por %p158, %p159
      %p161 = scmp.ne.s32.totalorder %s152, %s153
      %p162 = scmp.eq.s32.totalorder %s23, 0
      %p163 = por %p161, %p162
      %p164 = scmp.ne.s32.totalorder %s152, %s153
      %p165 = scmp.eq.s32.totalorder %s24, 73
      %p166 = por %p164, %p165
      %p168 = scmp.ne.s32.totalorder %s153, %s167
      %p169 = scmp.eq.s32.totalorder %s24, 0
      %p170 = por %p168, %p169
      %s172 = sadd.s32 %s171, 1
      %p175 = scmp.eq.s32.totalorder %s18, 73
      %p176 = scmp.ne.s32.totalorder %s171, %s173
      %p177 = scmp.eq.s32.totalorder %s18, 0
      %p178 = por %p176, %p177
      %p179 = scmp.ne.s32.totalorder %s171, %s173
      %p180 = scmp.eq.s32.totalorder %s23, 73
      %p181 = por %p179, %p180
      %p182 = scmp.ne.s32.totalorder %s173, %s174
      %p183 = scmp.eq.s32.totalorder %s23, 0
      %p184 = por %p182, %p183
      %p185 = scmp.ne.s32.totalorder %s173, %s174
      %p186 = scmp.eq.s32.totalorder %s24, 73
      %p187 = por %p185, %p186
      %p189 = scmp.ne.s32.totalorder %s174, %s188
      %p190 = scmp.eq.s32.totalorder %s24, 0
      %p191 = por %p189, %p190
      %s193 = sadd.s32 %s192, 1
      %p196 = scmp.eq.s32.totalorder %s18, 73
      %p197 = scmp.ne.s32.totalorder %s192, %s194
      %p198 = scmp.eq.s32.totalorder %s18, 0
      %p199 = por %p197, %p198
      %p200 = scmp.ne.s32.totalorder %s192, %s194
      %p201 = scmp.eq.s32.totalorder %s23, 73
      %p202 = por %p200, %p201
      %p203 = scmp.ne.s32.totalorder %s194, %s195
      %p204 = scmp.eq.s32.totalorder %s23, 0
      %p205 = por %p203, %p204
      %p206 = scmp.ne.s32.totalorder %s194, %s195
      %p207 = scmp.eq.s32.totalorder %s24, 73
      %p208 = por %p206, %p207
      %p210 = scmp.ne.s32.totalorder %s195, %s209
      %p211 = scmp.eq.s32.totalorder %s24, 0
      %p212 = por %p210, %p211
      %s213 = ssub.s32 %s25, %s37
      %p214 = scmp.eq.s32.totalorder %s213, 0
      %s216 = sadd.s32 %s215, 1
      %s217 = scalar_select %p214, %s215, %s216
      %p220 = pneg %p214
      %p221 = scmp.eq.s32.totalorder %s18, 73
      %p222 = por %p220, %p221
      %p223 = scmp.ne.s32.totalorder %s215, %s218
      %p224 = scmp.eq.s32.totalorder %s18, 0
      %p225 = por %p223, %p224
      %p226 = scmp.ne.s32.totalorder %s215, %s218
      %p227 = scmp.eq.s32.totalorder %s23, 73
      %p228 = por %p226, %p227
      %p229 = scmp.ne.s32.totalorder %s218, %s219
      %p230 = scmp.eq.s32.totalorder %s23, 0
      %p231 = por %p229, %p230
      %p232 = scmp.ne.s32.totalorder %s218, %s219
      %p233 = scmp.eq.s32.totalorder %s24, 73
      %p234 = por %p232, %p233
      %p236 = scmp.ne.s32.totalorder %s219, %s235
      %p237 = scmp.eq.s32.totalorder %s24, 0
      %p238 = por %p236, %p237
      %s239 = ssub.s32 %s25, %s37
      %s240 = ssub.s32 %s26, %s33
      %s241 = sor.u32 %s239, %s240
      %p242 = scmp.eq.s32.totalorder %s241, 0
      %s244 = sadd.s32 %s243, 1
      %s245 = scalar_select %p242, %s243, %s244
      %p248 = pneg %p242
      %p249 = scmp.eq.s32.totalorder %s18, 73
      %p250 = por %p248, %p249
      %p251 = scmp.ne.s32.totalorder %s243, %s246
      %p252 = scmp.eq.s32.totalorder %s18, 0
      %p253 = por %p251, %p252
      %p254 = scmp.ne.s32.totalorder %s243, %s246
      %p255 = scmp.eq.s32.totalorder %s23, 73
      %p256 = por %p254, %p255
      %p257 = scmp.ne.s32.totalorder %s246, %s247
      %p258 = scmp.eq.s32.totalorder %s23, 0
      %p259 = por %p257, %p258
      %p260 = scmp.ne.s32.totalorder %s246, %s247
      %p261 = scmp.eq.s32.totalorder %s24, 73
      %p262 = por %p260, %p261
      %p264 = scmp.ne.s32.totalorder %s247, %s263
      %p265 = scmp.eq.s32.totalorder %s24, 0
      %p266 = por %p264, %p265
      %p267 = scmp.le.s32.totalorder 1, %s18
      %p268 = scmp.lt.s32.totalorder %s18, 75
      %p269 = pnand %p267, %p268
      %p270 = pneg %p269
      // Predicated region
      $region9: #{tpu_custom_call.1} parent=5 // pred_check
        _
      $region10: #{tpu_custom_call.1} parent=5 // pred_check_branch
        %272 = sbr.rel (%p269) target = $region12
      $region11: #{tpu_custom_call.1} parent=5 // pred_region
        %s273 = ssub.s32 %s18, 1
        // Predicated region
        $region13: #{tpu_custom_call.1} parent=11 // pred_check
          %p274 = pneg %p79
        $region14: #{tpu_custom_call.1} parent=11 // pred_check_branch
          %276 = sbr.rel (%p274) target = $region16
        $region15: #{tpu_custom_call.1} parent=11 // pred_region
          _
        $region16: #{tpu_custom_call.1} parent=11 // pred_fallthru
          _
        // Predicated region
        $region17: #{tpu_custom_call.1} parent=11 // pred_check
          %p277 = pneg %p100
        $region18: #{tpu_custom_call.1} parent=11 // pred_check_branch
          %279 = sbr.rel (%p277) target = $region20
        $region19: #{tpu_custom_call.1} parent=11 // pred_region
          _
        $region20: #{tpu_custom_call.1} parent=11 // pred_fallthru
          _
        // Predicated region
        $region21: #{tpu_custom_call.1} parent=11 // pred_check
          %p280 = pneg %p121
        $region22: #{tpu_custom_call.1} parent=11 // pred_check_branch
          %282 = sbr.rel (%p280) target = $region24
        $region23: #{tpu_custom_call.1} parent=11 // pred_region
          _
        $region24: #{tpu_custom_call.1} parent=11 // pred_fallthru
          _
        // Predicated region
        $region25: #{tpu_custom_call.1} parent=11 // pred_check
          %p283 = pneg %p142
        $region26: #{tpu_custom_call.1} parent=11 // pred_check_branch
          %285 = sbr.rel (%p283) target = $region28
        $region27: #{tpu_custom_call.1} parent=11 // pred_region
          _
        $region28: #{tpu_custom_call.1} parent=11 // pred_fallthru
          _
        // Predicated region
        $region29: #{tpu_custom_call.1} parent=11 // pred_check
          %p286 = pneg %p163
        $region30: #{tpu_custom_call.1} parent=11 // pred_check_branch
          %288 = sbr.rel (%p286) target = $region32
        $region31: #{tpu_custom_call.1} parent=11 // pred_region
          _
        $region32: #{tpu_custom_call.1} parent=11 // pred_fallthru
          _
        // Predicated region
        $region33: #{tpu_custom_call.1} parent=11 // pred_check
          %p289 = pneg %p184
        $region34: #{tpu_custom_call.1} parent=11 // pred_check_branch
          %291 = sbr.rel (%p289) target = $region36
        $region35: #{tpu_custom_call.1} parent=11 // pred_region
          _
        $region36: #{tpu_custom_call.1} parent=11 // pred_fallthru
          _
        // Predicated region
        $region37: #{tpu_custom_call.1} parent=11 // pred_check
          %p292 = pneg %p205
        $region38: #{tpu_custom_call.1} parent=11 // pred_check_branch
          %294 = sbr.rel (%p292) target = $region40
        $region39: #{tpu_custom_call.1} parent=11 // pred_region
          _
        $region40: #{tpu_custom_call.1} parent=11 // pred_fallthru
          _
      $region12: #{tpu_custom_call.1} parent=5 // pred_fallthru
        _
      %p295 = scmp.lt.s32.totalorder %s18, 74
      // Predicated region
      $region41: #{tpu_custom_call.1} parent=5 // pred_check
        %p296 = pneg %p295
      $region42: #{tpu_custom_call.1} parent=5 // pred_check_branch
        %298 = sbr.rel (%p296) target = $region44
      $region43: #{tpu_custom_call.1} parent=5 // pred_region
        // Predicated region
        $region45: #{tpu_custom_call.1} parent=43 // pred_check
          %p299 = pneg %p52
        $region46: #{tpu_custom_call.1} parent=43 // pred_check_branch
          %301 = sbr.rel (%p299) target = $region48
        $region47: #{tpu_custom_call.1} parent=43 // pred_region
          %s302 = sand.u32 %s42, 1
          %s303 = scalar_lea.sflag [#allocation3], %s302
          %s304 = sand.u32 %s42, 1
          %s305 = smul.addr %s304, 512
          %s306 = scalar_lea.vmem [#allocation2], %s305
          %s307 = smul.u32 64, %s26
          %s309 = ssub.s32 8192, 8192
          %310 = vsyncadd %s303, %s309
          %s311 = smul.addr %s25, 2368
          %s312 = sadd.s32 %s307, %s311
          %s313 = smul.addr %s312, 128
          %s314 = scalar_lea.hbm %s0, %s313
          %s315 = sshll.u32 %s306, 4
          %s316 = int_to_ptr.vmem [resolvable:$true] %s315
          %321 = dma.hbm_to_vmem [thread:$0]  %s314, 8192, %s316, %s303, 128, 128, 8
        $region48: #{tpu_custom_call.1} parent=43 // pred_fallthru
          _
        // Predicated region
        $region49: #{tpu_custom_call.1} parent=43 // pred_check
          %p322 = pneg %p225
        $region50: #{tpu_custom_call.1} parent=43 // pred_check_branch
          %324 = sbr.rel (%p322) target = $region52
        $region51: #{tpu_custom_call.1} parent=43 // pred_region
          %p325 = scmp.lt.s32.totalorder %s25, 1
          %s326 = scalar_select %p325, %s25, 1
          %s327 = scalar_lea.vmem %s8, %s326
        $region52: #{tpu_custom_call.1} parent=43 // pred_fallthru
          _
      $region44: #{tpu_custom_call.1} parent=5 // pred_fallthru
        _
      %p328 = scmp.le.s32.totalorder 1, %s18
      %p329 = scmp.lt.s32.totalorder %s18, 75
      %p330 = pnand %p328, %p329
      %p331 = pneg %p330
      // Predicated region
      $region53: #{tpu_custom_call.1} parent=5 // pred_check
        _
      $region54: #{tpu_custom_call.1} parent=5 // pred_check_branch
        %333 = sbr.rel (%p330) target = $region56
      $region55: #{tpu_custom_call.1} parent=5 // pred_region
        %s334 = ssub.s32 %s18, 1
        %s335 = sand.u32 %s45, 1
        %s336 = scalar_lea.sflag [#allocation3], %s335
        %s337 = sand.u32 %s45, 1
        %s338 = smul.addr %s337, 512
        %s339 = scalar_lea.vmem [#allocation2], %s338
        // Predicated region
        $region57: #{tpu_custom_call.1} parent=55 // pred_check
          %p340 = pneg %p58
        $region58: #{tpu_custom_call.1} parent=55 // pred_check_branch
          %342 = sbr.rel (%p340) target = $region60
        $region59: #{tpu_custom_call.1} parent=55 // pred_region
          %343 = dma.done %s336, 8192
        $region60: #{tpu_custom_call.1} parent=55 // pred_fallthru
          _
        %s344 = sand.u32 %s45, 1
        %s345 = scalar_lea.sflag [#allocation3], %s344
        %s346 = sand.u32 %s45, 1
        %s347 = smul.addr %s346, 512
        %s348 = scalar_lea.vmem [#allocation2], %s347
        %p349 = pneg %p58
        %p350 = pneg %p55
        %p351 = pneg %p79
        %p352 = pneg %p76
        %p353 = pneg %p100
        %p354 = pneg %p97
        %p355 = pneg %p121
        %p356 = pneg %p118
        %p357 = pneg %p142
        %p358 = pneg %p139
        %p359 = pneg %p163
        %p360 = pneg %p160
        %p361 = pneg %p184
        %p362 = pneg %p181
        %p363 = pneg %p205
        %p364 = pneg %p202
        %p365 = scmp.lt.s32.totalorder %s27, 1
        %s366 = scalar_select %p365, %s27, 1
        %s367 = scalar_lea.vmem %s8, %s366
        %p368 = pneg %p231
        %p369 = pneg %p228
        %p370 = pneg %p259
        %p371 = pneg %p256
        %s372 = smul.u32 64, %s28
        %p373 = scmp.lt.s32.totalorder %s27, 1
        %s374 = scalar_select %p373, %s27, 1
        %p375 = scmp.lt.s32.totalorder %s372, 2367
        %s376 = scalar_select %p375, %s372, 2367
        %s377 = smul.addr %s374, 2368
        %s378 = sadd.s32 %s376, %s377
        %s379 = smul.addr %s378, 8
        %s380 = scalar_lea.vmem %s9, %s379
        %s381 = smul.u32 64, %s28
        %p382 = scmp.lt.s32.totalorder %s27, 1
        %s383 = scalar_select %p382, %s27, 1
        %s384 = scalar_lea.vmem %s8, %s383
        %s385 = smul.u32 64, %s28
        %p386 = scmp.lt.s32.totalorder %s27, 1
        %s387 = scalar_select %p386, %s27, 1
        %p388 = scmp.lt.s32.totalorder %s385, 2367
        %s389 = scalar_select %p388, %s385, 2367
        %s390 = smul.addr %s387, 2368
        %s391 = sadd.s32 %s389, %s390
        %s392 = smul.addr %s391, 8
        %s393 = scalar_lea.vmem %s9, %s392
        %s394 = smul.u32 64, %s28
        %v395 = vld [vmem:[%s339] sm:$0xff]
        %v396 = vld [vmem:[%s339 + $0x8] sm:$0xff]
        %v397 = vld [vmem:[%s339 + $0x10] sm:$0xff]
        %v398 = vld [vmem:[%s339 + $0x18] sm:$0xff]
        %v399 = vld [vmem:[%s339 + $0x20] sm:$0xff]
        %v400 = vld [vmem:[%s339 + $0x28] sm:$0xff]
        %v401 = vld [vmem:[%s339 + $0x30] sm:$0xff]
        %v402 = vld [vmem:[%s339 + $0x38] sm:$0xff]
        %v403 = vld [vmem:[%s339 + $0x40] sm:$0xff]
        %v404 = vld [vmem:[%s339 + $0x48] sm:$0xff]
        %v405 = vld [vmem:[%s339 + $0x50] sm:$0xff]
        %v406 = vld [vmem:[%s339 + $0x58] sm:$0xff]
        %v407 = vld [vmem:[%s339 + $0x60] sm:$0xff]
        %v408 = vld [vmem:[%s339 + $0x68] sm:$0xff]
        %v409 = vld [vmem:[%s339 + $0x70] sm:$0xff]
        %v410 = vld [vmem:[%s339 + $0x78] sm:$0xff]
        %v411 = vld [vmem:[%s339 + $0x80] sm:$0xff]
        %v412 = vld [vmem:[%s339 + $0x88] sm:$0xff]
        %v413 = vld [vmem:[%s339 + $0x90] sm:$0xff]
        %v414 = vld [vmem:[%s339 + $0x98] sm:$0xff]
        %v415 = vld [vmem:[%s339 + $0xa0] sm:$0xff]
        %v416 = vld [vmem:[%s339 + $0xa8] sm:$0xff]
        %v417 = vld [vmem:[%s339 + $0xb0] sm:$0xff]
        %v418 = vld [vmem:[%s339 + $0xb8] sm:$0xff]
        %v419 = vld [vmem:[%s339 + $0xc0] sm:$0xff]
        %v420 = vld [vmem:[%s339 + $0xc8] sm:$0xff]
        %v421 = vld [vmem:[%s339 + $0xd0] sm:$0xff]
        %v422 = vld [vmem:[%s339 + $0xd8] sm:$0xff]
        %v423 = vld [vmem:[%s339 + $0xe0] sm:$0xff]
        %v424 = vld [vmem:[%s339 + $0xe8] sm:$0xff]
        %v425 = vld [vmem:[%s339 + $0xf0] sm:$0xff]
        %v426 = vld [vmem:[%s339 + $0xf8] sm:$0xff]
        %v427 = vld [vmem:[%s339 + $0x100] sm:$0xff]
        %v428 = vld [vmem:[%s339 + $0x108] sm:$0xff]
        %v429 = vld [vmem:[%s339 + $0x110] sm:$0xff]
        %v430 = vld [vmem:[%s339 + $0x118] sm:$0xff]
        %v431 = vld [vmem:[%s339 + $0x120] sm:$0xff]
        %v432 = vld [vmem:[%s339 + $0x128] sm:$0xff]
        %v433 = vld [vmem:[%s339 + $0x130] sm:$0xff]
        %v434 = vld [vmem:[%s339 + $0x138] sm:$0xff]
        %v435 = vld [vmem:[%s339 + $0x140] sm:$0xff]
        %v436 = vld [vmem:[%s339 + $0x148] sm:$0xff]
        %v437 = vld [vmem:[%s339 + $0x150] sm:$0xff]
        %v438 = vld [vmem:[%s339 + $0x158] sm:$0xff]
        %v439 = vld [vmem:[%s339 + $0x160] sm:$0xff]
        %v440 = vld [vmem:[%s339 + $0x168] sm:$0xff]
        %v441 = vld [vmem:[%s339 + $0x170] sm:$0xff]
        %v442 = vld [vmem:[%s339 + $0x178] sm:$0xff]
        %v443 = vld [vmem:[%s339 + $0x180] sm:$0xff]
        %v444 = vld [vmem:[%s339 + $0x188] sm:$0xff]
        %v445 = vld [vmem:[%s339 + $0x190] sm:$0xff]
        %v446 = vld [vmem:[%s339 + $0x198] sm:$0xff]
        %v447 = vld [vmem:[%s339 + $0x1a0] sm:$0xff]
        %v448 = vld [vmem:[%s339 + $0x1a8] sm:$0xff]
        %v449 = vld [vmem:[%s339 + $0x1b0] sm:$0xff]
        %v450 = vld [vmem:[%s339 + $0x1b8] sm:$0xff]
        %v451 = vld [vmem:[%s339 + $0x1c0] sm:$0xff]
        %v452 = vld [vmem:[%s339 + $0x1c8] sm:$0xff]
        %v453 = vld [vmem:[%s339 + $0x1d0] sm:$0xff]
        %v454 = vld [vmem:[%s339 + $0x1d8] sm:$0xff]
        %v455 = vld [vmem:[%s339 + $0x1e0] sm:$0xff]
        %v456 = vld [vmem:[%s339 + $0x1e8] sm:$0xff]
        %v457 = vld [vmem:[%s339 + $0x1f0] sm:$0xff]
        %v458 = vld [vmem:[%s339 + $0x1f8] sm:$0xff]
        %v459 = vld [vmem:[%s1] sm:$0x1]
        %v460 = vld [vmem:[%s2] sm:$0x1]
        %vm461 = vcmask 39936
        %v462 = vsel %vm461, %v395, 0.0
        %463 = vadd.xlane.f32.xlu0 %v462
        %v464 = vpop.xlane.xlu0 %463
        %v465 = vsel %vm461, %v396, 0.0
        %466 = vadd.xlane.f32.xlu0 %v465
        %v467 = vpop.xlane.xlu0 %466
        %v468 = vsel %vm461, %v397, 0.0
        %469 = vadd.xlane.f32.xlu0 %v468
        %v470 = vpop.xlane.xlu0 %469
        %v471 = vsel %vm461, %v398, 0.0
        %472 = vadd.xlane.f32.xlu0 %v471
        %v473 = vpop.xlane.xlu0 %472
        %v474 = vsel %vm461, %v399, 0.0
        %475 = vadd.xlane.f32.xlu0 %v474
        %v476 = vpop.xlane.xlu0 %475
        %v477 = vsel %vm461, %v400, 0.0
        %478 = vadd.xlane.f32.xlu0 %v477
        %v479 = vpop.xlane.xlu0 %478
        %v480 = vsel %vm461, %v401, 0.0
        %481 = vadd.xlane.f32.xlu0 %v480
        %v482 = vpop.xlane.xlu0 %481
        %v483 = vsel %vm461, %v402, 0.0
        %484 = vadd.xlane.f32.xlu0 %v483
        %v485 = vpop.xlane.xlu0 %484
        %v486 = vsel %vm461, %v403, 0.0
        %487 = vadd.xlane.f32.xlu0 %v486
        %v488 = vpop.xlane.xlu0 %487
        %v489 = vsel %vm461, %v404, 0.0
        %490 = vadd.xlane.f32.xlu0 %v489
        %v491 = vpop.xlane.xlu0 %490
        %v492 = vsel %vm461, %v405, 0.0
        %493 = vadd.xlane.f32.xlu0 %v492
        %v494 = vpop.xlane.xlu0 %493
        %v495 = vsel %vm461, %v406, 0.0
        %496 = vadd.xlane.f32.xlu0 %v495
        %v497 = vpop.xlane.xlu0 %496
        %v498 = vsel %vm461, %v407, 0.0
        %499 = vadd.xlane.f32.xlu0 %v498
        %v500 = vpop.xlane.xlu0 %499
        %v501 = vsel %vm461, %v408, 0.0
        %502 = vadd.xlane.f32.xlu0 %v501
        %v503 = vpop.xlane.xlu0 %502
        %v504 = vsel %vm461, %v409, 0.0
        %505 = vadd.xlane.f32.xlu0 %v504
        %v506 = vpop.xlane.xlu0 %505
        %v507 = vsel %vm461, %v410, 0.0
        %508 = vadd.xlane.f32.xlu0 %v507
        %v509 = vpop.xlane.xlu0 %508
        %v510 = vsel %vm461, %v411, 0.0
        %511 = vadd.xlane.f32.xlu0 %v510
        %v512 = vpop.xlane.xlu0 %511
        %v513 = vsel %vm461, %v412, 0.0
        %514 = vadd.xlane.f32.xlu0 %v513
        %v515 = vpop.xlane.xlu0 %514
        %v516 = vsel %vm461, %v413, 0.0
        %517 = vadd.xlane.f32.xlu0 %v516
        %v518 = vpop.xlane.xlu0 %517
        %v519 = vsel %vm461, %v414, 0.0
        %520 = vadd.xlane.f32.xlu0 %v519
        %v521 = vpop.xlane.xlu0 %520
        %v522 = vsel %vm461, %v415, 0.0
        %523 = vadd.xlane.f32.xlu0 %v522
        %v524 = vpop.xlane.xlu0 %523
        %v525 = vsel %vm461, %v416, 0.0
        %526 = vadd.xlane.f32.xlu0 %v525
        %v527 = vpop.xlane.xlu0 %526
        %v528 = vsel %vm461, %v417, 0.0
        %529 = vadd.xlane.f32.xlu0 %v528
        %v530 = vpop.xlane.xlu0 %529
        %v531 = vsel %vm461, %v418, 0.0
        %532 = vadd.xlane.f32.xlu0 %v531
        %v533 = vpop.xlane.xlu0 %532
        %v534 = vsel %vm461, %v419, 0.0
        %535 = vadd.xlane.f32.xlu0 %v534
        %v536 = vpop.xlane.xlu0 %535
        %v537 = vsel %vm461, %v420, 0.0
        %538 = vadd.xlane.f32.xlu0 %v537
        %v539 = vpop.xlane.xlu0 %538
        %v540 = vsel %vm461, %v421, 0.0
        %541 = vadd.xlane.f32.xlu0 %v540
        %v542 = vpop.xlane.xlu0 %541
        %v543 = vsel %vm461, %v422, 0.0
        %544 = vadd.xlane.f32.xlu0 %v543
        %v545 = vpop.xlane.xlu0 %544
        %v546 = vsel %vm461, %v423, 0.0
        %547 = vadd.xlane.f32.xlu0 %v546
        %v548 = vpop.xlane.xlu0 %547
        %v549 = vsel %vm461, %v424, 0.0
        %550 = vadd.xlane.f32.xlu0 %v549
        %v551 = vpop.xlane.xlu0 %550
        %v552 = vsel %vm461, %v425, 0.0
        %553 = vadd.xlane.f32.xlu0 %v552
        %v554 = vpop.xlane.xlu0 %553
        %v555 = vsel %vm461, %v426, 0.0
        %556 = vadd.xlane.f32.xlu0 %v555
        %v557 = vpop.xlane.xlu0 %556
        %v558 = vsel %vm461, %v427, 0.0
        %559 = vadd.xlane.f32.xlu0 %v558
        %v560 = vpop.xlane.xlu0 %559
        %v561 = vsel %vm461, %v428, 0.0
        %562 = vadd.xlane.f32.xlu0 %v561
        %v563 = vpop.xlane.xlu0 %562
        %v564 = vsel %vm461, %v429, 0.0
        %565 = vadd.xlane.f32.xlu0 %v564
        %v566 = vpop.xlane.xlu0 %565
        %v567 = vsel %vm461, %v430, 0.0
        %568 = vadd.xlane.f32.xlu0 %v567
        %v569 = vpop.xlane.xlu0 %568
        %v570 = vsel %vm461, %v431, 0.0
        %571 = vadd.xlane.f32.xlu0 %v570
        %v572 = vpop.xlane.xlu0 %571
        %v573 = vsel %vm461, %v432, 0.0
        %574 = vadd.xlane.f32.xlu0 %v573
        %v575 = vpop.xlane.xlu0 %574
        %v576 = vsel %vm461, %v433, 0.0
        %577 = vadd.xlane.f32.xlu0 %v576
        %v578 = vpop.xlane.xlu0 %577
        %v579 = vsel %vm461, %v434, 0.0
        %580 = vadd.xlane.f32.xlu0 %v579
        %v581 = vpop.xlane.xlu0 %580
        %v582 = vsel %vm461, %v435, 0.0
        %583 = vadd.xlane.f32.xlu0 %v582
        %v584 = vpop.xlane.xlu0 %583
        %v585 = vsel %vm461, %v436, 0.0
        %586 = vadd.xlane.f32.xlu0 %v585
        %v587 = vpop.xlane.xlu0 %586
        %v588 = vsel %vm461, %v437, 0.0
        %589 = vadd.xlane.f32.xlu0 %v588
        %v590 = vpop.xlane.xlu0 %589
        %v591 = vsel %vm461, %v438, 0.0
        %592 = vadd.xlane.f32.xlu0 %v591
        %v593 = vpop.xlane.xlu0 %592
        %v594 = vsel %vm461, %v439, 0.0
        %595 = vadd.xlane.f32.xlu0 %v594
        %v596 = vpop.xlane.xlu0 %595
        %v597 = vsel %vm461, %v440, 0.0
        %598 = vadd.xlane.f32.xlu0 %v597
        %v599 = vpop.xlane.xlu0 %598
        %v600 = vsel %vm461, %v441, 0.0
        %601 = vadd.xlane.f32.xlu0 %v600
        %v602 = vpop.xlane.xlu0 %601
        %v603 = vsel %vm461, %v442, 0.0
        %604 = vadd.xlane.f32.xlu0 %v603
        %v605 = vpop.xlane.xlu0 %604
        %v606 = vsel %vm461, %v443, 0.0
        %607 = vadd.xlane.f32.xlu0 %v606
        %v608 = vpop.xlane.xlu0 %607
        %v609 = vsel %vm461, %v444, 0.0
        %610 = vadd.xlane.f32.xlu0 %v609
        %v611 = vpop.xlane.xlu0 %610
        %v612 = vsel %vm461, %v445, 0.0
        %613 = vadd.xlane.f32.xlu0 %v612
        %v614 = vpop.xlane.xlu0 %613
        %v615 = vsel %vm461, %v446, 0.0
        %616 = vadd.xlane.f32.xlu0 %v615
        %v617 = vpop.xlane.xlu0 %616
        %v618 = vsel %vm461, %v447, 0.0
        %619 = vadd.xlane.f32.xlu0 %v618
        %v620 = vpop.xlane.xlu0 %619
        %v621 = vsel %vm461, %v448, 0.0
        %622 = vadd.xlane.f32.xlu0 %v621
        %v623 = vpop.xlane.xlu0 %622
        %v624 = vsel %vm461, %v449, 0.0
        %625 = vadd.xlane.f32.xlu0 %v624
        %v626 = vpop.xlane.xlu0 %625
        %v627 = vsel %vm461, %v450, 0.0
        %628 = vadd.xlane.f32.xlu0 %v627
        %v629 = vpop.xlane.xlu0 %628
        %v630 = vsel %vm461, %v451, 0.0
        %631 = vadd.xlane.f32.xlu0 %v630
        %v632 = vpop.xlane.xlu0 %631
        %v633 = vsel %vm461, %v452, 0.0
        %634 = vadd.xlane.f32.xlu0 %v633
        %v635 = vpop.xlane.xlu0 %634
        %v636 = vsel %vm461, %v453, 0.0
        %637 = vadd.xlane.f32.xlu0 %v636
        %v638 = vpop.xlane.xlu0 %637
        %v639 = vsel %vm461, %v454, 0.0
        %640 = vadd.xlane.f32.xlu0 %v639
        %v641 = vpop.xlane.xlu0 %640
        %v642 = vsel %vm461, %v455, 0.0
        %643 = vadd.xlane.f32.xlu0 %v642
        %v644 = vpop.xlane.xlu0 %643
        %v645 = vsel %vm461, %v456, 0.0
        %646 = vadd.xlane.f32.xlu0 %v645
        %v647 = vpop.xlane.xlu0 %646
        %v648 = vsel %vm461, %v457, 0.0
        %649 = vadd.xlane.f32.xlu0 %v648
        %v650 = vpop.xlane.xlu0 %649
        %v651 = vsel %vm461, %v458, 0.0
        %652 = vadd.xlane.f32.xlu0 %v651
        %v653 = vpop.xlane.xlu0 %652
        %v654 = vrcp.pop 5.0
        %v655 = vmul.f32 %v464, %v654
        %v656 = vmul.f32 %v467, %v654
        %v657 = vmul.f32 %v470, %v654
        %v658 = vmul.f32 %v473, %v654
        %v659 = vmul.f32 %v476, %v654
        %v660 = vmul.f32 %v479, %v654
        %v661 = vmul.f32 %v482, %v654
        %v662 = vmul.f32 %v485, %v654
        %v663 = vmul.f32 %v488, %v654
        %v664 = vmul.f32 %v491, %v654
        %v665 = vmul.f32 %v494, %v654
        %v666 = vmul.f32 %v497, %v654
        %v667 = vmul.f32 %v500, %v654
        %v668 = vmul.f32 %v503, %v654
        %v669 = vmul.f32 %v506, %v654
        %v670 = vmul.f32 %v509, %v654
        %v671 = vmul.f32 %v512, %v654
        %v672 = vmul.f32 %v515, %v654
        %v673 = vmul.f32 %v518, %v654
        %v674 = vmul.f32 %v521, %v654
        %v675 = vmul.f32 %v524, %v654
        %v676 = vmul.f32 %v527, %v654
        %v677 = vmul.f32 %v530, %v654
        %v678 = vmul.f32 %v533, %v654
        %v679 = vmul.f32 %v536, %v654
        %v680 = vmul.f32 %v539, %v654
        %v681 = vmul.f32 %v542, %v654
        %v682 = vmul.f32 %v545, %v654
        %v683 = vmul.f32 %v548, %v654
        %v684 = vmul.f32 %v551, %v654
        %v685 = vmul.f32 %v554, %v654
        %v686 = vmul.f32 %v557, %v654
        %v687 = vmul.f32 %v560, %v654
        %v688 = vmul.f32 %v563, %v654
        %v689 = vmul.f32 %v566, %v654
        %v690 = vmul.f32 %v569, %v654
        %v691 = vmul.f32 %v572, %v654
        %v692 = vmul.f32 %v575, %v654
        %v693 = vmul.f32 %v578, %v654
        %v694 = vmul.f32 %v581, %v654
        %v695 = vmul.f32 %v584, %v654
        %v696 = vmul.f32 %v587, %v654
        %v697 = vmul.f32 %v590, %v654
        %v698 = vmul.f32 %v593, %v654
        %v699 = vmul.f32 %v596, %v654
        %v700 = vmul.f32 %v599, %v654
        %v701 = vmul.f32 %v602, %v654
        %v702 = vmul.f32 %v605, %v654
        %v703 = vmul.f32 %v608, %v654
        %v704 = vmul.f32 %v611, %v654
        %v705 = vmul.f32 %v614, %v654
        %v706 = vmul.f32 %v617, %v654
        %v707 = vmul.f32 %v620, %v654
        %v708 = vmul.f32 %v623, %v654
        %v709 = vmul.f32 %v626, %v654
        %v710 = vmul.f32 %v629, %v654
        %v711 = vmul.f32 %v632, %v654
        %v712 = vmul.f32 %v635, %v654
        %v713 = vmul.f32 %v638, %v654
        %v714 = vmul.f32 %v641, %v654
        %v715 = vmul.f32 %v644, %v654
        %v716 = vmul.f32 %v647, %v654
        %v717 = vmul.f32 %v650, %v654
        %v718 = vmul.f32 %v653, %v654
        %v719 = vmul.f32 %v395, %v395
        %v720 = vmul.f32 %v396, %v396
        %v721 = vmul.f32 %v397, %v397
        %v722 = vmul.f32 %v398, %v398
        %v723 = vmul.f32 %v399, %v399
        %v724 = vmul.f32 %v400, %v400
        %v725 = vmul.f32 %v401, %v401
        %v726 = vmul.f32 %v402, %v402
        %v727 = vmul.f32 %v403, %v403
        %v728 = vmul.f32 %v404, %v404
        %v729 = vmul.f32 %v405, %v405
        %v730 = vmul.f32 %v406, %v406
        %v731 = vmul.f32 %v407, %v407
        %v732 = vmul.f32 %v408, %v408
        %v733 = vmul.f32 %v409, %v409
        %v734 = vmul.f32 %v410, %v410
        %v735 = vmul.f32 %v411, %v411
        %v736 = vmul.f32 %v412, %v412
        %v737 = vmul.f32 %v413, %v413
        %v738 = vmul.f32 %v414, %v414
        %v739 = vmul.f32 %v415, %v415
        %v740 = vmul.f32 %v416, %v416
        %v741 = vmul.f32 %v417, %v417
        %v742 = vmul.f32 %v418, %v418
        %v743 = vmul.f32 %v419, %v419
        %v744 = vmul.f32 %v420, %v420
        %v745 = vmul.f32 %v421, %v421
        %v746 = vmul.f32 %v422, %v422
        %v747 = vmul.f32 %v423, %v423
        %v748 = vmul.f32 %v424, %v424
        %v749 = vmul.f32 %v425, %v425
        %v750 = vmul.f32 %v426, %v426
        %v751 = vmul.f32 %v427, %v427
        %v752 = vmul.f32 %v428, %v428
        %v753 = vmul.f32 %v429, %v429
        %v754 = vmul.f32 %v430, %v430
        %v755 = vmul.f32 %v431, %v431
        %v756 = vmul.f32 %v432, %v432
        %v757 = vmul.f32 %v433, %v433
        %v758 = vmul.f32 %v434, %v434
        %v759 = vmul.f32 %v435, %v435
        %v760 = vmul.f32 %v436, %v436
        %v761 = vmul.f32 %v437, %v437
        %v762 = vmul.f32 %v438, %v438
        %v763 = vmul.f32 %v439, %v439
        %v764 = vmul.f32 %v440, %v440
        %v765 = vmul.f32 %v441, %v441
        %v766 = vmul.f32 %v442, %v442
        %v767 = vmul.f32 %v443, %v443
        %v768 = vmul.f32 %v444, %v444
        %v769 = vmul.f32 %v445, %v445
        %v770 = vmul.f32 %v446, %v446
        %v771 = vmul.f32 %v447, %v447
        %v772 = vmul.f32 %v448, %v448
        %v773 = vmul.f32 %v449, %v449
        %v774 = vmul.f32 %v450, %v450
        %v775 = vmul.f32 %v451, %v451
        %v776 = vmul.f32 %v452, %v452
        %v777 = vmul.f32 %v453, %v453
        %v778 = vmul.f32 %v454, %v454
        %v779 = vmul.f32 %v455, %v455
        %v780 = vmul.f32 %v456, %v456
        %v781 = vmul.f32 %v457, %v457
        %v782 = vmul.f32 %v458, %v458
        %v783 = vsel %vm461, %v719, 0.0
        %784 = vadd.xlane.f32.xlu0 %v783
        %v785 = vpop.xlane.xlu0 %784
        %v786 = vsel %vm461, %v720, 0.0
        %787 = vadd.xlane.f32.xlu0 %v786
        %v788 = vpop.xlane.xlu0 %787
        %v789 = vsel %vm461, %v721, 0.0
        %790 = vadd.xlane.f32.xlu0 %v789
        %v791 = vpop.xlane.xlu0 %790
        %v792 = vsel %vm461, %v722, 0.0
        %793 = vadd.xlane.f32.xlu0 %v792
        %v794 = vpop.xlane.xlu0 %793
        %v795 = vsel %vm461, %v723, 0.0
        %796 = vadd.xlane.f32.xlu0 %v795
        %v797 = vpop.xlane.xlu0 %796
        %v798 = vsel %vm461, %v724, 0.0
        %799 = vadd.xlane.f32.xlu0 %v798
        %v800 = vpop.xlane.xlu0 %799
        %v801 = vsel %vm461, %v725, 0.0
        %802 = vadd.xlane.f32.xlu0 %v801
        %v803 = vpop.xlane.xlu0 %802
        %v804 = vsel %vm461, %v726, 0.0
        %805 = vadd.xlane.f32.xlu0 %v804
        %v806 = vpop.xlane.xlu0 %805
        %v807 = vsel %vm461, %v727, 0.0
        %808 = vadd.xlane.f32.xlu0 %v807
        %v809 = vpop.xlane.xlu0 %808
        %v810 = vsel %vm461, %v728, 0.0
        %811 = vadd.xlane.f32.xlu0 %v810
        %v812 = vpop.xlane.xlu0 %811
        %v813 = vsel %vm461, %v729, 0.0
        %814 = vadd.xlane.f32.xlu0 %v813
        %v815 = vpop.xlane.xlu0 %814
        %v816 = vsel %vm461, %v730, 0.0
        %817 = vadd.xlane.f32.xlu0 %v816
        %v818 = vpop.xlane.xlu0 %817
        %v819 = vsel %vm461, %v731, 0.0
        %820 = vadd.xlane.f32.xlu0 %v819
        %v821 = vpop.xlane.xlu0 %820
        %v822 = vsel %vm461, %v732, 0.0
        %823 = vadd.xlane.f32.xlu0 %v822
        %v824 = vpop.xlane.xlu0 %823
        %v825 = vsel %vm461, %v733, 0.0
        %826 = vadd.xlane.f32.xlu0 %v825
        %v827 = vpop.xlane.xlu0 %826
        %v828 = vsel %vm461, %v734, 0.0
        %829 = vadd.xlane.f32.xlu0 %v828
        %v830 = vpop.xlane.xlu0 %829
        %v831 = vsel %vm461, %v735, 0.0
        %832 = vadd.xlane.f32.xlu0 %v831
        %v833 = vpop.xlane.xlu0 %832
        %v834 = vsel %vm461, %v736, 0.0
        %835 = vadd.xlane.f32.xlu0 %v834
        %v836 = vpop.xlane.xlu0 %835
        %v837 = vsel %vm461, %v737, 0.0
        %838 = vadd.xlane.f32.xlu0 %v837
        %v839 = vpop.xlane.xlu0 %838
        %v840 = vsel %vm461, %v738, 0.0
        %841 = vadd.xlane.f32.xlu0 %v840
        %v842 = vpop.xlane.xlu0 %841
        %v843 = vsel %vm461, %v739, 0.0
        %844 = vadd.xlane.f32.xlu0 %v843
        %v845 = vpop.xlane.xlu0 %844
        %v846 = vsel %vm461, %v740, 0.0
        %847 = vadd.xlane.f32.xlu0 %v846
        %v848 = vpop.xlane.xlu0 %847
        %v849 = vsel %vm461, %v741, 0.0
        %850 = vadd.xlane.f32.xlu0 %v849
        %v851 = vpop.xlane.xlu0 %850
        %v852 = vsel %vm461, %v742, 0.0
        %853 = vadd.xlane.f32.xlu0 %v852
        %v854 = vpop.xlane.xlu0 %853
        %v855 = vsel %vm461, %v743, 0.0
        %856 = vadd.xlane.f32.xlu0 %v855
        %v857 = vpop.xlane.xlu0 %856
        %v858 = vsel %vm461, %v744, 0.0
        %859 = vadd.xlane.f32.xlu0 %v858
        %v860 = vpop.xlane.xlu0 %859
        %v861 = vsel %vm461, %v745, 0.0
        %862 = vadd.xlane.f32.xlu0 %v861
        %v863 = vpop.xlane.xlu0 %862
        %v864 = vsel %vm461, %v746, 0.0
        %865 = vadd.xlane.f32.xlu0 %v864
        %v866 = vpop.xlane.xlu0 %865
        %v867 = vsel %vm461, %v747, 0.0
        %868 = vadd.xlane.f32.xlu0 %v867
        %v869 = vpop.xlane.xlu0 %868
        %v870 = vsel %vm461, %v748, 0.0
        %871 = vadd.xlane.f32.xlu0 %v870
        %v872 = vpop.xlane.xlu0 %871
        %v873 = vsel %vm461, %v749, 0.0
        %874 = vadd.xlane.f32.xlu0 %v873
        %v875 = vpop.xlane.xlu0 %874
        %v876 = vsel %vm461, %v750, 0.0
        %877 = vadd.xlane.f32.xlu0 %v876
        %v878 = vpop.xlane.xlu0 %877
        %v879 = vsel %vm461, %v751, 0.0
        %880 = vadd.xlane.f32.xlu0 %v879
        %v881 = vpop.xlane.xlu0 %880
        %v882 = vsel %vm461, %v752, 0.0
        %883 = vadd.xlane.f32.xlu0 %v882
        %v884 = vpop.xlane.xlu0 %883
        %v885 = vsel %vm461, %v753, 0.0
        %886 = vadd.xlane.f32.xlu0 %v885
        %v887 = vpop.xlane.xlu0 %886
        %v888 = vsel %vm461, %v754, 0.0
        %889 = vadd.xlane.f32.xlu0 %v888
        %v890 = vpop.xlane.xlu0 %889
        %v891 = vsel %vm461, %v755, 0.0
        %892 = vadd.xlane.f32.xlu0 %v891
        %v893 = vpop.xlane.xlu0 %892
        %v894 = vsel %vm461, %v756, 0.0
        %895 = vadd.xlane.f32.xlu0 %v894
        %v896 = vpop.xlane.xlu0 %895
        %v897 = vsel %vm461, %v757, 0.0
        %898 = vadd.xlane.f32.xlu0 %v897
        %v899 = vpop.xlane.xlu0 %898
        %v900 = vsel %vm461, %v758, 0.0
        %901 = vadd.xlane.f32.xlu0 %v900
        %v902 = vpop.xlane.xlu0 %901
        %v903 = vsel %vm461, %v759, 0.0
        %904 = vadd.xlane.f32.xlu0 %v903
        %v905 = vpop.xlane.xlu0 %904
        %v906 = vsel %vm461, %v760, 0.0
        %907 = vadd.xlane.f32.xlu0 %v906
        %v908 = vpop.xlane.xlu0 %907
        %v909 = vsel %vm461, %v761, 0.0
        %910 = vadd.xlane.f32.xlu0 %v909
        %v911 = vpop.xlane.xlu0 %910
        %v912 = vsel %vm461, %v762, 0.0
        %913 = vadd.xlane.f32.xlu0 %v912
        %v914 = vpop.xlane.xlu0 %913
        %v915 = vsel %vm461, %v763, 0.0
        %916 = vadd.xlane.f32.xlu0 %v915
        %v917 = vpop.xlane.xlu0 %916
        %v918 = vsel %vm461, %v764, 0.0
        %919 = vadd.xlane.f32.xlu0 %v918
        %v920 = vpop.xlane.xlu0 %919
        %v921 = vsel %vm461, %v765, 0.0
        %922 = vadd.xlane.f32.xlu0 %v921
        %v923 = vpop.xlane.xlu0 %922
        %v924 = vsel %vm461, %v766, 0.0
        %925 = vadd.xlane.f32.xlu0 %v924
        %v926 = vpop.xlane.xlu0 %925
        %v927 = vsel %vm461, %v767, 0.0
        %928 = vadd.xlane.f32.xlu0 %v927
        %v929 = vpop.xlane.xlu0 %928
        %v930 = vsel %vm461, %v768, 0.0
        %931 = vadd.xlane.f32.xlu0 %v930
        %v932 = vpop.xlane.xlu0 %931
        %v933 = vsel %vm461, %v769, 0.0
        %934 = vadd.xlane.f32.xlu0 %v933
        %v935 = vpop.xlane.xlu0 %934
        %v936 = vsel %vm461, %v770, 0.0
        %937 = vadd.xlane.f32.xlu0 %v936
        %v938 = vpop.xlane.xlu0 %937
        %v939 = vsel %vm461, %v771, 0.0
        %940 = vadd.xlane.f32.xlu0 %v939
        %v941 = vpop.xlane.xlu0 %940
        %v942 = vsel %vm461, %v772, 0.0
        %943 = vadd.xlane.f32.xlu0 %v942
        %v944 = vpop.xlane.xlu0 %943
        %v945 = vsel %vm461, %v773, 0.0
        %946 = vadd.xlane.f32.xlu0 %v945
        %v947 = vpop.xlane.xlu0 %946
        %v948 = vsel %vm461, %v774, 0.0
        %949 = vadd.xlane.f32.xlu0 %v948
        %v950 = vpop.xlane.xlu0 %949
        %v951 = vsel %vm461, %v775, 0.0
        %952 = vadd.xlane.f32.xlu0 %v951
        %v953 = vpop.xlane.xlu0 %952
        %v954 = vsel %vm461, %v776, 0.0
        %955 = vadd.xlane.f32.xlu0 %v954
        %v956 = vpop.xlane.xlu0 %955
        %v957 = vsel %vm461, %v777, 0.0
        %958 = vadd.xlane.f32.xlu0 %v957
        %v959 = vpop.xlane.xlu0 %958
        %v960 = vsel %vm461, %v778, 0.0
        %961 = vadd.xlane.f32.xlu0 %v960
        %v962 = vpop.xlane.xlu0 %961
        %v963 = vsel %vm461, %v779, 0.0
        %964 = vadd.xlane.f32.xlu0 %v963
        %v965 = vpop.xlane.xlu0 %964
        %v966 = vsel %vm461, %v780, 0.0
        %967 = vadd.xlane.f32.xlu0 %v966
        %v968 = vpop.xlane.xlu0 %967
        %v969 = vsel %vm461, %v781, 0.0
        %970 = vadd.xlane.f32.xlu0 %v969
        %v971 = vpop.xlane.xlu0 %970
        %v972 = vsel %vm461, %v782, 0.0
        %973 = vadd.xlane.f32.xlu0 %v972
        %v974 = vpop.xlane.xlu0 %973
        %v975 = vmul.f32 %v785, %v654
        %v976 = vmul.f32 %v788, %v654
        %v977 = vmul.f32 %v791, %v654
        %v978 = vmul.f32 %v794, %v654
        %v979 = vmul.f32 %v797, %v654
        %v980 = vmul.f32 %v800, %v654
        %v981 = vmul.f32 %v803, %v654
        %v982 = vmul.f32 %v806, %v654
        %v983 = vmul.f32 %v809, %v654
        %v984 = vmul.f32 %v812, %v654
        %v985 = vmul.f32 %v815, %v654
        %v986 = vmul.f32 %v818, %v654
        %v987 = vmul.f32 %v821, %v654
        %v988 = vmul.f32 %v824, %v654
        %v989 = vmul.f32 %v827, %v654
        %v990 = vmul.f32 %v830, %v654
        %v991 = vmul.f32 %v833, %v654
        %v992 = vmul.f32 %v836, %v654
        %v993 = vmul.f32 %v839, %v654
        %v994 = vmul.f32 %v842, %v654
        %v995 = vmul.f32 %v845, %v654
        %v996 = vmul.f32 %v848, %v654
        %v997 = vmul.f32 %v851, %v654
        %v998 = vmul.f32 %v854, %v654
        %v999 = vmul.f32 %v857, %v654
        %v1000 = vmul.f32 %v860, %v654
        %v1001 = vmul.f32 %v863, %v654
        %v1002 = vmul.f32 %v866, %v654
        %v1003 = vmul.f32 %v869, %v654
        %v1004 = vmul.f32 %v872, %v654
        %v1005 = vmul.f32 %v875, %v654
        %v1006 = vmul.f32 %v878, %v654
        %v1007 = vmul.f32 %v881, %v654
        %v1008 = vmul.f32 %v884, %v654
        %v1009 = vmul.f32 %v887, %v654
        %v1010 = vmul.f32 %v890, %v654
        %v1011 = vmul.f32 %v893, %v654
        %v1012 = vmul.f32 %v896, %v654
        %v1013 = vmul.f32 %v899, %v654
        %v1014 = vmul.f32 %v902, %v654
        %v1015 = vmul.f32 %v905, %v654
        %v1016 = vmul.f32 %v908, %v654
        %v1017 = vmul.f32 %v911, %v654
        %v1018 = vmul.f32 %v914, %v654
        %v1019 = vmul.f32 %v917, %v654
        %v1020 = vmul.f32 %v920, %v654
        %v1021 = vmul.f32 %v923, %v654
        %v1022 = vmul.f32 %v926, %v654
        %v1023 = vmul.f32 %v929, %v654
        %v1024 = vmul.f32 %v932, %v654
        %v1025 = vmul.f32 %v935, %v654
        %v1026 = vmul.f32 %v938, %v654
        %v1027 = vmul.f32 %v941, %v654
        %v1028 = vmul.f32 %v944, %v654
        %v1029 = vmul.f32 %v947, %v654
        %v1030 = vmul.f32 %v950, %v654
        %v1031 = vmul.f32 %v953, %v654
        %v1032 = vmul.f32 %v956, %v654
        %v1033 = vmul.f32 %v959, %v654
        %v1034 = vmul.f32 %v962, %v654
        %v1035 = vmul.f32 %v965, %v654
        %v1036 = vmul.f32 %v968, %v654
        %v1037 = vmul.f32 %v971, %v654
        %v1038 = vmul.f32 %v974, %v654
        %v1039 = vmul.f32 %v655, %v655
        %v1040 = vmul.f32 %v656, %v656
        %v1041 = vmul.f32 %v657, %v657
        %v1042 = vmul.f32 %v658, %v658
        %v1043 = vmul.f32 %v659, %v659
        %v1044 = vmul.f32 %v660, %v660
        %v1045 = vmul.f32 %v661, %v661
        %v1046 = vmul.f32 %v662, %v662
        %v1047 = vmul.f32 %v663, %v663
        %v1048 = vmul.f32 %v664, %v664
        %v1049 = vmul.f32 %v665, %v665
        %v1050 = vmul.f32 %v666, %v666
        %v1051 = vmul.f32 %v667, %v667
        %v1052 = vmul.f32 %v668, %v668
        %v1053 = vmul.f32 %v669, %v669
        %v1054 = vmul.f32 %v670, %v670
        %v1055 = vmul.f32 %v671, %v671
        %v1056 = vmul.f32 %v672, %v672
        %v1057 = vmul.f32 %v673, %v673
        %v1058 = vmul.f32 %v674, %v674
        %v1059 = vmul.f32 %v675, %v675
        %v1060 = vmul.f32 %v676, %v676
        %v1061 = vmul.f32 %v677, %v677
        %v1062 = vmul.f32 %v678, %v678
        %v1063 = vmul.f32 %v679, %v679
        %v1064 = vmul.f32 %v680, %v680
        %v1065 = vmul.f32 %v681, %v681
        %v1066 = vmul.f32 %v682, %v682
        %v1067 = vmul.f32 %v683, %v683
        %v1068 = vmul.f32 %v684, %v684
        %v1069 = vmul.f32 %v685, %v685
        %v1070 = vmul.f32 %v686, %v686
        %v1071 = vmul.f32 %v687, %v687
        %v1072 = vmul.f32 %v688, %v688
        %v1073 = vmul.f32 %v689, %v689
        %v1074 = vmul.f32 %v690, %v690
        %v1075 = vmul.f32 %v691, %v691
        %v1076 = vmul.f32 %v692, %v692
        %v1077 = vmul.f32 %v693, %v693
        %v1078 = vmul.f32 %v694, %v694
        %v1079 = vmul.f32 %v695, %v695
        %v1080 = vmul.f32 %v696, %v696
        %v1081 = vmul.f32 %v697, %v697
        %v1082 = vmul.f32 %v698, %v698
        %v1083 = vmul.f32 %v699, %v699
        %v1084 = vmul.f32 %v700, %v700
        %v1085 = vmul.f32 %v701, %v701
        %v1086 = vmul.f32 %v702, %v702
        %v1087 = vmul.f32 %v703, %v703
        %v1088 = vmul.f32 %v704, %v704
        %v1089 = vmul.f32 %v705, %v705
        %v1090 = vmul.f32 %v706, %v706
        %v1091 = vmul.f32 %v707, %v707
        %v1092 = vmul.f32 %v708, %v708
        %v1093 = vmul.f32 %v709, %v709
        %v1094 = vmul.f32 %v710, %v710
        %v1095 = vmul.f32 %v711, %v711
        %v1096 = vmul.f32 %v712, %v712
        %v1097 = vmul.f32 %v713, %v713
        %v1098 = vmul.f32 %v714, %v714
        %v1099 = vmul.f32 %v715, %v715
        %v1100 = vmul.f32 %v716, %v716
        %v1101 = vmul.f32 %v717, %v717
        %v1102 = vmul.f32 %v718, %v718
        %v1103 = vsub.f32 %v975, %v1039
        %v1104 = vsub.f32 %v976, %v1040
        %v1105 = vsub.f32 %v977, %v1041
        %v1106 = vsub.f32 %v978, %v1042
        %v1107 = vsub.f32 %v979, %v1043
        %v1108 = vsub.f32 %v980, %v1044
        %v1109 = vsub.f32 %v981, %v1045
        %v1110 = vsub.f32 %v982, %v1046
        %v1111 = vsub.f32 %v983, %v1047
        %v1112 = vsub.f32 %v984, %v1048
        %v1113 = vsub.f32 %v985, %v1049
        %v1114 = vsub.f32 %v986, %v1050
        %v1115 = vsub.f32 %v987, %v1051
        %v1116 = vsub.f32 %v988, %v1052
        %v1117 = vsub.f32 %v989, %v1053
        %v1118 = vsub.f32 %v990, %v1054
        %v1119 = vsub.f32 %v991, %v1055
        %v1120 = vsub.f32 %v992, %v1056
        %v1121 = vsub.f32 %v993, %v1057
        %v1122 = vsub.f32 %v994, %v1058
        %v1123 = vsub.f32 %v995, %v1059
        %v1124 = vsub.f32 %v996, %v1060
        %v1125 = vsub.f32 %v997, %v1061
        %v1126 = vsub.f32 %v998, %v1062
        %v1127 = vsub.f32 %v999, %v1063
        %v1128 = vsub.f32 %v1000, %v1064
        %v1129 = vsub.f32 %v1001, %v1065
        %v1130 = vsub.f32 %v1002, %v1066
        %v1131 = vsub.f32 %v1003, %v1067
        %v1132 = vsub.f32 %v1004, %v1068
        %v1133 = vsub.f32 %v1005, %v1069
        %v1134 = vsub.f32 %v1006, %v1070
        %v1135 = vsub.f32 %v1007, %v1071
        %v1136 = vsub.f32 %v1008, %v1072
        %v1137 = vsub.f32 %v1009, %v1073
        %v1138 = vsub.f32 %v1010, %v1074
        %v1139 = vsub.f32 %v1011, %v1075
        %v1140 = vsub.f32 %v1012, %v1076
        %v1141 = vsub.f32 %v1013, %v1077
        %v1142 = vsub.f32 %v1014, %v1078
        %v1143 = vsub.f32 %v1015, %v1079
        %v1144 = vsub.f32 %v1016, %v1080
        %v1145 = vsub.f32 %v1017, %v1081
        %v1146 = vsub.f32 %v1018, %v1082
        %v1147 = vsub.f32 %v1019, %v1083
        %v1148 = vsub.f32 %v1020, %v1084
        %v1149 = vsub.f32 %v1021, %v1085
        %v1150 = vsub.f32 %v1022, %v1086
        %v1151 = vsub.f32 %v1023, %v1087
        %v1152 = vsub.f32 %v1024, %v1088
        %v1153 = vsub.f32 %v1025, %v1089
        %v1154 = vsub.f32 %v1026, %v1090
        %v1155 = vsub.f32 %v1027, %v1091
        %v1156 = vsub.f32 %v1028, %v1092
        %v1157 = vsub.f32 %v1029, %v1093
        %v1158 = vsub.f32 %v1030, %v1094
        %v1159 = vsub.f32 %v1031, %v1095
        %v1160 = vsub.f32 %v1032, %v1096
        %v1161 = vsub.f32 %v1033, %v1097
        %v1162 = vsub.f32 %v1034, %v1098
        %v1163 = vsub.f32 %v1035, %v1099
        %v1164 = vsub.f32 %v1036, %v1100
        %v1165 = vsub.f32 %v1037, %v1101
        %v1166 = vsub.f32 %v1038, %v1102
        %v1167 = vmax.f32 %v1103, 0.0
        %v1168 = vmax.f32 %v1104, 0.0
        %v1169 = vmax.f32 %v1105, 0.0
        %v1170 = vmax.f32 %v1106, 0.0
        %v1171 = vmax.f32 %v1107, 0.0
        %v1172 = vmax.f32 %v1108, 0.0
        %v1173 = vmax.f32 %v1109, 0.0
        %v1174 = vmax.f32 %v1110, 0.0
        %v1175 = vmax.f32 %v1111, 0.0
        %v1176 = vmax.f32 %v1112, 0.0
        %v1177 = vmax.f32 %v1113, 0.0
        %v1178 = vmax.f32 %v1114, 0.0
        %v1179 = vmax.f32 %v1115, 0.0
        %v1180 = vmax.f32 %v1116, 0.0
        %v1181 = vmax.f32 %v1117, 0.0
        %v1182 = vmax.f32 %v1118, 0.0
        %v1183 = vmax.f32 %v1119, 0.0
        %v1184 = vmax.f32 %v1120, 0.0
        %v1185 = vmax.f32 %v1121, 0.0
        %v1186 = vmax.f32 %v1122, 0.0
        %v1187 = vmax.f32 %v1123, 0.0
        %v1188 = vmax.f32 %v1124, 0.0
        %v1189 = vmax.f32 %v1125, 0.0
        %v1190 = vmax.f32 %v1126, 0.0
        %v1191 = vmax.f32 %v1127, 0.0
        %v1192 = vmax.f32 %v1128, 0.0
        %v1193 = vmax.f32 %v1129, 0.0
        %v1194 = vmax.f32 %v1130, 0.0
        %v1195 = vmax.f32 %v1131, 0.0
        %v1196 = vmax.f32 %v1132, 0.0
        %v1197 = vmax.f32 %v1133, 0.0
        %v1198 = vmax.f32 %v1134, 0.0
        %v1199 = vmax.f32 %v1135, 0.0
        %v1200 = vmax.f32 %v1136, 0.0
        %v1201 = vmax.f32 %v1137, 0.0
        %v1202 = vmax.f32 %v1138, 0.0
        %v1203 = vmax.f32 %v1139, 0.0
        %v1204 = vmax.f32 %v1140, 0.0
        %v1205 = vmax.f32 %v1141, 0.0
        %v1206 = vmax.f32 %v1142, 0.0
        %v1207 = vmax.f32 %v1143, 0.0
        %v1208 = vmax.f32 %v1144, 0.0
        %v1209 = vmax.f32 %v1145, 0.0
        %v1210 = vmax.f32 %v1146, 0.0
        %v1211 = vmax.f32 %v1147, 0.0
        %v1212 = vmax.f32 %v1148, 0.0
        %v1213 = vmax.f32 %v1149, 0.0
        %v1214 = vmax.f32 %v1150, 0.0
        %v1215 = vmax.f32 %v1151, 0.0
        %v1216 = vmax.f32 %v1152, 0.0
        %v1217 = vmax.f32 %v1153, 0.0
        %v1218 = vmax.f32 %v1154, 0.0
        %v1219 = vmax.f32 %v1155, 0.0
        %v1220 = vmax.f32 %v1156, 0.0
        %v1221 = vmax.f32 %v1157, 0.0
        %v1222 = vmax.f32 %v1158, 0.0
        %v1223 = vmax.f32 %v1159, 0.0
        %v1224 = vmax.f32 %v1160, 0.0
        %v1225 = vmax.f32 %v1161, 0.0
        %v1226 = vmax.f32 %v1162, 0.0
        %v1227 = vmax.f32 %v1163, 0.0
        %v1228 = vmax.f32 %v1164, 0.0
        %v1229 = vmax.f32 %v1165, 0.0
        %v1230 = vmax.f32 %v1166, 0.0
        %v1231 = vsub.f32 %v395, %v655
        %v1232 = vsub.f32 %v396, %v656
        %v1233 = vsub.f32 %v397, %v657
        %v1234 = vsub.f32 %v398, %v658
        %v1235 = vsub.f32 %v399, %v659
        %v1236 = vsub.f32 %v400, %v660
        %v1237 = vsub.f32 %v401, %v661
        %v1238 = vsub.f32 %v402, %v662
        %v1239 = vsub.f32 %v403, %v663
        %v1240 = vsub.f32 %v404, %v664
        %v1241 = vsub.f32 %v405, %v665
        %v1242 = vsub.f32 %v406, %v666
        %v1243 = vsub.f32 %v407, %v667
        %v1244 = vsub.f32 %v408, %v668
        %v1245 = vsub.f32 %v409, %v669
        %v1246 = vsub.f32 %v410, %v670
        %v1247 = vsub.f32 %v411, %v671
        %v1248 = vsub.f32 %v412, %v672
        %v1249 = vsub.f32 %v413, %v673
        %v1250 = vsub.f32 %v414, %v674
        %v1251 = vsub.f32 %v415, %v675
        %v1252 = vsub.f32 %v416, %v676
        %v1253 = vsub.f32 %v417, %v677
        %v1254 = vsub.f32 %v418, %v678
        %v1255 = vsub.f32 %v419, %v679
        %v1256 = vsub.f32 %v420, %v680
        %v1257 = vsub.f32 %v421, %v681
        %v1258 = vsub.f32 %v422, %v682
        %v1259 = vsub.f32 %v423, %v683
        %v1260 = vsub.f32 %v424, %v684
        %v1261 = vsub.f32 %v425, %v685
        %v1262 = vsub.f32 %v426, %v686
        %v1263 = vsub.f32 %v427, %v687
        %v1264 = vsub.f32 %v428, %v688
        %v1265 = vsub.f32 %v429, %v689
        %v1266 = vsub.f32 %v430, %v690
        %v1267 = vsub.f32 %v431, %v691
        %v1268 = vsub.f32 %v432, %v692
        %v1269 = vsub.f32 %v433, %v693
        %v1270 = vsub.f32 %v434, %v694
        %v1271 = vsub.f32 %v435, %v695
        %v1272 = vsub.f32 %v436, %v696
        %v1273 = vsub.f32 %v437, %v697
        %v1274 = vsub.f32 %v438, %v698
        %v1275 = vsub.f32 %v439, %v699
        %v1276 = vsub.f32 %v440, %v700
        %v1277 = vsub.f32 %v441, %v701
        %v1278 = vsub.f32 %v442, %v702
        %v1279 = vsub.f32 %v443, %v703
        %v1280 = vsub.f32 %v444, %v704
        %v1281 = vsub.f32 %v445, %v705
        %v1282 = vsub.f32 %v446, %v706
        %v1283 = vsub.f32 %v447, %v707
        %v1284 = vsub.f32 %v448, %v708
        %v1285 = vsub.f32 %v449, %v709
        %v1286 = vsub.f32 %v450, %v710
        %v1287 = vsub.f32 %v451, %v711
        %v1288 = vsub.f32 %v452, %v712
        %v1289 = vsub.f32 %v453, %v713
        %v1290 = vsub.f32 %v454, %v714
        %v1291 = vsub.f32 %v455, %v715
        %v1292 = vsub.f32 %v456, %v716
        %v1293 = vsub.f32 %v457, %v717
        %v1294 = vsub.f32 %v458, %v718
        %v1295 = vadd.f32 %v1167, 1e-05
        %v1296 = vadd.f32 %v1168, 1e-05
        %v1297 = vadd.f32 %v1169, 1e-05
        %v1298 = vadd.f32 %v1170, 1e-05
        %v1299 = vadd.f32 %v1171, 1e-05
        %v1300 = vadd.f32 %v1172, 1e-05
        %v1301 = vadd.f32 %v1173, 1e-05
        %v1302 = vadd.f32 %v1174, 1e-05
        %v1303 = vadd.f32 %v1175, 1e-05
        %v1304 = vadd.f32 %v1176, 1e-05
        %v1305 = vadd.f32 %v1177, 1e-05
        %v1306 = vadd.f32 %v1178, 1e-05
        %v1307 = vadd.f32 %v1179, 1e-05
        %v1308 = vadd.f32 %v1180, 1e-05
        %v1309 = vadd.f32 %v1181, 1e-05
        %v1310 = vadd.f32 %v1182, 1e-05
        %v1311 = vadd.f32 %v1183, 1e-05
        %v1312 = vadd.f32 %v1184, 1e-05
        %v1313 = vadd.f32 %v1185, 1e-05
        %v1314 = vadd.f32 %v1186, 1e-05
        %v1315 = vadd.f32 %v1187, 1e-05
        %v1316 = vadd.f32 %v1188, 1e-05
        %v1317 = vadd.f32 %v1189, 1e-05
        %v1318 = vadd.f32 %v1190, 1e-05
        %v1319 = vadd.f32 %v1191, 1e-05
        %v1320 = vadd.f32 %v1192, 1e-05
        %v1321 = vadd.f32 %v1193, 1e-05
        %v1322 = vadd.f32 %v1194, 1e-05
        %v1323 = vadd.f32 %v1195, 1e-05
        %v1324 = vadd.f32 %v1196, 1e-05
        %v1325 = vadd.f32 %v1197, 1e-05
        %v1326 = vadd.f32 %v1198, 1e-05
        %v1327 = vadd.f32 %v1199, 1e-05
        %v1328 = vadd.f32 %v1200, 1e-05
        %v1329 = vadd.f32 %v1201, 1e-05
        %v1330 = vadd.f32 %v1202, 1e-05
        %v1331 = vadd.f32 %v1203, 1e-05
        %v1332 = vadd.f32 %v1204, 1e-05
        %v1333 = vadd.f32 %v1205, 1e-05
        %v1334 = vadd.f32 %v1206, 1e-05
        %v1335 = vadd.f32 %v1207, 1e-05
        %v1336 = vadd.f32 %v1208, 1e-05
        %v1337 = vadd.f32 %v1209, 1e-05
        %v1338 = vadd.f32 %v1210, 1e-05
        %v1339 = vadd.f32 %v1211, 1e-05
        %v1340 = vadd.f32 %v1212, 1e-05
        %v1341 = vadd.f32 %v1213, 1e-05
        %v1342 = vadd.f32 %v1214, 1e-05
        %v1343 = vadd.f32 %v1215, 1e-05
        %v1344 = vadd.f32 %v1216, 1e-05
        %v1345 = vadd.f32 %v1217, 1e-05
        %v1346 = vadd.f32 %v1218, 1e-05
        %v1347 = vadd.f32 %v1219, 1e-05
        %v1348 = vadd.f32 %v1220, 1e-05
        %v1349 = vadd.f32 %v1221, 1e-05
        %v1350 = vadd.f32 %v1222, 1e-05
        %v1351 = vadd.f32 %v1223, 1e-05
        %v1352 = vadd.f32 %v1224, 1e-05
        %v1353 = vadd.f32 %v1225, 1e-05
        %v1354 = vadd.f32 %v1226, 1e-05
        %v1355 = vadd.f32 %v1227, 1e-05
        %v1356 = vadd.f32 %v1228, 1e-05
        %v1357 = vadd.f32 %v1229, 1e-05
        %v1358 = vadd.f32 %v1230, 1e-05
        %v1359 = vrsqrt.pop %v1295
        %v1360 = vrsqrt.pop %v1296
        %v1361 = vrsqrt.pop %v1297
        %v1362 = vrsqrt.pop %v1298
        %v1363 = vrsqrt.pop %v1299
        %v1364 = vrsqrt.pop %v1300
        %v1365 = vrsqrt.pop %v1301
        %v1366 = vrsqrt.pop %v1302
        %v1367 = vrsqrt.pop %v1303
        %v1368 = vrsqrt.pop %v1304
        %v1369 = vrsqrt.pop %v1305
        %v1370 = vrsqrt.pop %v1306
        %v1371 = vrsqrt.pop %v1307
        %v1372 = vrsqrt.pop %v1308
        %v1373 = vrsqrt.pop %v1309
        %v1374 = vrsqrt.pop %v1310
        %v1375 = vrsqrt.pop %v1311
        %v1376 = vrsqrt.pop %v1312
        %v1377 = vrsqrt.pop %v1313
        %v1378 = vrsqrt.pop %v1314
        %v1379 = vrsqrt.pop %v1315
        %v1380 = vrsqrt.pop %v1316
        %v1381 = vrsqrt.pop %v1317
        %v1382 = vrsqrt.pop %v1318
        %v1383 = vrsqrt.pop %v1319
        %v1384 = vrsqrt.pop %v1320
        %v1385 = vrsqrt.pop %v1321
        %v1386 = vrsqrt.pop %v1322
        %v1387 = vrsqrt.pop %v1323
        %v1388 = vrsqrt.pop %v1324
        %v1389 = vrsqrt.pop %v1325
        %v1390 = vrsqrt.pop %v1326
        %v1391 = vrsqrt.pop %v1327
        %v1392 = vrsqrt.pop %v1328
        %v1393 = vrsqrt.pop %v1329
        %v1394 = vrsqrt.pop %v1330
        %v1395 = vrsqrt.pop %v1331
        %v1396 = vrsqrt.pop %v1332
        %v1397 = vrsqrt.pop %v1333
        %v1398 = vrsqrt.pop %v1334
        %v1399 = vrsqrt.pop %v1335
        %v1400 = vrsqrt.pop %v1336
        %v1401 = vrsqrt.pop %v1337
        %v1402 = vrsqrt.pop %v1338
        %v1403 = vrsqrt.pop %v1339
        %v1404 = vrsqrt.pop %v1340
        %v1405 = vrsqrt.pop %v1341
        %v1406 = vrsqrt.pop %v1342
        %v1407 = vrsqrt.pop %v1343
        %v1408 = vrsqrt.pop %v1344
        %v1409 = vrsqrt.pop %v1345
        %v1410 = vrsqrt.pop %v1346
        %v1411 = vrsqrt.pop %v1347
        %v1412 = vrsqrt.pop %v1348
        %v1413 = vrsqrt.pop %v1349
        %v1414 = vrsqrt.pop %v1350
        %v1415 = vrsqrt.pop %v1351
        %v1416 = vrsqrt.pop %v1352
        %v1417 = vrsqrt.pop %v1353
        %v1418 = vrsqrt.pop %v1354
        %v1419 = vrsqrt.pop %v1355
        %v1420 = vrsqrt.pop %v1356
        %v1421 = vrsqrt.pop %v1357
        %v1422 = vrsqrt.pop %v1358
        %v1423 = vmul.f32 %v1231, %v1359
        %v1424 = vmul.f32 %v1232, %v1360
        %v1425 = vmul.f32 %v1233, %v1361
        %v1426 = vmul.f32 %v1234, %v1362
        %v1427 = vmul.f32 %v1235, %v1363
        %v1428 = vmul.f32 %v1236, %v1364
        %v1429 = vmul.f32 %v1237, %v1365
        %v1430 = vmul.f32 %v1238, %v1366
        %v1431 = vmul.f32 %v1239, %v1367
        %v1432 = vmul.f32 %v1240, %v1368
        %v1433 = vmul.f32 %v1241, %v1369
        %v1434 = vmul.f32 %v1242, %v1370
        %v1435 = vmul.f32 %v1243, %v1371
        %v1436 = vmul.f32 %v1244, %v1372
        %v1437 = vmul.f32 %v1245, %v1373
        %v1438 = vmul.f32 %v1246, %v1374
        %v1439 = vmul.f32 %v1247, %v1375
        %v1440 = vmul.f32 %v1248, %v1376
        %v1441 = vmul.f32 %v1249, %v1377
        %v1442 = vmul.f32 %v1250, %v1378
        %v1443 = vmul.f32 %v1251, %v1379
        %v1444 = vmul.f32 %v1252, %v1380
        %v1445 = vmul.f32 %v1253, %v1381
        %v1446 = vmul.f32 %v1254, %v1382
        %v1447 = vmul.f32 %v1255, %v1383
        %v1448 = vmul.f32 %v1256, %v1384
        %v1449 = vmul.f32 %v1257, %v1385
        %v1450 = vmul.f32 %v1258, %v1386
        %v1451 = vmul.f32 %v1259, %v1387
        %v1452 = vmul.f32 %v1260, %v1388
        %v1453 = vmul.f32 %v1261, %v1389
        %v1454 = vmul.f32 %v1262, %v1390
        %v1455 = vmul.f32 %v1263, %v1391
        %v1456 = vmul.f32 %v1264, %v1392
        %v1457 = vmul.f32 %v1265, %v1393
        %v1458 = vmul.f32 %v1266, %v1394
        %v1459 = vmul.f32 %v1267, %v1395
        %v1460 = vmul.f32 %v1268, %v1396
        %v1461 = vmul.f32 %v1269, %v1397
        %v1462 = vmul.f32 %v1270, %v1398
        %v1463 = vmul.f32 %v1271, %v1399
        %v1464 = vmul.f32 %v1272, %v1400
        %v1465 = vmul.f32 %v1273, %v1401
        %v1466 = vmul.f32 %v1274, %v1402
        %v1467 = vmul.f32 %v1275, %v1403
        %v1468 = vmul.f32 %v1276, %v1404
        %v1469 = vmul.f32 %v1277, %v1405
        %v1470 = vmul.f32 %v1278, %v1406
        %v1471 = vmul.f32 %v1279, %v1407
        %v1472 = vmul.f32 %v1280, %v1408
        %v1473 = vmul.f32 %v1281, %v1409
        %v1474 = vmul.f32 %v1282, %v1410
        %v1475 = vmul.f32 %v1283, %v1411
        %v1476 = vmul.f32 %v1284, %v1412
        %v1477 = vmul.f32 %v1285, %v1413
        %v1478 = vmul.f32 %v1286, %v1414
        %v1479 = vmul.f32 %v1287, %v1415
        %v1480 = vmul.f32 %v1288, %v1416
        %v1481 = vmul.f32 %v1289, %v1417
        %v1482 = vmul.f32 %v1290, %v1418
        %v1483 = vmul.f32 %v1291, %v1419
        %v1484 = vmul.f32 %v1292, %v1420
        %v1485 = vmul.f32 %v1293, %v1421
        %v1486 = vmul.f32 %v1294, %v1422
        %v1488 = vlaneseq
        %v1489 = vshrl.u32 %v1488, 7
        %v1490 = vsub.s32 0, %v1489
        %v1491 = vrot.slane %v459, %v1490
        %v1493 = vmul.f32 %v1423, %v1491
        %v1494 = vmul.f32 %v1424, %v1491
        %v1495 = vmul.f32 %v1425, %v1491
        %v1496 = vmul.f32 %v1426, %v1491
        %v1497 = vmul.f32 %v1427, %v1491
        %v1498 = vmul.f32 %v1428, %v1491
        %v1499 = vmul.f32 %v1429, %v1491
        %v1500 = vmul.f32 %v1430, %v1491
        %v1501 = vmul.f32 %v1431, %v1491
        %v1502 = vmul.f32 %v1432, %v1491
        %v1503 = vmul.f32 %v1433, %v1491
        %v1504 = vmul.f32 %v1434, %v1491
        %v1505 = vmul.f32 %v1435, %v1491
        %v1506 = vmul.f32 %v1436, %v1491
        %v1507 = vmul.f32 %v1437, %v1491
        %v1508 = vmul.f32 %v1438, %v1491
        %v1509 = vmul.f32 %v1439, %v1491
        %v1510 = vmul.f32 %v1440, %v1491
        %v1511 = vmul.f32 %v1441, %v1491
        %v1512 = vmul.f32 %v1442, %v1491
        %v1513 = vmul.f32 %v1443, %v1491
        %v1514 = vmul.f32 %v1444, %v1491
        %v1515 = vmul.f32 %v1445, %v1491
        %v1516 = vmul.f32 %v1446, %v1491
        %v1517 = vmul.f32 %v1447, %v1491
        %v1518 = vmul.f32 %v1448, %v1491
        %v1519 = vmul.f32 %v1449, %v1491
        %v1520 = vmul.f32 %v1450, %v1491
        %v1521 = vmul.f32 %v1451, %v1491
        %v1522 = vmul.f32 %v1452, %v1491
        %v1523 = vmul.f32 %v1453, %v1491
        %v1524 = vmul.f32 %v1454, %v1491
        %v1525 = vmul.f32 %v1455, %v1491
        %v1526 = vmul.f32 %v1456, %v1491
        %v1527 = vmul.f32 %v1457, %v1491
        %v1528 = vmul.f32 %v1458, %v1491
        %v1529 = vmul.f32 %v1459, %v1491
        %v1530 = vmul.f32 %v1460, %v1491
        %v1531 = vmul.f32 %v1461, %v1491
        %v1532 = vmul.f32 %v1462, %v1491
        %v1533 = vmul.f32 %v1463, %v1491
        %v1534 = vmul.f32 %v1464, %v1491
        %v1535 = vmul.f32 %v1465, %v1491
        %v1536 = vmul.f32 %v1466, %v1491
        %v1537 = vmul.f32 %v1467, %v1491
        %v1538 = vmul.f32 %v1468, %v1491
        %v1539 = vmul.f32 %v1469, %v1491
        %v1540 = vmul.f32 %v1470, %v1491
        %v1541 = vmul.f32 %v1471, %v1491
        %v1542 = vmul.f32 %v1472, %v1491
        %v1543 = vmul.f32 %v1473, %v1491
        %v1544 = vmul.f32 %v1474, %v1491
        %v1545 = vmul.f32 %v1475, %v1491
        %v1546 = vmul.f32 %v1476, %v1491
        %v1547 = vmul.f32 %v1477, %v1491
        %v1548 = vmul.f32 %v1478, %v1491
        %v1549 = vmul.f32 %v1479, %v1491
        %v1550 = vmul.f32 %v1480, %v1491
        %v1551 = vmul.f32 %v1481, %v1491
        %v1552 = vmul.f32 %v1482, %v1491
        %v1553 = vmul.f32 %v1483, %v1491
        %v1554 = vmul.f32 %v1484, %v1491
        %v1555 = vmul.f32 %v1485, %v1491
        %v1556 = vmul.f32 %v1486, %v1491
        %v1558 = vlaneseq
        %v1559 = vshrl.u32 %v1558, 7
        %v1560 = vsub.s32 0, %v1559
        %v1561 = vrot.slane %v460, %v1560
        %v1563 = vadd.f32 %v1493, %v1561
        %v1564 = vadd.f32 %v1494, %v1561
        %v1565 = vadd.f32 %v1495, %v1561
        %v1566 = vadd.f32 %v1496, %v1561
        %v1567 = vadd.f32 %v1497, %v1561
        %v1568 = vadd.f32 %v1498, %v1561
        %v1569 = vadd.f32 %v1499, %v1561
        %v1570 = vadd.f32 %v1500, %v1561
        %v1571 = vadd.f32 %v1501, %v1561
        %v1572 = vadd.f32 %v1502, %v1561
        %v1573 = vadd.f32 %v1503, %v1561
        %v1574 = vadd.f32 %v1504, %v1561
        %v1575 = vadd.f32 %v1505, %v1561
        %v1576 = vadd.f32 %v1506, %v1561
        %v1577 = vadd.f32 %v1507, %v1561
        %v1578 = vadd.f32 %v1508, %v1561
        %v1579 = vadd.f32 %v1509, %v1561
        %v1580 = vadd.f32 %v1510, %v1561
        %v1581 = vadd.f32 %v1511, %v1561
        %v1582 = vadd.f32 %v1512, %v1561
        %v1583 = vadd.f32 %v1513, %v1561
        %v1584 = vadd.f32 %v1514, %v1561
        %v1585 = vadd.f32 %v1515, %v1561
        %v1586 = vadd.f32 %v1516, %v1561
        %v1587 = vadd.f32 %v1517, %v1561
        %v1588 = vadd.f32 %v1518, %v1561
        %v1589 = vadd.f32 %v1519, %v1561
        %v1590 = vadd.f32 %v1520, %v1561
        %v1591 = vadd.f32 %v1521, %v1561
        %v1592 = vadd.f32 %v1522, %v1561
        %v1593 = vadd.f32 %v1523, %v1561
        %v1594 = vadd.f32 %v1524, %v1561
        %v1595 = vadd.f32 %v1525, %v1561
        %v1596 = vadd.f32 %v1526, %v1561
        %v1597 = vadd.f32 %v1527, %v1561
        %v1598 = vadd.f32 %v1528, %v1561
        %v1599 = vadd.f32 %v1529, %v1561
        %v1600 = vadd.f32 %v1530, %v1561
        %v1601 = vadd.f32 %v1531, %v1561
        %v1602 = vadd.f32 %v1532, %v1561
        %v1603 = vadd.f32 %v1533, %v1561
        %v1604 = vadd.f32 %v1534, %v1561
        %v1605 = vadd.f32 %v1535, %v1561
        %v1606 = vadd.f32 %v1536, %v1561
        %v1607 = vadd.f32 %v1537, %v1561
        %v1608 = vadd.f32 %v1538, %v1561
        %v1609 = vadd.f32 %v1539, %v1561
        %v1610 = vadd.f32 %v1540, %v1561
        %v1611 = vadd.f32 %v1541, %v1561
        %v1612 = vadd.f32 %v1542, %v1561
        %v1613 = vadd.f32 %v1543, %v1561
        %v1614 = vadd.f32 %v1544, %v1561
        %v1615 = vadd.f32 %v1545, %v1561
        %v1616 = vadd.f32 %v1546, %v1561
        %v1617 = vadd.f32 %v1547, %v1561
        %v1618 = vadd.f32 %v1548, %v1561
        %v1619 = vadd.f32 %v1549, %v1561
        %v1620 = vadd.f32 %v1550, %v1561
        %v1621 = vadd.f32 %v1551, %v1561
        %v1622 = vadd.f32 %v1552, %v1561
        %v1623 = vadd.f32 %v1553, %v1561
        %v1624 = vadd.f32 %v1554, %v1561
        %v1625 = vadd.f32 %v1555, %v1561
        %v1626 = vadd.f32 %v1556, %v1561
        %v1627 = vld [vmem:[%s3] sm:$0x1f]
        %v1628 = vld [vmem:[%s4] sm:$0x1]
        %v1630 = vlaneseq
        %v1631 = vshrl.u32 %v1630, 7
        %v1632 = vsub.s32 0, %v1631
        %v1633 = vrot.slane %v1628, %v1632
        %v1636 = vsel %vm461, %v1563, 0
        %v1639 = vsel %vm461, %v1564, 0
        %v1642 = vsel %vm461, %v1565, 0
        %v1645 = vsel %vm461, %v1566, 0
        %v1648 = vsel %vm461, %v1567, 0
        %v1651 = vsel %vm461, %v1568, 0
        %v1654 = vsel %vm461, %v1569, 0
        %v1657 = vsel %vm461, %v1570, 0
        %v1660 = vsel %vm461, %v1571, 0
        %v1663 = vsel %vm461, %v1572, 0
        %v1666 = vsel %vm461, %v1573, 0
        %v1669 = vsel %vm461, %v1574, 0
        %v1672 = vsel %vm461, %v1575, 0
        %v1675 = vsel %vm461, %v1576, 0
        %v1678 = vsel %vm461, %v1577, 0
        %v1681 = vsel %vm461, %v1578, 0
        %v1684 = vsel %vm461, %v1579, 0
        %v1687 = vsel %vm461, %v1580, 0
        %v1690 = vsel %vm461, %v1581, 0
        %v1693 = vsel %vm461, %v1582, 0
        %v1696 = vsel %vm461, %v1583, 0
        %v1699 = vsel %vm461, %v1584, 0
        %v1702 = vsel %vm461, %v1585, 0
        %v1705 = vsel %vm461, %v1586, 0
        %v1708 = vsel %vm461, %v1587, 0
        %v1711 = vsel %vm461, %v1588, 0
        %v1714 = vsel %vm461, %v1589, 0
        %v1717 = vsel %vm461, %v1590, 0
        %v1720 = vsel %vm461, %v1591, 0
        %v1723 = vsel %vm461, %v1592, 0
        %v1726 = vsel %vm461, %v1593, 0
        %v1729 = vsel %vm461, %v1594, 0
        %v1732 = vsel %vm461, %v1595, 0
        %v1735 = vsel %vm461, %v1596, 0
        %v1738 = vsel %vm461, %v1597, 0
        %v1741 = vsel %vm461, %v1598, 0
        %v1744 = vsel %vm461, %v1599, 0
        %v1747 = vsel %vm461, %v1600, 0
        %v1750 = vsel %vm461, %v1601, 0
        %v1753 = vsel %vm461, %v1602, 0
        %v1756 = vsel %vm461, %v1603, 0
        %v1759 = vsel %vm461, %v1604, 0
        %v1762 = vsel %vm461, %v1605, 0
        %v1765 = vsel %vm461, %v1606, 0
        %v1768 = vsel %vm461, %v1607, 0
        %v1771 = vsel %vm461, %v1608, 0
        %v1774 = vsel %vm461, %v1609, 0
        %v1777 = vsel %vm461, %v1610, 0
        %v1780 = vsel %vm461, %v1611, 0
        %v1783 = vsel %vm461, %v1612, 0
        %v1786 = vsel %vm461, %v1613, 0
        %v1789 = vsel %vm461, %v1614, 0
        %v1792 = vsel %vm461, %v1615, 0
        %v1795 = vsel %vm461, %v1616, 0
        %v1798 = vsel %vm461, %v1617, 0
        %v1801 = vsel %vm461, %v1618, 0
        %v1804 = vsel %vm461, %v1619, 0
        %v1807 = vsel %vm461, %v1620, 0
        %v1810 = vsel %vm461, %v1621, 0
        %v1813 = vsel %vm461, %v1622, 0
        %v1816 = vsel %vm461, %v1623, 0
        %v1819 = vsel %vm461, %v1624, 0
        %v1822 = vsel %vm461, %v1625, 0
        %v1825 = vsel %vm461, %v1626, 0
        %vm1827 = vcmask 1044480
        %v1829 = vsel %vm1827, %v1627, 0
        %1831 = vmatprep.subr.mxu0 0.0
        %1832 = vmatpush1.msra.mxu0 %v1829
        %1833 = vmatprep.subr.mxu0 0.0
        %1834 = vmatpush1.msra.mxu0 0.0
        %1835 = vmatprep.subr.mxu0 0.0
        %1836 = vmatpush1.msra.mxu0 0.0
        %1837 = vmatprep.subr.mxu0 0.0
        %1838 = vmatpush1.msra.mxu0 0.0
        %1839 = vmatprep.subr.mxu0 0.0
        %1840 = vmatpush1.msra.mxu0 0.0
        %1841 = vmatprep.subr.mxu0 0.0
        %1842 = vmatpush1.msra.mxu0 0.0
        %1843 = vmatprep.subr.mxu0 0.0
        %1844 = vmatpush1.msra.mxu0 0.0
        %1845 = vmatprep.subr.mxu0 0.0
        %1846 = vmatpush1.msra.mxu0 0.0
        %1847 = vmatprep.subr.mxu0 0.0
        %1848 = vmatpush1.msra.mxu0 0.0
        %1849 = vmatprep.subr.mxu0 0.0
        %1850 = vmatpush1.msra.mxu0 0.0
        %1851 = vmatprep.subr.mxu0 0.0
        %1852 = vmatpush1.msra.mxu0 0.0
        %1853 = vmatprep.subr.mxu0 0.0
        %1854 = vmatpush1.msra.mxu0 0.0
        %1855 = vmatprep.subr.mxu0 0.0
        %1856 = vmatpush1.msra.mxu0 0.0
        %1857 = vmatprep.subr.mxu0 0.0
        %1858 = vmatpush1.msra.mxu0 0.0
        %1859 = vmatprep.subr.mxu0 0.0
        %1860 = vmatpush1.msra.mxu0 0.0
        %1861 = vmatprep.subr.mxu0 0.0
        %1862 = vmatpush1.msra.mxu0 0.0
        %1863 = vmatprep.subr.mxu0 0.0
        %1864 = vmatpush1.msra.mxu0 0.0
        %1865 = vmatprep.subr.mxu0 0.0
        %1866 = vmatpush1.msra.mxu0 0.0
        %1867 = vmatprep.subr.mxu0 0.0
        %1868 = vmatpush1.msra.mxu0 0.0
        %1869 = vmatprep.subr.mxu0 0.0
        %1870 = vmatpush1.msra.mxu0 0.0
        %1871 = vmatprep.subr.mxu0 0.0
        %1872 = vmatpush1.msra.mxu0 0.0
        %1873 = vmatprep.subr.mxu0 0.0
        %1874 = vmatpush1.msra.mxu0 0.0
        %1875 = vmatprep.subr.mxu0 0.0
        %1876 = vmatpush1.msra.mxu0 0.0
        %1877 = vmatprep.subr.mxu0 0.0
        %1878 = vmatpush1.msra.mxu0 0.0
        %1879 = vmatprep.subr.mxu0 0.0
        %1880 = vmatpush1.msra.mxu0 0.0
        %1881 = vmatprep.subr.mxu0 0.0
        %1882 = vmatpush1.msra.mxu0 0.0
        %1883 = vmatprep.subr.mxu0 0.0
        %1884 = vmatpush1.msra.mxu0 0.0
        %1885 = vmatprep.subr.mxu0 0.0
        %1886 = vmatpush1.msra.mxu0 0.0
        %1887 = vmatprep.subr.mxu0 0.0
        %1888 = vmatpush1.msra.mxu0 0.0
        %1889 = vmatprep.subr.mxu0 0.0
        %1890 = vmatpush1.msra.mxu0 0.0
        %1891 = vmatprep.subr.mxu0 0.0
        %1892 = vmatpush1.msra.mxu0 0.0
        %1893 = vmatprep.subr.mxu0 0.0
        %1894 = vmatpush1.msra.mxu0 0.0
        %1895 = vmatprep.mubr.f32.mxu0 0.0
        %1896 = vmatmul.mubr.f32.gmra.mrb[0].mxu0 %v1636
        %v1897 = vpop.f32.mrb[0].mxu0
        %v1898 = vadd.f32 %v1633, %v1897
        %v1899 = vpop.f32.mrb[0].mxu0
        %1900 = vmatprep.mubr.f32.mxu0 0.0
        %1901 = vmatmul.mubr.f32.gmra.mrb[0].mxu0 %v1639
        %v1902 = vpop.f32.mrb[0].mxu0
        %v1903 = vadd.f32 %v1633, %v1902
        %v1904 = vpop.f32.mrb[0].mxu0
        %1905 = vmatprep.mubr.f32.mxu0 0.0
        %1906 = vmatmul.mubr.f32.gmra.mrb[0].mxu0 %v1642
        %v1907 = vpop.f32.mrb[0].mxu0
        %v1908 = vadd.f32 %v1633, %v1907
        %v1909 = vpop.f32.mrb[0].mxu0
        %1910 = vmatprep.mubr.f32.mxu0 0.0
        %1911 = vmatmul.mubr.f32.gmra.mrb[0].mxu0 %v1645
        %v1912 = vpop.f32.mrb[0].mxu0
        %v1913 = vadd.f32 %v1633, %v1912
        %v1914 = vpop.f32.mrb[0].mxu0
        %1915 = vmatprep.mubr.f32.mxu0 0.0
        %1916 = vmatmul.mubr.f32.gmra.mrb[0].mxu0 %v1648
        %v1917 = vpop.f32.mrb[0].mxu0
        %v1918 = vadd.f32 %v1633, %v1917
        %v1919 = vpop.f32.mrb[0].mxu0
        %1920 = vmatprep.mubr.f32.mxu0 0.0
        %1921 = vmatmul.mubr.f32.gmra.mrb[0].mxu0 %v1651
        %v1922 = vpop.f32.mrb[0].mxu0
        %v1923 = vadd.f32 %v1633, %v1922
        %v1924 = vpop.f32.mrb[0].mxu0
        %1925 = vmatprep.mubr.f32.mxu0 0.0
        %1926 = vmatmul.mubr.f32.gmra.mrb[0].mxu0 %v1654
        %v1927 = vpop.f32.mrb[0].mxu0
        %v1928 = vadd.f32 %v1633, %v1927
        %v1929 = vpop.f32.mrb[0].mxu0
        %1930 = vmatprep.mubr.f32.mxu0 0.0
        %1931 = vmatmul.mubr.f32.gmra.mrb[0].mxu0 %v1657
        %v1932 = vpop.f32.mrb[0].mxu0
        %v1933 = vadd.f32 %v1633, %v1932
        %v1934 = vpop.f32.mrb[0].mxu0
        %1935 = vmatprep.mubr.f32.mxu0 0.0
        %1936 = vmatmul.mubr.f32.gmra.mrb[0].mxu0 %v1660
        %v1937 = vpop.f32.mrb[0].mxu0
        %v1938 = vadd.f32 %v1633, %v1937
        %v1939 = vpop.f32.mrb[0].mxu0
        %1940 = vmatprep.mubr.f32.mxu0 0.0
        %1941 = vmatmul.mubr.f32.gmra.mrb[0].mxu0 %v1663
        %v1942 = vpop.f32.mrb[0].mxu0
        %v1943 = vadd.f32 %v1633, %v1942
        %v1944 = vpop.f32.mrb[0].mxu0
        %1945 = vmatprep.mubr.f32.mxu0 0.0
        %1946 = vmatmul.mubr.f32.gmra.mrb[0].mxu0 %v1666
        %v1947 = vpop.f32.mrb[0].mxu0
        %v1948 = vadd.f32 %v1633, %v1947
        %v1949 = vpop.f32.mrb[0].mxu0
        %1950 = vmatprep.mubr.f32.mxu0 0.0
        %1951 = vmatmul.mubr.f32.gmra.mrb[0].mxu0 %v1669
        %v1952 = vpop.f32.mrb[0].mxu0
        %v1953 = vadd.f32 %v1633, %v1952
        %v1954 = vpop.f32.mrb[0].mxu0
        %1955 = vmatprep.mubr.f32.mxu0 0.0
        %1956 = vmatmul.mubr.f32.gmra.mrb[0].mxu0 %v1672
        %v1957 = vpop.f32.mrb[0].mxu0
        %v1958 = vadd.f32 %v1633, %v1957
        %v1959 = vpop.f32.mrb[0].mxu0
        %1960 = vmatprep.mubr.f32.mxu0 0.0
        %1961 = vmatmul.mubr.f32.gmra.mrb[0].mxu0 %v1675
        %v1962 = vpop.f32.mrb[0].mxu0
        %v1963 = vadd.f32 %v1633, %v1962
        %v1964 = vpop.f32.mrb[0].mxu0
        %1965 = vmatprep.mubr.f32.mxu0 0.0
        %1966 = vmatmul.mubr.f32.gmra.mrb[0].mxu0 %v1678
        %v1967 = vpop.f32.mrb[0].mxu0
        %v1968 = vadd.f32 %v1633, %v1967
        %v1969 = vpop.f32.mrb[0].mxu0
        %1970 = vmatprep.mubr.f32.mxu0 0.0
        %1971 = vmatmul.mubr.f32.gmra.mrb[0].mxu0 %v1681
        %v1972 = vpop.f32.mrb[0].mxu0
        %v1973 = vadd.f32 %v1633, %v1972
        %v1974 = vpop.f32.mrb[0].mxu0
        %1975 = vmatprep.mubr.f32.mxu0 0.0
        %1976 = vmatmul.mubr.f32.gmra.mrb[0].mxu0 %v1684
        %v1977 = vpop.f32.mrb[0].mxu0
        %v1978 = vadd.f32 %v1633, %v1977
        %v1979 = vpop.f32.mrb[0].mxu0
        %1980 = vmatprep.mubr.f32.mxu0 0.0
        %1981 = vmatmul.mubr.f32.gmra.mrb[0].mxu0 %v1687
        %v1982 = vpop.f32.mrb[0].mxu0
        %v1983 = vadd.f32 %v1633, %v1982
        %v1984 = vpop.f32.mrb[0].mxu0
        %1985 = vmatprep.mubr.f32.mxu0 0.0
        %1986 = vmatmul.mubr.f32.gmra.mrb[0].mxu0 %v1690
        %v1987 = vpop.f32.mrb[0].mxu0
        %v1988 = vadd.f32 %v1633, %v1987
        %v1989 = vpop.f32.mrb[0].mxu0
        %1990 = vmatprep.mubr.f32.mxu0 0.0
        %1991 = vmatmul.mubr.f32.gmra.mrb[0].mxu0 %v1693
        %v1992 = vpop.f32.mrb[0].mxu0
        %v1993 = vadd.f32 %v1633, %v1992
        %v1994 = vpop.f32.mrb[0].mxu0
        %1995 = vmatprep.mubr.f32.mxu0 0.0
        %1996 = vmatmul.mubr.f32.gmra.mrb[0].mxu0 %v1696
        %v1997 = vpop.f32.mrb[0].mxu0
        %v1998 = vadd.f32 %v1633, %v1997
        %v1999 = vpop.f32.mrb[0].mxu0
        %2000 = vmatprep.mubr.f32.mxu0 0.0
        %2001 = vmatmul.mubr.f32.gmra.mrb[0].mxu0 %v1699
        %v2002 = vpop.f32.mrb[0].mxu0
        %v2003 = vadd.f32 %v1633, %v2002
        %v2004 = vpop.f32.mrb[0].mxu0
        %2005 = vmatprep.mubr.f32.mxu0 0.0
        %2006 = vmatmul.mubr.f32.gmra.mrb[0].mxu0 %v1702
        %v2007 = vpop.f32.mrb[0].mxu0
        %v2008 = vadd.f32 %v1633, %v2007
        %v2009 = vpop.f32.mrb[0].mxu0
        %2010 = vmatprep.mubr.f32.mxu0 0.0
        %2011 = vmatmul.mubr.f32.gmra.mrb[0].mxu0 %v1705
        %v2012 = vpop.f32.mrb[0].mxu0
        %v2013 = vadd.f32 %v1633, %v2012
        %v2014 = vpop.f32.mrb[0].mxu0
        %2015 = vmatprep.mubr.f32.mxu0 0.0
        %2016 = vmatmul.mubr.f32.gmra.mrb[0].mxu0 %v1708
        %v2017 = vpop.f32.mrb[0].mxu0
        %v2018 = vadd.f32 %v1633, %v2017
        %v2019 = vpop.f32.mrb[0].mxu0
        %2020 = vmatprep.mubr.f32.mxu0 0.0
        %2021 = vmatmul.mubr.f32.gmra.mrb[0].mxu0 %v1711
        %v2022 = vpop.f32.mrb[0].mxu0
        %v2023 = vadd.f32 %v1633, %v2022
        %v2024 = vpop.f32.mrb[0].mxu0
        %2025 = vmatprep.mubr.f32.mxu0 0.0
        %2026 = vmatmul.mubr.f32.gmra.mrb[0].mxu0 %v1714
        %v2027 = vpop.f32.mrb[0].mxu0
        %v2028 = vadd.f32 %v1633, %v2027
        %v2029 = vpop.f32.mrb[0].mxu0
        %2030 = vmatprep.mubr.f32.mxu0 0.0
        %2031 = vmatmul.mubr.f32.gmra.mrb[0].mxu0 %v1717
        %v2032 = vpop.f32.mrb[0].mxu0
        %v2033 = vadd.f32 %v1633, %v2032
        %v2034 = vpop.f32.mrb[0].mxu0
        %2035 = vmatprep.mubr.f32.mxu0 0.0
        %2036 = vmatmul.mubr.f32.gmra.mrb[0].mxu0 %v1720
        %v2037 = vpop.f32.mrb[0].mxu0
        %v2038 = vadd.f32 %v1633, %v2037
        %v2039 = vpop.f32.mrb[0].mxu0
        %2040 = vmatprep.mubr.f32.mxu0 0.0
        %2041 = vmatmul.mubr.f32.gmra.mrb[0].mxu0 %v1723
        %v2042 = vpop.f32.mrb[0].mxu0
        %v2043 = vadd.f32 %v1633, %v2042
        %v2044 = vpop.f32.mrb[0].mxu0
        %2045 = vmatprep.mubr.f32.mxu0 0.0
        %2046 = vmatmul.mubr.f32.gmra.mrb[0].mxu0 %v1726
        %v2047 = vpop.f32.mrb[0].mxu0
        %v2048 = vadd.f32 %v1633, %v2047
        %v2049 = vpop.f32.mrb[0].mxu0
        %2050 = vmatprep.mubr.f32.mxu0 0.0
        %2051 = vmatmul.mubr.f32.gmra.mrb[0].mxu0 %v1729
        %v2052 = vpop.f32.mrb[0].mxu0
        %v2053 = vadd.f32 %v1633, %v2052
        %v2054 = vpop.f32.mrb[0].mxu0
        %2055 = vmatprep.mubr.f32.mxu0 0.0
        %2056 = vmatmul.mubr.f32.gmra.mrb[0].mxu0 %v1732
        %v2057 = vpop.f32.mrb[0].mxu0
        %v2058 = vadd.f32 %v1633, %v2057
        %v2059 = vpop.f32.mrb[0].mxu0
        %2060 = vmatprep.mubr.f32.mxu0 0.0
        %2061 = vmatmul.mubr.f32.gmra.mrb[0].mxu0 %v1735
        %v2062 = vpop.f32.mrb[0].mxu0
        %v2063 = vadd.f32 %v1633, %v2062
        %v2064 = vpop.f32.mrb[0].mxu0
        %2065 = vmatprep.mubr.f32.mxu0 0.0
        %2066 = vmatmul.mubr.f32.gmra.mrb[0].mxu0 %v1738
        %v2067 = vpop.f32.mrb[0].mxu0
        %v2068 = vadd.f32 %v1633, %v2067
        %v2069 = vpop.f32.mrb[0].mxu0
        %2070 = vmatprep.mubr.f32.mxu0 0.0
        %2071 = vmatmul.mubr.f32.gmra.mrb[0].mxu0 %v1741
        %v2072 = vpop.f32.mrb[0].mxu0
        %v2073 = vadd.f32 %v1633, %v2072
        %v2074 = vpop.f32.mrb[0].mxu0
        %2075 = vmatprep.mubr.f32.mxu0 0.0
        %2076 = vmatmul.mubr.f32.gmra.mrb[0].mxu0 %v1744
        %v2077 = vpop.f32.mrb[0].mxu0
        %v2078 = vadd.f32 %v1633, %v2077
        %v2079 = vpop.f32.mrb[0].mxu0
        %2080 = vmatprep.mubr.f32.mxu0 0.0
        %2081 = vmatmul.mubr.f32.gmra.mrb[0].mxu0 %v1747
        %v2082 = vpop.f32.mrb[0].mxu0
        %v2083 = vadd.f32 %v1633, %v2082
        %v2084 = vpop.f32.mrb[0].mxu0
        %2085 = vmatprep.mubr.f32.mxu0 0.0
        %2086 = vmatmul.mubr.f32.gmra.mrb[0].mxu0 %v1750
        %v2087 = vpop.f32.mrb[0].mxu0
        %v2088 = vadd.f32 %v1633, %v2087
        %v2089 = vpop.f32.mrb[0].mxu0
        %2090 = vmatprep.mubr.f32.mxu0 0.0
        %2091 = vmatmul.mubr.f32.gmra.mrb[0].mxu0 %v1753
        %v2092 = vpop.f32.mrb[0].mxu0
        %v2093 = vadd.f32 %v1633, %v2092
        %v2094 = vpop.f32.mrb[0].mxu0
        %2095 = vmatprep.mubr.f32.mxu0 0.0
        %2096 = vmatmul.mubr.f32.gmra.mrb[0].mxu0 %v1756
        %v2097 = vpop.f32.mrb[0].mxu0
        %v2098 = vadd.f32 %v1633, %v2097
        %v2099 = vpop.f32.mrb[0].mxu0
        %2100 = vmatprep.mubr.f32.mxu0 0.0
        %2101 = vmatmul.mubr.f32.gmra.mrb[0].mxu0 %v1759
        %v2102 = vpop.f32.mrb[0].mxu0
        %v2103 = vadd.f32 %v1633, %v2102
        %v2104 = vpop.f32.mrb[0].mxu0
        %2105 = vmatprep.mubr.f32.mxu0 0.0
        %2106 = vmatmul.mubr.f32.gmra.mrb[0].mxu0 %v1762
        %v2107 = vpop.f32.mrb[0].mxu0
        %v2108 = vadd.f32 %v1633, %v2107
        %v2109 = vpop.f32.mrb[0].mxu0
        %2110 = vmatprep.mubr.f32.mxu0 0.0
        %2111 = vmatmul.mubr.f32.gmra.mrb[0].mxu0 %v1765
        %v2112 = vpop.f32.mrb[0].mxu0
        %v2113 = vadd.f32 %v1633, %v2112
        %v2114 = vpop.f32.mrb[0].mxu0
        %2115 = vmatprep.mubr.f32.mxu0 0.0
        %2116 = vmatmul.mubr.f32.gmra.mrb[0].mxu0 %v1768
        %v2117 = vpop.f32.mrb[0].mxu0
        %v2118 = vadd.f32 %v1633, %v2117
        %v2119 = vpop.f32.mrb[0].mxu0
        %2120 = vmatprep.mubr.f32.mxu0 0.0
        %2121 = vmatmul.mubr.f32.gmra.mrb[0].mxu0 %v1771
        %v2122 = vpop.f32.mrb[0].mxu0
        %v2123 = vadd.f32 %v1633, %v2122
        %v2124 = vpop.f32.mrb[0].mxu0
        %2125 = vmatprep.mubr.f32.mxu0 0.0
        %2126 = vmatmul.mubr.f32.gmra.mrb[0].mxu0 %v1774
        %v2127 = vpop.f32.mrb[0].mxu0
        %v2128 = vadd.f32 %v1633, %v2127
        %v2129 = vpop.f32.mrb[0].mxu0
        %2130 = vmatprep.mubr.f32.mxu0 0.0
        %2131 = vmatmul.mubr.f32.gmra.mrb[0].mxu0 %v1777
        %v2132 = vpop.f32.mrb[0].mxu0
        %v2133 = vadd.f32 %v1633, %v2132
        %v2134 = vpop.f32.mrb[0].mxu0
        %2135 = vmatprep.mubr.f32.mxu0 0.0
        %2136 = vmatmul.mubr.f32.gmra.mrb[0].mxu0 %v1780
        %v2137 = vpop.f32.mrb[0].mxu0
        %v2138 = vadd.f32 %v1633, %v2137
        %v2139 = vpop.f32.mrb[0].mxu0
        %2140 = vmatprep.mubr.f32.mxu0 0.0
        %2141 = vmatmul.mubr.f32.gmra.mrb[0].mxu0 %v1783
        %v2142 = vpop.f32.mrb[0].mxu0
        %v2143 = vadd.f32 %v1633, %v2142
        %v2144 = vpop.f32.mrb[0].mxu0
        %2145 = vmatprep.mubr.f32.mxu0 0.0
        %2146 = vmatmul.mubr.f32.gmra.mrb[0].mxu0 %v1786
        %v2147 = vpop.f32.mrb[0].mxu0
        %v2148 = vadd.f32 %v1633, %v2147
        %v2149 = vpop.f32.mrb[0].mxu0
        %2150 = vmatprep.mubr.f32.mxu0 0.0
        %2151 = vmatmul.mubr.f32.gmra.mrb[0].mxu0 %v1789
        %v2152 = vpop.f32.mrb[0].mxu0
        %v2153 = vadd.f32 %v1633, %v2152
        %v2154 = vpop.f32.mrb[0].mxu0
        %2155 = vmatprep.mubr.f32.mxu0 0.0
        %2156 = vmatmul.mubr.f32.gmra.mrb[0].mxu0 %v1792
        %v2157 = vpop.f32.mrb[0].mxu0
        %v2158 = vadd.f32 %v1633, %v2157
        %v2159 = vpop.f32.mrb[0].mxu0
        %2160 = vmatprep.mubr.f32.mxu0 0.0
        %2161 = vmatmul.mubr.f32.gmra.mrb[0].mxu0 %v1795
        %v2162 = vpop.f32.mrb[0].mxu0
        %v2163 = vadd.f32 %v1633, %v2162
        %v2164 = vpop.f32.mrb[0].mxu0
        %2165 = vmatprep.mubr.f32.mxu0 0.0
        %2166 = vmatmul.mubr.f32.gmra.mrb[0].mxu0 %v1798
        %v2167 = vpop.f32.mrb[0].mxu0
        %v2168 = vadd.f32 %v1633, %v2167
        %v2169 = vpop.f32.mrb[0].mxu0
        %2170 = vmatprep.mubr.f32.mxu0 0.0
        %2171 = vmatmul.mubr.f32.gmra.mrb[0].mxu0 %v1801
        %v2172 = vpop.f32.mrb[0].mxu0
        %v2173 = vadd.f32 %v1633, %v2172
        %v2174 = vpop.f32.mrb[0].mxu0
        %2175 = vmatprep.mubr.f32.mxu0 0.0
        %2176 = vmatmul.mubr.f32.gmra.mrb[0].mxu0 %v1804
        %v2177 = vpop.f32.mrb[0].mxu0
        %v2178 = vadd.f32 %v1633, %v2177
        %v2179 = vpop.f32.mrb[0].mxu0
        %2180 = vmatprep.mubr.f32.mxu0 0.0
        %2181 = vmatmul.mubr.f32.gmra.mrb[0].mxu0 %v1807
        %v2182 = vpop.f32.mrb[0].mxu0
        %v2183 = vadd.f32 %v1633, %v2182
        %v2184 = vpop.f32.mrb[0].mxu0
        %2185 = vmatprep.mubr.f32.mxu0 0.0
        %2186 = vmatmul.mubr.f32.gmra.mrb[0].mxu0 %v1810
        %v2187 = vpop.f32.mrb[0].mxu0
        %v2188 = vadd.f32 %v1633, %v2187
        %v2189 = vpop.f32.mrb[0].mxu0
        %2190 = vmatprep.mubr.f32.mxu0 0.0
        %2191 = vmatmul.mubr.f32.gmra.mrb[0].mxu0 %v1813
        %v2192 = vpop.f32.mrb[0].mxu0
        %v2193 = vadd.f32 %v1633, %v2192
        %v2194 = vpop.f32.mrb[0].mxu0
        %2195 = vmatprep.mubr.f32.mxu0 0.0
        %2196 = vmatmul.mubr.f32.gmra.mrb[0].mxu0 %v1816
        %v2197 = vpop.f32.mrb[0].mxu0
        %v2198 = vadd.f32 %v1633, %v2197
        %v2199 = vpop.f32.mrb[0].mxu0
        %2200 = vmatprep.mubr.f32.mxu0 0.0
        %2201 = vmatmul.mubr.f32.gmra.mrb[0].mxu0 %v1819
        %v2202 = vpop.f32.mrb[0].mxu0
        %v2203 = vadd.f32 %v1633, %v2202
        %v2204 = vpop.f32.mrb[0].mxu0
        %2205 = vmatprep.mubr.f32.mxu0 0.0
        %2206 = vmatmul.mubr.f32.gmra.mrb[0].mxu0 %v1822
        %v2207 = vpop.f32.mrb[0].mxu0
        %v2208 = vadd.f32 %v1633, %v2207
        %v2209 = vpop.f32.mrb[0].mxu0
        %2210 = vmatprep.mubr.f32.mxu0 0.0
        %2211 = vmatmul.mubr.f32.gmra.mrb[0].mxu0 %v1825
        %v2212 = vpop.f32.mrb[0].mxu0
        %v2213 = vadd.f32 %v1633, %v2212
        %v2214 = vpop.f32.mrb[0].mxu0
        %2215 = vdwg.mxu0
        %v2216 = vld [vmem:[%s5] sm:$0x1]
        %v2217 = vld [vmem:[%s6] sm:$0x1]
        %vm2218 = vcmask 261120
        %v2219 = vsel %vm2218, %v1898, 0.0
        %2220 = vadd.xlane.f32.xlu0 %v2219
        %v2221 = vpop.xlane.xlu0 %2220
        %v2222 = vsel %vm2218, %v1903, 0.0
        %2223 = vadd.xlane.f32.xlu0 %v2222
        %v2224 = vpop.xlane.xlu0 %2223
        %v2225 = vsel %vm2218, %v1908, 0.0
        %2226 = vadd.xlane.f32.xlu0 %v2225
        %v2227 = vpop.xlane.xlu0 %2226
        %v2228 = vsel %vm2218, %v1913, 0.0
        %2229 = vadd.xlane.f32.xlu0 %v2228
        %v2230 = vpop.xlane.xlu0 %2229
        %v2231 = vsel %vm2218, %v1918, 0.0
        %2232 = vadd.xlane.f32.xlu0 %v2231
        %v2233 = vpop.xlane.xlu0 %2232
        %v2234 = vsel %vm2218, %v1923, 0.0
        %2235 = vadd.xlane.f32.xlu0 %v2234
        %v2236 = vpop.xlane.xlu0 %2235
        %v2237 = vsel %vm2218, %v1928, 0.0
        %2238 = vadd.xlane.f32.xlu0 %v2237
        %v2239 = vpop.xlane.xlu0 %2238
        %v2240 = vsel %vm2218, %v1933, 0.0
        %2241 = vadd.xlane.f32.xlu0 %v2240
        %v2242 = vpop.xlane.xlu0 %2241
        %v2243 = vsel %vm2218, %v1938, 0.0
        %2244 = vadd.xlane.f32.xlu0 %v2243
        %v2245 = vpop.xlane.xlu0 %2244
        %v2246 = vsel %vm2218, %v1943, 0.0
        %2247 = vadd.xlane.f32.xlu0 %v2246
        %v2248 = vpop.xlane.xlu0 %2247
        %v2249 = vsel %vm2218, %v1948, 0.0
        %2250 = vadd.xlane.f32.xlu0 %v2249
        %v2251 = vpop.xlane.xlu0 %2250
        %v2252 = vsel %vm2218, %v1953, 0.0
        %2253 = vadd.xlane.f32.xlu0 %v2252
        %v2254 = vpop.xlane.xlu0 %2253
        %v2255 = vsel %vm2218, %v1958, 0.0
        %2256 = vadd.xlane.f32.xlu0 %v2255
        %v2257 = vpop.xlane.xlu0 %2256
        %v2258 = vsel %vm2218, %v1963, 0.0
        %2259 = vadd.xlane.f32.xlu0 %v2258
        %v2260 = vpop.xlane.xlu0 %2259
        %v2261 = vsel %vm2218, %v1968, 0.0
        %2262 = vadd.xlane.f32.xlu0 %v2261
        %v2263 = vpop.xlane.xlu0 %2262
        %v2264 = vsel %vm2218, %v1973, 0.0
        %2265 = vadd.xlane.f32.xlu0 %v2264
        %v2266 = vpop.xlane.xlu0 %2265
        %v2267 = vsel %vm2218, %v1978, 0.0
        %2268 = vadd.xlane.f32.xlu0 %v2267
        %v2269 = vpop.xlane.xlu0 %2268
        %v2270 = vsel %vm2218, %v1983, 0.0
        %2271 = vadd.xlane.f32.xlu0 %v2270
        %v2272 = vpop.xlane.xlu0 %2271
        %v2273 = vsel %vm2218, %v1988, 0.0
        %2274 = vadd.xlane.f32.xlu0 %v2273
        %v2275 = vpop.xlane.xlu0 %2274
        %v2276 = vsel %vm2218, %v1993, 0.0
        %2277 = vadd.xlane.f32.xlu0 %v2276
        %v2278 = vpop.xlane.xlu0 %2277
        %v2279 = vsel %vm2218, %v1998, 0.0
        %2280 = vadd.xlane.f32.xlu0 %v2279
        %v2281 = vpop.xlane.xlu0 %2280
        %v2282 = vsel %vm2218, %v2003, 0.0
        %2283 = vadd.xlane.f32.xlu0 %v2282
        %v2284 = vpop.xlane.xlu0 %2283
        %v2285 = vsel %vm2218, %v2008, 0.0
        %2286 = vadd.xlane.f32.xlu0 %v2285
        %v2287 = vpop.xlane.xlu0 %2286
        %v2288 = vsel %vm2218, %v2013, 0.0
        %2289 = vadd.xlane.f32.xlu0 %v2288
        %v2290 = vpop.xlane.xlu0 %2289
        %v2291 = vsel %vm2218, %v2018, 0.0
        %2292 = vadd.xlane.f32.xlu0 %v2291
        %v2293 = vpop.xlane.xlu0 %2292
        %v2294 = vsel %vm2218, %v2023, 0.0
        %2295 = vadd.xlane.f32.xlu0 %v2294
        %v2296 = vpop.xlane.xlu0 %2295
        %v2297 = vsel %vm2218, %v2028, 0.0
        %2298 = vadd.xlane.f32.xlu0 %v2297
        %v2299 = vpop.xlane.xlu0 %2298
        %v2300 = vsel %vm2218, %v2033, 0.0
        %2301 = vadd.xlane.f32.xlu0 %v2300
        %v2302 = vpop.xlane.xlu0 %2301
        %v2303 = vsel %vm2218, %v2038, 0.0
        %2304 = vadd.xlane.f32.xlu0 %v2303
        %v2305 = vpop.xlane.xlu0 %2304
        %v2306 = vsel %vm2218, %v2043, 0.0
        %2307 = vadd.xlane.f32.xlu0 %v2306
        %v2308 = vpop.xlane.xlu0 %2307
        %v2309 = vsel %vm2218, %v2048, 0.0
        %2310 = vadd.xlane.f32.xlu0 %v2309
        %v2311 = vpop.xlane.xlu0 %2310
        %v2312 = vsel %vm2218, %v2053, 0.0
        %2313 = vadd.xlane.f32.xlu0 %v2312
        %v2314 = vpop.xlane.xlu0 %2313
        %v2315 = vsel %vm2218, %v2058, 0.0
        %2316 = vadd.xlane.f32.xlu0 %v2315
        %v2317 = vpop.xlane.xlu0 %2316
        %v2318 = vsel %vm2218, %v2063, 0.0
        %2319 = vadd.xlane.f32.xlu0 %v2318
        %v2320 = vpop.xlane.xlu0 %2319
        %v2321 = vsel %vm2218, %v2068, 0.0
        %2322 = vadd.xlane.f32.xlu0 %v2321
        %v2323 = vpop.xlane.xlu0 %2322
        %v2324 = vsel %vm2218, %v2073, 0.0
        %2325 = vadd.xlane.f32.xlu0 %v2324
        %v2326 = vpop.xlane.xlu0 %2325
        %v2327 = vsel %vm2218, %v2078, 0.0
        %2328 = vadd.xlane.f32.xlu0 %v2327
        %v2329 = vpop.xlane.xlu0 %2328
        %v2330 = vsel %vm2218, %v2083, 0.0
        %2331 = vadd.xlane.f32.xlu0 %v2330
        %v2332 = vpop.xlane.xlu0 %2331
        %v2333 = vsel %vm2218, %v2088, 0.0
        %2334 = vadd.xlane.f32.xlu0 %v2333
        %v2335 = vpop.xlane.xlu0 %2334
        %v2336 = vsel %vm2218, %v2093, 0.0
        %2337 = vadd.xlane.f32.xlu0 %v2336
        %v2338 = vpop.xlane.xlu0 %2337
        %v2339 = vsel %vm2218, %v2098, 0.0
        %2340 = vadd.xlane.f32.xlu0 %v2339
        %v2341 = vpop.xlane.xlu0 %2340
        %v2342 = vsel %vm2218, %v2103, 0.0
        %2343 = vadd.xlane.f32.xlu0 %v2342
        %v2344 = vpop.xlane.xlu0 %2343
        %v2345 = vsel %vm2218, %v2108, 0.0
        %2346 = vadd.xlane.f32.xlu0 %v2345
        %v2347 = vpop.xlane.xlu0 %2346
        %v2348 = vsel %vm2218, %v2113, 0.0
        %2349 = vadd.xlane.f32.xlu0 %v2348
        %v2350 = vpop.xlane.xlu0 %2349
        %v2351 = vsel %vm2218, %v2118, 0.0
        %2352 = vadd.xlane.f32.xlu0 %v2351
        %v2353 = vpop.xlane.xlu0 %2352
        %v2354 = vsel %vm2218, %v2123, 0.0
        %2355 = vadd.xlane.f32.xlu0 %v2354
        %v2356 = vpop.xlane.xlu0 %2355
        %v2357 = vsel %vm2218, %v2128, 0.0
        %2358 = vadd.xlane.f32.xlu0 %v2357
        %v2359 = vpop.xlane.xlu0 %2358
        %v2360 = vsel %vm2218, %v2133, 0.0
        %2361 = vadd.xlane.f32.xlu0 %v2360
        %v2362 = vpop.xlane.xlu0 %2361
        %v2363 = vsel %vm2218, %v2138, 0.0
        %2364 = vadd.xlane.f32.xlu0 %v2363
        %v2365 = vpop.xlane.xlu0 %2364
        %v2366 = vsel %vm2218, %v2143, 0.0
        %2367 = vadd.xlane.f32.xlu0 %v2366
        %v2368 = vpop.xlane.xlu0 %2367
        %v2369 = vsel %vm2218, %v2148, 0.0
        %2370 = vadd.xlane.f32.xlu0 %v2369
        %v2371 = vpop.xlane.xlu0 %2370
        %v2372 = vsel %vm2218, %v2153, 0.0
        %2373 = vadd.xlane.f32.xlu0 %v2372
        %v2374 = vpop.xlane.xlu0 %2373
        %v2375 = vsel %vm2218, %v2158, 0.0
        %2376 = vadd.xlane.f32.xlu0 %v2375
        %v2377 = vpop.xlane.xlu0 %2376
        %v2378 = vsel %vm2218, %v2163, 0.0
        %2379 = vadd.xlane.f32.xlu0 %v2378
        %v2380 = vpop.xlane.xlu0 %2379
        %v2381 = vsel %vm2218, %v2168, 0.0
        %2382 = vadd.xlane.f32.xlu0 %v2381
        %v2383 = vpop.xlane.xlu0 %2382
        %v2384 = vsel %vm2218, %v2173, 0.0
        %2385 = vadd.xlane.f32.xlu0 %v2384
        %v2386 = vpop.xlane.xlu0 %2385
        %v2387 = vsel %vm2218, %v2178, 0.0
        %2388 = vadd.xlane.f32.xlu0 %v2387
        %v2389 = vpop.xlane.xlu0 %2388
        %v2390 = vsel %vm2218, %v2183, 0.0
        %2391 = vadd.xlane.f32.xlu0 %v2390
        %v2392 = vpop.xlane.xlu0 %2391
        %v2393 = vsel %vm2218, %v2188, 0.0
        %2394 = vadd.xlane.f32.xlu0 %v2393
        %v2395 = vpop.xlane.xlu0 %2394
        %v2396 = vsel %vm2218, %v2193, 0.0
        %2397 = vadd.xlane.f32.xlu0 %v2396
        %v2398 = vpop.xlane.xlu0 %2397
        %v2399 = vsel %vm2218, %v2198, 0.0
        %2400 = vadd.xlane.f32.xlu0 %v2399
        %v2401 = vpop.xlane.xlu0 %2400
        %v2402 = vsel %vm2218, %v2203, 0.0
        %2403 = vadd.xlane.f32.xlu0 %v2402
        %v2404 = vpop.xlane.xlu0 %2403
        %v2405 = vsel %vm2218, %v2208, 0.0
        %2406 = vadd.xlane.f32.xlu0 %v2405
        %v2407 = vpop.xlane.xlu0 %2406
        %v2408 = vsel %vm2218, %v2213, 0.0
        %2409 = vadd.xlane.f32.xlu0 %v2408
        %v2410 = vpop.xlane.xlu0 %2409
        %v2411 = vrcp.pop 32.0
        %v2412 = vmul.f32 %v2221, %v2411
        %v2413 = vmul.f32 %v2224, %v2411
        %v2414 = vmul.f32 %v2227, %v2411
        %v2415 = vmul.f32 %v2230, %v2411
        %v2416 = vmul.f32 %v2233, %v2411
        %v2417 = vmul.f32 %v2236, %v2411
        %v2418 = vmul.f32 %v2239, %v2411
        %v2419 = vmul.f32 %v2242, %v2411
        %v2420 = vmul.f32 %v2245, %v2411
        %v2421 = vmul.f32 %v2248, %v2411
        %v2422 = vmul.f32 %v2251, %v2411
        %v2423 = vmul.f32 %v2254, %v2411
        %v2424 = vmul.f32 %v2257, %v2411
        %v2425 = vmul.f32 %v2260, %v2411
        %v2426 = vmul.f32 %v2263, %v2411
        %v2427 = vmul.f32 %v2266, %v2411
        %v2428 = vmul.f32 %v2269, %v2411
        %v2429 = vmul.f32 %v2272, %v2411
        %v2430 = vmul.f32 %v2275, %v2411
        %v2431 = vmul.f32 %v2278, %v2411
        %v2432 = vmul.f32 %v2281, %v2411
        %v2433 = vmul.f32 %v2284, %v2411
        %v2434 = vmul.f32 %v2287, %v2411
        %v2435 = vmul.f32 %v2290, %v2411
        %v2436 = vmul.f32 %v2293, %v2411
        %v2437 = vmul.f32 %v2296, %v2411
        %v2438 = vmul.f32 %v2299, %v2411
        %v2439 = vmul.f32 %v2302, %v2411
        %v2440 = vmul.f32 %v2305, %v2411
        %v2441 = vmul.f32 %v2308, %v2411
        %v2442 = vmul.f32 %v2311, %v2411
        %v2443 = vmul.f32 %v2314, %v2411
        %v2444 = vmul.f32 %v2317, %v2411
        %v2445 = vmul.f32 %v2320, %v2411
        %v2446 = vmul.f32 %v2323, %v2411
        %v2447 = vmul.f32 %v2326, %v2411
        %v2448 = vmul.f32 %v2329, %v2411
        %v2449 = vmul.f32 %v2332, %v2411
        %v2450 = vmul.f32 %v2335, %v2411
        %v2451 = vmul.f32 %v2338, %v2411
        %v2452 = vmul.f32 %v2341, %v2411
        %v2453 = vmul.f32 %v2344, %v2411
        %v2454 = vmul.f32 %v2347, %v2411
        %v2455 = vmul.f32 %v2350, %v2411
        %v2456 = vmul.f32 %v2353, %v2411
        %v2457 = vmul.f32 %v2356, %v2411
        %v2458 = vmul.f32 %v2359, %v2411
        %v2459 = vmul.f32 %v2362, %v2411
        %v2460 = vmul.f32 %v2365, %v2411
        %v2461 = vmul.f32 %v2368, %v2411
        %v2462 = vmul.f32 %v2371, %v2411
        %v2463 = vmul.f32 %v2374, %v2411
        %v2464 = vmul.f32 %v2377, %v2411
        %v2465 = vmul.f32 %v2380, %v2411
        %v2466 = vmul.f32 %v2383, %v2411
        %v2467 = vmul.f32 %v2386, %v2411
        %v2468 = vmul.f32 %v2389, %v2411
        %v2469 = vmul.f32 %v2392, %v2411
        %v2470 = vmul.f32 %v2395, %v2411
        %v2471 = vmul.f32 %v2398, %v2411
        %v2472 = vmul.f32 %v2401, %v2411
        %v2473 = vmul.f32 %v2404, %v2411
        %v2474 = vmul.f32 %v2407, %v2411
        %v2475 = vmul.f32 %v2410, %v2411
        %v2476 = vmul.f32 %v1898, %v1898
        %v2477 = vmul.f32 %v1903, %v1903
        %v2478 = vmul.f32 %v1908, %v1908
        %v2479 = vmul.f32 %v1913, %v1913
        %v2480 = vmul.f32 %v1918, %v1918
        %v2481 = vmul.f32 %v1923, %v1923
        %v2482 = vmul.f32 %v1928, %v1928
        %v2483 = vmul.f32 %v1933, %v1933
        %v2484 = vmul.f32 %v1938, %v1938
        %v2485 = vmul.f32 %v1943, %v1943
        %v2486 = vmul.f32 %v1948, %v1948
        %v2487 = vmul.f32 %v1953, %v1953
        %v2488 = vmul.f32 %v1958, %v1958
        %v2489 = vmul.f32 %v1963, %v1963
        %v2490 = vmul.f32 %v1968, %v1968
        %v2491 = vmul.f32 %v1973, %v1973
        %v2492 = vmul.f32 %v1978, %v1978
        %v2493 = vmul.f32 %v1983, %v1983
        %v2494 = vmul.f32 %v1988, %v1988
        %v2495 = vmul.f32 %v1993, %v1993
        %v2496 = vmul.f32 %v1998, %v1998
        %v2497 = vmul.f32 %v2003, %v2003
        %v2498 = vmul.f32 %v2008, %v2008
        %v2499 = vmul.f32 %v2013, %v2013
        %v2500 = vmul.f32 %v2018, %v2018
        %v2501 = vmul.f32 %v2023, %v2023
        %v2502 = vmul.f32 %v2028, %v2028
        %v2503 = vmul.f32 %v2033, %v2033
        %v2504 = vmul.f32 %v2038, %v2038
        %v2505 = vmul.f32 %v2043, %v2043
        %v2506 = vmul.f32 %v2048, %v2048
        %v2507 = vmul.f32 %v2053, %v2053
        %v2508 = vmul.f32 %v2058, %v2058
        %v2509 = vmul.f32 %v2063, %v2063
        %v2510 = vmul.f32 %v2068, %v2068
        %v2511 = vmul.f32 %v2073, %v2073
        %v2512 = vmul.f32 %v2078, %v2078
        %v2513 = vmul.f32 %v2083, %v2083
        %v2514 = vmul.f32 %v2088, %v2088
        %v2515 = vmul.f32 %v2093, %v2093
        %v2516 = vmul.f32 %v2098, %v2098
        %v2517 = vmul.f32 %v2103, %v2103
        %v2518 = vmul.f32 %v2108, %v2108
        %v2519 = vmul.f32 %v2113, %v2113
        %v2520 = vmul.f32 %v2118, %v2118
        %v2521 = vmul.f32 %v2123, %v2123
        %v2522 = vmul.f32 %v2128, %v2128
        %v2523 = vmul.f32 %v2133, %v2133
        %v2524 = vmul.f32 %v2138, %v2138
        %v2525 = vmul.f32 %v2143, %v2143
        %v2526 = vmul.f32 %v2148, %v2148
        %v2527 = vmul.f32 %v2153, %v2153
        %v2528 = vmul.f32 %v2158, %v2158
        %v2529 = vmul.f32 %v2163, %v2163
        %v2530 = vmul.f32 %v2168, %v2168
        %v2531 = vmul.f32 %v2173, %v2173
        %v2532 = vmul.f32 %v2178, %v2178
        %v2533 = vmul.f32 %v2183, %v2183
        %v2534 = vmul.f32 %v2188, %v2188
        %v2535 = vmul.f32 %v2193, %v2193
        %v2536 = vmul.f32 %v2198, %v2198
        %v2537 = vmul.f32 %v2203, %v2203
        %v2538 = vmul.f32 %v2208, %v2208
        %v2539 = vmul.f32 %v2213, %v2213
        %v2540 = vsel %vm2218, %v2476, 0.0
        %2541 = vadd.xlane.f32.xlu0 %v2540
        %v2542 = vpop.xlane.xlu0 %2541
        %v2543 = vsel %vm2218, %v2477, 0.0
        %2544 = vadd.xlane.f32.xlu0 %v2543
        %v2545 = vpop.xlane.xlu0 %2544
        %v2546 = vsel %vm2218, %v2478, 0.0
        %2547 = vadd.xlane.f32.xlu0 %v2546
        %v2548 = vpop.xlane.xlu0 %2547
        %v2549 = vsel %vm2218, %v2479, 0.0
        %2550 = vadd.xlane.f32.xlu0 %v2549
        %v2551 = vpop.xlane.xlu0 %2550
        %v2552 = vsel %vm2218, %v2480, 0.0
        %2553 = vadd.xlane.f32.xlu0 %v2552
        %v2554 = vpop.xlane.xlu0 %2553
        %v2555 = vsel %vm2218, %v2481, 0.0
        %2556 = vadd.xlane.f32.xlu0 %v2555
        %v2557 = vpop.xlane.xlu0 %2556
        %v2558 = vsel %vm2218, %v2482, 0.0
        %2559 = vadd.xlane.f32.xlu0 %v2558
        %v2560 = vpop.xlane.xlu0 %2559
        %v2561 = vsel %vm2218, %v2483, 0.0
        %2562 = vadd.xlane.f32.xlu0 %v2561
        %v2563 = vpop.xlane.xlu0 %2562
        %v2564 = vsel %vm2218, %v2484, 0.0
        %2565 = vadd.xlane.f32.xlu0 %v2564
        %v2566 = vpop.xlane.xlu0 %2565
        %v2567 = vsel %vm2218, %v2485, 0.0
        %2568 = vadd.xlane.f32.xlu0 %v2567
        %v2569 = vpop.xlane.xlu0 %2568
        %v2570 = vsel %vm2218, %v2486, 0.0
        %2571 = vadd.xlane.f32.xlu0 %v2570
        %v2572 = vpop.xlane.xlu0 %2571
        %v2573 = vsel %vm2218, %v2487, 0.0
        %2574 = vadd.xlane.f32.xlu0 %v2573
        %v2575 = vpop.xlane.xlu0 %2574
        %v2576 = vsel %vm2218, %v2488, 0.0
        %2577 = vadd.xlane.f32.xlu0 %v2576
        %v2578 = vpop.xlane.xlu0 %2577
        %v2579 = vsel %vm2218, %v2489, 0.0
        %2580 = vadd.xlane.f32.xlu0 %v2579
        %v2581 = vpop.xlane.xlu0 %2580
        %v2582 = vsel %vm2218, %v2490, 0.0
        %2583 = vadd.xlane.f32.xlu0 %v2582
        %v2584 = vpop.xlane.xlu0 %2583
        %v2585 = vsel %vm2218, %v2491, 0.0
        %2586 = vadd.xlane.f32.xlu0 %v2585
        %v2587 = vpop.xlane.xlu0 %2586
        %v2588 = vsel %vm2218, %v2492, 0.0
        %2589 = vadd.xlane.f32.xlu0 %v2588
        %v2590 = vpop.xlane.xlu0 %2589
        %v2591 = vsel %vm2218, %v2493, 0.0
        %2592 = vadd.xlane.f32.xlu0 %v2591
        %v2593 = vpop.xlane.xlu0 %2592
        %v2594 = vsel %vm2218, %v2494, 0.0
        %2595 = vadd.xlane.f32.xlu0 %v2594
        %v2596 = vpop.xlane.xlu0 %2595
        %v2597 = vsel %vm2218, %v2495, 0.0
        %2598 = vadd.xlane.f32.xlu0 %v2597
        %v2599 = vpop.xlane.xlu0 %2598
        %v2600 = vsel %vm2218, %v2496, 0.0
        %2601 = vadd.xlane.f32.xlu0 %v2600
        %v2602 = vpop.xlane.xlu0 %2601
        %v2603 = vsel %vm2218, %v2497, 0.0
        %2604 = vadd.xlane.f32.xlu0 %v2603
        %v2605 = vpop.xlane.xlu0 %2604
        %v2606 = vsel %vm2218, %v2498, 0.0
        %2607 = vadd.xlane.f32.xlu0 %v2606
        %v2608 = vpop.xlane.xlu0 %2607
        %v2609 = vsel %vm2218, %v2499, 0.0
        %2610 = vadd.xlane.f32.xlu0 %v2609
        %v2611 = vpop.xlane.xlu0 %2610
        %v2612 = vsel %vm2218, %v2500, 0.0
        %2613 = vadd.xlane.f32.xlu0 %v2612
        %v2614 = vpop.xlane.xlu0 %2613
        %v2615 = vsel %vm2218, %v2501, 0.0
        %2616 = vadd.xlane.f32.xlu0 %v2615
        %v2617 = vpop.xlane.xlu0 %2616
        %v2618 = vsel %vm2218, %v2502, 0.0
        %2619 = vadd.xlane.f32.xlu0 %v2618
        %v2620 = vpop.xlane.xlu0 %2619
        %v2621 = vsel %vm2218, %v2503, 0.0
        %2622 = vadd.xlane.f32.xlu0 %v2621
        %v2623 = vpop.xlane.xlu0 %2622
        %v2624 = vsel %vm2218, %v2504, 0.0
        %2625 = vadd.xlane.f32.xlu0 %v2624
        %v2626 = vpop.xlane.xlu0 %2625
        %v2627 = vsel %vm2218, %v2505, 0.0
        %2628 = vadd.xlane.f32.xlu0 %v2627
        %v2629 = vpop.xlane.xlu0 %2628
        %v2630 = vsel %vm2218, %v2506, 0.0
        %2631 = vadd.xlane.f32.xlu0 %v2630
        %v2632 = vpop.xlane.xlu0 %2631
        %v2633 = vsel %vm2218, %v2507, 0.0
        %2634 = vadd.xlane.f32.xlu0 %v2633
        %v2635 = vpop.xlane.xlu0 %2634
        %v2636 = vsel %vm2218, %v2508, 0.0
        %2637 = vadd.xlane.f32.xlu0 %v2636
        %v2638 = vpop.xlane.xlu0 %2637
        %v2639 = vsel %vm2218, %v2509, 0.0
        %2640 = vadd.xlane.f32.xlu0 %v2639
        %v2641 = vpop.xlane.xlu0 %2640
        %v2642 = vsel %vm2218, %v2510, 0.0
        %2643 = vadd.xlane.f32.xlu0 %v2642
        %v2644 = vpop.xlane.xlu0 %2643
        %v2645 = vsel %vm2218, %v2511, 0.0
        %2646 = vadd.xlane.f32.xlu0 %v2645
        %v2647 = vpop.xlane.xlu0 %2646
        %v2648 = vsel %vm2218, %v2512, 0.0
        %2649 = vadd.xlane.f32.xlu0 %v2648
        %v2650 = vpop.xlane.xlu0 %2649
        %v2651 = vsel %vm2218, %v2513, 0.0
        %2652 = vadd.xlane.f32.xlu0 %v2651
        %v2653 = vpop.xlane.xlu0 %2652
        %v2654 = vsel %vm2218, %v2514, 0.0
        %2655 = vadd.xlane.f32.xlu0 %v2654
        %v2656 = vpop.xlane.xlu0 %2655
        %v2657 = vsel %vm2218, %v2515, 0.0
        %2658 = vadd.xlane.f32.xlu0 %v2657
        %v2659 = vpop.xlane.xlu0 %2658
        %v2660 = vsel %vm2218, %v2516, 0.0
        %2661 = vadd.xlane.f32.xlu0 %v2660
        %v2662 = vpop.xlane.xlu0 %2661
        %v2663 = vsel %vm2218, %v2517, 0.0
        %2664 = vadd.xlane.f32.xlu0 %v2663
        %v2665 = vpop.xlane.xlu0 %2664
        %v2666 = vsel %vm2218, %v2518, 0.0
        %2667 = vadd.xlane.f32.xlu0 %v2666
        %v2668 = vpop.xlane.xlu0 %2667
        %v2669 = vsel %vm2218, %v2519, 0.0
        %2670 = vadd.xlane.f32.xlu0 %v2669
        %v2671 = vpop.xlane.xlu0 %2670
        %v2672 = vsel %vm2218, %v2520, 0.0
        %2673 = vadd.xlane.f32.xlu0 %v2672
        %v2674 = vpop.xlane.xlu0 %2673
        %v2675 = vsel %vm2218, %v2521, 0.0
        %2676 = vadd.xlane.f32.xlu0 %v2675
        %v2677 = vpop.xlane.xlu0 %2676
        %v2678 = vsel %vm2218, %v2522, 0.0
        %2679 = vadd.xlane.f32.xlu0 %v2678
        %v2680 = vpop.xlane.xlu0 %2679
        %v2681 = vsel %vm2218, %v2523, 0.0
        %2682 = vadd.xlane.f32.xlu0 %v2681
        %v2683 = vpop.xlane.xlu0 %2682
        %v2684 = vsel %vm2218, %v2524, 0.0
        %2685 = vadd.xlane.f32.xlu0 %v2684
        %v2686 = vpop.xlane.xlu0 %2685
        %v2687 = vsel %vm2218, %v2525, 0.0
        %2688 = vadd.xlane.f32.xlu0 %v2687
        %v2689 = vpop.xlane.xlu0 %2688
        %v2690 = vsel %vm2218, %v2526, 0.0
        %2691 = vadd.xlane.f32.xlu0 %v2690
        %v2692 = vpop.xlane.xlu0 %2691
        %v2693 = vsel %vm2218, %v2527, 0.0
        %2694 = vadd.xlane.f32.xlu0 %v2693
        %v2695 = vpop.xlane.xlu0 %2694
        %v2696 = vsel %vm2218, %v2528, 0.0
        %2697 = vadd.xlane.f32.xlu0 %v2696
        %v2698 = vpop.xlane.xlu0 %2697
        %v2699 = vsel %vm2218, %v2529, 0.0
        %2700 = vadd.xlane.f32.xlu0 %v2699
        %v2701 = vpop.xlane.xlu0 %2700
        %v2702 = vsel %vm2218, %v2530, 0.0
        %2703 = vadd.xlane.f32.xlu0 %v2702
        %v2704 = vpop.xlane.xlu0 %2703
        %v2705 = vsel %vm2218, %v2531, 0.0
        %2706 = vadd.xlane.f32.xlu0 %v2705
        %v2707 = vpop.xlane.xlu0 %2706
        %v2708 = vsel %vm2218, %v2532, 0.0
        %2709 = vadd.xlane.f32.xlu0 %v2708
        %v2710 = vpop.xlane.xlu0 %2709
        %v2711 = vsel %vm2218, %v2533, 0.0
        %2712 = vadd.xlane.f32.xlu0 %v2711
        %v2713 = vpop.xlane.xlu0 %2712
        %v2714 = vsel %vm2218, %v2534, 0.0
        %2715 = vadd.xlane.f32.xlu0 %v2714
        %v2716 = vpop.xlane.xlu0 %2715
        %v2717 = vsel %vm2218, %v2535, 0.0
        %2718 = vadd.xlane.f32.xlu0 %v2717
        %v2719 = vpop.xlane.xlu0 %2718
        %v2720 = vsel %vm2218, %v2536, 0.0
        %2721 = vadd.xlane.f32.xlu0 %v2720
        %v2722 = vpop.xlane.xlu0 %2721
        %v2723 = vsel %vm2218, %v2537, 0.0
        %2724 = vadd.xlane.f32.xlu0 %v2723
        %v2725 = vpop.xlane.xlu0 %2724
        %v2726 = vsel %vm2218, %v2538, 0.0
        %2727 = vadd.xlane.f32.xlu0 %v2726
        %v2728 = vpop.xlane.xlu0 %2727
        %v2729 = vsel %vm2218, %v2539, 0.0
        %2730 = vadd.xlane.f32.xlu0 %v2729
        %v2731 = vpop.xlane.xlu0 %2730
        %v2732 = vmul.f32 %v2542, %v2411
        %v2733 = vmul.f32 %v2545, %v2411
        %v2734 = vmul.f32 %v2548, %v2411
        %v2735 = vmul.f32 %v2551, %v2411
        %v2736 = vmul.f32 %v2554, %v2411
        %v2737 = vmul.f32 %v2557, %v2411
        %v2738 = vmul.f32 %v2560, %v2411
        %v2739 = vmul.f32 %v2563, %v2411
        %v2740 = vmul.f32 %v2566, %v2411
        %v2741 = vmul.f32 %v2569, %v2411
        %v2742 = vmul.f32 %v2572, %v2411
        %v2743 = vmul.f32 %v2575, %v2411
        %v2744 = vmul.f32 %v2578, %v2411
        %v2745 = vmul.f32 %v2581, %v2411
        %v2746 = vmul.f32 %v2584, %v2411
        %v2747 = vmul.f32 %v2587, %v2411
        %v2748 = vmul.f32 %v2590, %v2411
        %v2749 = vmul.f32 %v2593, %v2411
        %v2750 = vmul.f32 %v2596, %v2411
        %v2751 = vmul.f32 %v2599, %v2411
        %v2752 = vmul.f32 %v2602, %v2411
        %v2753 = vmul.f32 %v2605, %v2411
        %v2754 = vmul.f32 %v2608, %v2411
        %v2755 = vmul.f32 %v2611, %v2411
        %v2756 = vmul.f32 %v2614, %v2411
        %v2757 = vmul.f32 %v2617, %v2411
        %v2758 = vmul.f32 %v2620, %v2411
        %v2759 = vmul.f32 %v2623, %v2411
        %v2760 = vmul.f32 %v2626, %v2411
        %v2761 = vmul.f32 %v2629, %v2411
        %v2762 = vmul.f32 %v2632, %v2411
        %v2763 = vmul.f32 %v2635, %v2411
        %v2764 = vmul.f32 %v2638, %v2411
        %v2765 = vmul.f32 %v2641, %v2411
        %v2766 = vmul.f32 %v2644, %v2411
        %v2767 = vmul.f32 %v2647, %v2411
        %v2768 = vmul.f32 %v2650, %v2411
        %v2769 = vmul.f32 %v2653, %v2411
        %v2770 = vmul.f32 %v2656, %v2411
        %v2771 = vmul.f32 %v2659, %v2411
        %v2772 = vmul.f32 %v2662, %v2411
        %v2773 = vmul.f32 %v2665, %v2411
        %v2774 = vmul.f32 %v2668, %v2411
        %v2775 = vmul.f32 %v2671, %v2411
        %v2776 = vmul.f32 %v2674, %v2411
        %v2777 = vmul.f32 %v2677, %v2411
        %v2778 = vmul.f32 %v2680, %v2411
        %v2779 = vmul.f32 %v2683, %v2411
        %v2780 = vmul.f32 %v2686, %v2411
        %v2781 = vmul.f32 %v2689, %v2411
        %v2782 = vmul.f32 %v2692, %v2411
        %v2783 = vmul.f32 %v2695, %v2411
        %v2784 = vmul.f32 %v2698, %v2411
        %v2785 = vmul.f32 %v2701, %v2411
        %v2786 = vmul.f32 %v2704, %v2411
        %v2787 = vmul.f32 %v2707, %v2411
        %v2788 = vmul.f32 %v2710, %v2411
        %v2789 = vmul.f32 %v2713, %v2411
        %v2790 = vmul.f32 %v2716, %v2411
        %v2791 = vmul.f32 %v2719, %v2411
        %v2792 = vmul.f32 %v2722, %v2411
        %v2793 = vmul.f32 %v2725, %v2411
        %v2794 = vmul.f32 %v2728, %v2411
        %v2795 = vmul.f32 %v2731, %v2411
        %v2796 = vmul.f32 %v2412, %v2412
        %v2797 = vmul.f32 %v2413, %v2413
        %v2798 = vmul.f32 %v2414, %v2414
        %v2799 = vmul.f32 %v2415, %v2415
        %v2800 = vmul.f32 %v2416, %v2416
        %v2801 = vmul.f32 %v2417, %v2417
        %v2802 = vmul.f32 %v2418, %v2418
        %v2803 = vmul.f32 %v2419, %v2419
        %v2804 = vmul.f32 %v2420, %v2420
        %v2805 = vmul.f32 %v2421, %v2421
        %v2806 = vmul.f32 %v2422, %v2422
        %v2807 = vmul.f32 %v2423, %v2423
        %v2808 = vmul.f32 %v2424, %v2424
        %v2809 = vmul.f32 %v2425, %v2425
        %v2810 = vmul.f32 %v2426, %v2426
        %v2811 = vmul.f32 %v2427, %v2427
        %v2812 = vmul.f32 %v2428, %v2428
        %v2813 = vmul.f32 %v2429, %v2429
        %v2814 = vmul.f32 %v2430, %v2430
        %v2815 = vmul.f32 %v2431, %v2431
        %v2816 = vmul.f32 %v2432, %v2432
        %v2817 = vmul.f32 %v2433, %v2433
        %v2818 = vmul.f32 %v2434, %v2434
        %v2819 = vmul.f32 %v2435, %v2435
        %v2820 = vmul.f32 %v2436, %v2436
        %v2821 = vmul.f32 %v2437, %v2437
        %v2822 = vmul.f32 %v2438, %v2438
        %v2823 = vmul.f32 %v2439, %v2439
        %v2824 = vmul.f32 %v2440, %v2440
        %v2825 = vmul.f32 %v2441, %v2441
        %v2826 = vmul.f32 %v2442, %v2442
        %v2827 = vmul.f32 %v2443, %v2443
        %v2828 = vmul.f32 %v2444, %v2444
        %v2829 = vmul.f32 %v2445, %v2445
        %v2830 = vmul.f32 %v2446, %v2446
        %v2831 = vmul.f32 %v2447, %v2447
        %v2832 = vmul.f32 %v2448, %v2448
        %v2833 = vmul.f32 %v2449, %v2449
        %v2834 = vmul.f32 %v2450, %v2450
        %v2835 = vmul.f32 %v2451, %v2451
        %v2836 = vmul.f32 %v2452, %v2452
        %v2837 = vmul.f32 %v2453, %v2453
        %v2838 = vmul.f32 %v2454, %v2454
        %v2839 = vmul.f32 %v2455, %v2455
        %v2840 = vmul.f32 %v2456, %v2456
        %v2841 = vmul.f32 %v2457, %v2457
        %v2842 = vmul.f32 %v2458, %v2458
        %v2843 = vmul.f32 %v2459, %v2459
        %v2844 = vmul.f32 %v2460, %v2460
        %v2845 = vmul.f32 %v2461, %v2461
        %v2846 = vmul.f32 %v2462, %v2462
        %v2847 = vmul.f32 %v2463, %v2463
        %v2848 = vmul.f32 %v2464, %v2464
        %v2849 = vmul.f32 %v2465, %v2465
        %v2850 = vmul.f32 %v2466, %v2466
        %v2851 = vmul.f32 %v2467, %v2467
        %v2852 = vmul.f32 %v2468, %v2468
        %v2853 = vmul.f32 %v2469, %v2469
        %v2854 = vmul.f32 %v2470, %v2470
        %v2855 = vmul.f32 %v2471, %v2471
        %v2856 = vmul.f32 %v2472, %v2472
        %v2857 = vmul.f32 %v2473, %v2473
        %v2858 = vmul.f32 %v2474, %v2474
        %v2859 = vmul.f32 %v2475, %v2475
        %v2860 = vsub.f32 %v2732, %v2796
        %v2861 = vsub.f32 %v2733, %v2797
        %v2862 = vsub.f32 %v2734, %v2798
        %v2863 = vsub.f32 %v2735, %v2799
        %v2864 = vsub.f32 %v2736, %v2800
        %v2865 = vsub.f32 %v2737, %v2801
        %v2866 = vsub.f32 %v2738, %v2802
        %v2867 = vsub.f32 %v2739, %v2803
        %v2868 = vsub.f32 %v2740, %v2804
        %v2869 = vsub.f32 %v2741, %v2805
        %v2870 = vsub.f32 %v2742, %v2806
        %v2871 = vsub.f32 %v2743, %v2807
        %v2872 = vsub.f32 %v2744, %v2808
        %v2873 = vsub.f32 %v2745, %v2809
        %v2874 = vsub.f32 %v2746, %v2810
        %v2875 = vsub.f32 %v2747, %v2811
        %v2876 = vsub.f32 %v2748, %v2812
        %v2877 = vsub.f32 %v2749, %v2813
        %v2878 = vsub.f32 %v2750, %v2814
        %v2879 = vsub.f32 %v2751, %v2815
        %v2880 = vsub.f32 %v2752, %v2816
        %v2881 = vsub.f32 %v2753, %v2817
        %v2882 = vsub.f32 %v2754, %v2818
        %v2883 = vsub.f32 %v2755, %v2819
        %v2884 = vsub.f32 %v2756, %v2820
        %v2885 = vsub.f32 %v2757, %v2821
        %v2886 = vsub.f32 %v2758, %v2822
        %v2887 = vsub.f32 %v2759, %v2823
        %v2888 = vsub.f32 %v2760, %v2824
        %v2889 = vsub.f32 %v2761, %v2825
        %v2890 = vsub.f32 %v2762, %v2826
        %v2891 = vsub.f32 %v2763, %v2827
        %v2892 = vsub.f32 %v2764, %v2828
        %v2893 = vsub.f32 %v2765, %v2829
        %v2894 = vsub.f32 %v2766, %v2830
        %v2895 = vsub.f32 %v2767, %v2831
        %v2896 = vsub.f32 %v2768, %v2832
        %v2897 = vsub.f32 %v2769, %v2833
        %v2898 = vsub.f32 %v2770, %v2834
        %v2899 = vsub.f32 %v2771, %v2835
        %v2900 = vsub.f32 %v2772, %v2836
        %v2901 = vsub.f32 %v2773, %v2837
        %v2902 = vsub.f32 %v2774, %v2838
        %v2903 = vsub.f32 %v2775, %v2839
        %v2904 = vsub.f32 %v2776, %v2840
        %v2905 = vsub.f32 %v2777, %v2841
        %v2906 = vsub.f32 %v2778, %v2842
        %v2907 = vsub.f32 %v2779, %v2843
        %v2908 = vsub.f32 %v2780, %v2844
        %v2909 = vsub.f32 %v2781, %v2845
        %v2910 = vsub.f32 %v2782, %v2846
        %v2911 = vsub.f32 %v2783, %v2847
        %v2912 = vsub.f32 %v2784, %v2848
        %v2913 = vsub.f32 %v2785, %v2849
        %v2914 = vsub.f32 %v2786, %v2850
        %v2915 = vsub.f32 %v2787, %v2851
        %v2916 = vsub.f32 %v2788, %v2852
        %v2917 = vsub.f32 %v2789, %v2853
        %v2918 = vsub.f32 %v2790, %v2854
        %v2919 = vsub.f32 %v2791, %v2855
        %v2920 = vsub.f32 %v2792, %v2856
        %v2921 = vsub.f32 %v2793, %v2857
        %v2922 = vsub.f32 %v2794, %v2858
        %v2923 = vsub.f32 %v2795, %v2859
        %v2924 = vmax.f32 %v2860, 0.0
        %v2925 = vmax.f32 %v2861, 0.0
        %v2926 = vmax.f32 %v2862, 0.0
        %v2927 = vmax.f32 %v2863, 0.0
        %v2928 = vmax.f32 %v2864, 0.0
        %v2929 = vmax.f32 %v2865, 0.0
        %v2930 = vmax.f32 %v2866, 0.0
        %v2931 = vmax.f32 %v2867, 0.0
        %v2932 = vmax.f32 %v2868, 0.0
        %v2933 = vmax.f32 %v2869, 0.0
        %v2934 = vmax.f32 %v2870, 0.0
        %v2935 = vmax.f32 %v2871, 0.0
        %v2936 = vmax.f32 %v2872, 0.0
        %v2937 = vmax.f32 %v2873, 0.0
        %v2938 = vmax.f32 %v2874, 0.0
        %v2939 = vmax.f32 %v2875, 0.0
        %v2940 = vmax.f32 %v2876, 0.0
        %v2941 = vmax.f32 %v2877, 0.0
        %v2942 = vmax.f32 %v2878, 0.0
        %v2943 = vmax.f32 %v2879, 0.0
        %v2944 = vmax.f32 %v2880, 0.0
        %v2945 = vmax.f32 %v2881, 0.0
        %v2946 = vmax.f32 %v2882, 0.0
        %v2947 = vmax.f32 %v2883, 0.0
        %v2948 = vmax.f32 %v2884, 0.0
        %v2949 = vmax.f32 %v2885, 0.0
        %v2950 = vmax.f32 %v2886, 0.0
        %v2951 = vmax.f32 %v2887, 0.0
        %v2952 = vmax.f32 %v2888, 0.0
        %v2953 = vmax.f32 %v2889, 0.0
        %v2954 = vmax.f32 %v2890, 0.0
        %v2955 = vmax.f32 %v2891, 0.0
        %v2956 = vmax.f32 %v2892, 0.0
        %v2957 = vmax.f32 %v2893, 0.0
        %v2958 = vmax.f32 %v2894, 0.0
        %v2959 = vmax.f32 %v2895, 0.0
        %v2960 = vmax.f32 %v2896, 0.0
        %v2961 = vmax.f32 %v2897, 0.0
        %v2962 = vmax.f32 %v2898, 0.0
        %v2963 = vmax.f32 %v2899, 0.0
        %v2964 = vmax.f32 %v2900, 0.0
        %v2965 = vmax.f32 %v2901, 0.0
        %v2966 = vmax.f32 %v2902, 0.0
        %v2967 = vmax.f32 %v2903, 0.0
        %v2968 = vmax.f32 %v2904, 0.0
        %v2969 = vmax.f32 %v2905, 0.0
        %v2970 = vmax.f32 %v2906, 0.0
        %v2971 = vmax.f32 %v2907, 0.0
        %v2972 = vmax.f32 %v2908, 0.0
        %v2973 = vmax.f32 %v2909, 0.0
        %v2974 = vmax.f32 %v2910, 0.0
        %v2975 = vmax.f32 %v2911, 0.0
        %v2976 = vmax.f32 %v2912, 0.0
        %v2977 = vmax.f32 %v2913, 0.0
        %v2978 = vmax.f32 %v2914, 0.0
        %v2979 = vmax.f32 %v2915, 0.0
        %v2980 = vmax.f32 %v2916, 0.0
        %v2981 = vmax.f32 %v2917, 0.0
        %v2982 = vmax.f32 %v2918, 0.0
        %v2983 = vmax.f32 %v2919, 0.0
        %v2984 = vmax.f32 %v2920, 0.0
        %v2985 = vmax.f32 %v2921, 0.0
        %v2986 = vmax.f32 %v2922, 0.0
        %v2987 = vmax.f32 %v2923, 0.0
        %v2988 = vsub.f32 %v1898, %v2412
        %v2989 = vsub.f32 %v1903, %v2413
        %v2990 = vsub.f32 %v1908, %v2414
        %v2991 = vsub.f32 %v1913, %v2415
        %v2992 = vsub.f32 %v1918, %v2416
        %v2993 = vsub.f32 %v1923, %v2417
        %v2994 = vsub.f32 %v1928, %v2418
        %v2995 = vsub.f32 %v1933, %v2419
        %v2996 = vsub.f32 %v1938, %v2420
        %v2997 = vsub.f32 %v1943, %v2421
        %v2998 = vsub.f32 %v1948, %v2422
        %v2999 = vsub.f32 %v1953, %v2423
        %v3000 = vsub.f32 %v1958, %v2424
        %v3001 = vsub.f32 %v1963, %v2425
        %v3002 = vsub.f32 %v1968, %v2426
        %v3003 = vsub.f32 %v1973, %v2427
        %v3004 = vsub.f32 %v1978, %v2428
        %v3005 = vsub.f32 %v1983, %v2429
        %v3006 = vsub.f32 %v1988, %v2430
        %v3007 = vsub.f32 %v1993, %v2431
        %v3008 = vsub.f32 %v1998, %v2432
        %v3009 = vsub.f32 %v2003, %v2433
        %v3010 = vsub.f32 %v2008, %v2434
        %v3011 = vsub.f32 %v2013, %v2435
        %v3012 = vsub.f32 %v2018, %v2436
        %v3013 = vsub.f32 %v2023, %v2437
        %v3014 = vsub.f32 %v2028, %v2438
        %v3015 = vsub.f32 %v2033, %v2439
        %v3016 = vsub.f32 %v2038, %v2440
        %v3017 = vsub.f32 %v2043, %v2441
        %v3018 = vsub.f32 %v2048, %v2442
        %v3019 = vsub.f32 %v2053, %v2443
        %v3020 = vsub.f32 %v2058, %v2444
        %v3021 = vsub.f32 %v2063, %v2445
        %v3022 = vsub.f32 %v2068, %v2446
        %v3023 = vsub.f32 %v2073, %v2447
        %v3024 = vsub.f32 %v2078, %v2448
        %v3025 = vsub.f32 %v2083, %v2449
        %v3026 = vsub.f32 %v2088, %v2450
        %v3027 = vsub.f32 %v2093, %v2451
        %v3028 = vsub.f32 %v2098, %v2452
        %v3029 = vsub.f32 %v2103, %v2453
        %v3030 = vsub.f32 %v2108, %v2454
        %v3031 = vsub.f32 %v2113, %v2455
        %v3032 = vsub.f32 %v2118, %v2456
        %v3033 = vsub.f32 %v2123, %v2457
        %v3034 = vsub.f32 %v2128, %v2458
        %v3035 = vsub.f32 %v2133, %v2459
        %v3036 = vsub.f32 %v2138, %v2460
        %v3037 = vsub.f32 %v2143, %v2461
        %v3038 = vsub.f32 %v2148, %v2462
        %v3039 = vsub.f32 %v2153, %v2463
        %v3040 = vsub.f32 %v2158, %v2464
        %v3041 = vsub.f32 %v2163, %v2465
        %v3042 = vsub.f32 %v2168, %v2466
        %v3043 = vsub.f32 %v2173, %v2467
        %v3044 = vsub.f32 %v2178, %v2468
        %v3045 = vsub.f32 %v2183, %v2469
        %v3046 = vsub.f32 %v2188, %v2470
        %v3047 = vsub.f32 %v2193, %v2471
        %v3048 = vsub.f32 %v2198, %v2472
        %v3049 = vsub.f32 %v2203, %v2473
        %v3050 = vsub.f32 %v2208, %v2474
        %v3051 = vsub.f32 %v2213, %v2475
        %v3052 = vadd.f32 %v2924, 1e-05
        %v3053 = vadd.f32 %v2925, 1e-05
        %v3054 = vadd.f32 %v2926, 1e-05
        %v3055 = vadd.f32 %v2927, 1e-05
        %v3056 = vadd.f32 %v2928, 1e-05
        %v3057 = vadd.f32 %v2929, 1e-05
        %v3058 = vadd.f32 %v2930, 1e-05
        %v3059 = vadd.f32 %v2931, 1e-05
        %v3060 = vadd.f32 %v2932, 1e-05
        %v3061 = vadd.f32 %v2933, 1e-05
        %v3062 = vadd.f32 %v2934, 1e-05
        %v3063 = vadd.f32 %v2935, 1e-05
        %v3064 = vadd.f32 %v2936, 1e-05
        %v3065 = vadd.f32 %v2937, 1e-05
        %v3066 = vadd.f32 %v2938, 1e-05
        %v3067 = vadd.f32 %v2939, 1e-05
        %v3068 = vadd.f32 %v2940, 1e-05
        %v3069 = vadd.f32 %v2941, 1e-05
        %v3070 = vadd.f32 %v2942, 1e-05
        %v3071 = vadd.f32 %v2943, 1e-05
        %v3072 = vadd.f32 %v2944, 1e-05
        %v3073 = vadd.f32 %v2945, 1e-05
        %v3074 = vadd.f32 %v2946, 1e-05
        %v3075 = vadd.f32 %v2947, 1e-05
        %v3076 = vadd.f32 %v2948, 1e-05
        %v3077 = vadd.f32 %v2949, 1e-05
        %v3078 = vadd.f32 %v2950, 1e-05
        %v3079 = vadd.f32 %v2951, 1e-05
        %v3080 = vadd.f32 %v2952, 1e-05
        %v3081 = vadd.f32 %v2953, 1e-05
        %v3082 = vadd.f32 %v2954, 1e-05
        %v3083 = vadd.f32 %v2955, 1e-05
        %v3084 = vadd.f32 %v2956, 1e-05
        %v3085 = vadd.f32 %v2957, 1e-05
        %v3086 = vadd.f32 %v2958, 1e-05
        %v3087 = vadd.f32 %v2959, 1e-05
        %v3088 = vadd.f32 %v2960, 1e-05
        %v3089 = vadd.f32 %v2961, 1e-05
        %v3090 = vadd.f32 %v2962, 1e-05
        %v3091 = vadd.f32 %v2963, 1e-05
        %v3092 = vadd.f32 %v2964, 1e-05
        %v3093 = vadd.f32 %v2965, 1e-05
        %v3094 = vadd.f32 %v2966, 1e-05
        %v3095 = vadd.f32 %v2967, 1e-05
        %v3096 = vadd.f32 %v2968, 1e-05
        %v3097 = vadd.f32 %v2969, 1e-05
        %v3098 = vadd.f32 %v2970, 1e-05
        %v3099 = vadd.f32 %v2971, 1e-05
        %v3100 = vadd.f32 %v2972, 1e-05
        %v3101 = vadd.f32 %v2973, 1e-05
        %v3102 = vadd.f32 %v2974, 1e-05
        %v3103 = vadd.f32 %v2975, 1e-05
        %v3104 = vadd.f32 %v2976, 1e-05
        %v3105 = vadd.f32 %v2977, 1e-05
        %v3106 = vadd.f32 %v2978, 1e-05
        %v3107 = vadd.f32 %v2979, 1e-05
        %v3108 = vadd.f32 %v2980, 1e-05
        %v3109 = vadd.f32 %v2981, 1e-05
        %v3110 = vadd.f32 %v2982, 1e-05
        %v3111 = vadd.f32 %v2983, 1e-05
        %v3112 = vadd.f32 %v2984, 1e-05
        %v3113 = vadd.f32 %v2985, 1e-05
        %v3114 = vadd.f32 %v2986, 1e-05
        %v3115 = vadd.f32 %v2987, 1e-05
        %v3116 = vrsqrt.pop %v3052
        %v3117 = vrsqrt.pop %v3053
        %v3118 = vrsqrt.pop %v3054
        %v3119 = vrsqrt.pop %v3055
        %v3120 = vrsqrt.pop %v3056
        %v3121 = vrsqrt.pop %v3057
        %v3122 = vrsqrt.pop %v3058
        %v3123 = vrsqrt.pop %v3059
        %v3124 = vrsqrt.pop %v3060
        %v3125 = vrsqrt.pop %v3061
        %v3126 = vrsqrt.pop %v3062
        %v3127 = vrsqrt.pop %v3063
        %v3128 = vrsqrt.pop %v3064
        %v3129 = vrsqrt.pop %v3065
        %v3130 = vrsqrt.pop %v3066
        %v3131 = vrsqrt.pop %v3067
        %v3132 = vrsqrt.pop %v3068
        %v3133 = vrsqrt.pop %v3069
        %v3134 = vrsqrt.pop %v3070
        %v3135 = vrsqrt.pop %v3071
        %v3136 = vrsqrt.pop %v3072
        %v3137 = vrsqrt.pop %v3073
        %v3138 = vrsqrt.pop %v3074
        %v3139 = vrsqrt.pop %v3075
        %v3140 = vrsqrt.pop %v3076
        %v3141 = vrsqrt.pop %v3077
        %v3142 = vrsqrt.pop %v3078
        %v3143 = vrsqrt.pop %v3079
        %v3144 = vrsqrt.pop %v3080
        %v3145 = vrsqrt.pop %v3081
        %v3146 = vrsqrt.pop %v3082
        %v3147 = vrsqrt.pop %v3083
        %v3148 = vrsqrt.pop %v3084
        %v3149 = vrsqrt.pop %v3085
        %v3150 = vrsqrt.pop %v3086
        %v3151 = vrsqrt.pop %v3087
        %v3152 = vrsqrt.pop %v3088
        %v3153 = vrsqrt.pop %v3089
        %v3154 = vrsqrt.pop %v3090
        %v3155 = vrsqrt.pop %v3091
        %v3156 = vrsqrt.pop %v3092
        %v3157 = vrsqrt.pop %v3093
        %v3158 = vrsqrt.pop %v3094
        %v3159 = vrsqrt.pop %v3095
        %v3160 = vrsqrt.pop %v3096
        %v3161 = vrsqrt.pop %v3097
        %v3162 = vrsqrt.pop %v3098
        %v3163 = vrsqrt.pop %v3099
        %v3164 = vrsqrt.pop %v3100
        %v3165 = vrsqrt.pop %v3101
        %v3166 = vrsqrt.pop %v3102
        %v3167 = vrsqrt.pop %v3103
        %v3168 = vrsqrt.pop %v3104
        %v3169 = vrsqrt.pop %v3105
        %v3170 = vrsqrt.pop %v3106
        %v3171 = vrsqrt.pop %v3107
        %v3172 = vrsqrt.pop %v3108
        %v3173 = vrsqrt.pop %v3109
        %v3174 = vrsqrt.pop %v3110
        %v3175 = vrsqrt.pop %v3111
        %v3176 = vrsqrt.pop %v3112
        %v3177 = vrsqrt.pop %v3113
        %v3178 = vrsqrt.pop %v3114
        %v3179 = vrsqrt.pop %v3115
        %v3180 = vmul.f32 %v2988, %v3116
        %v3181 = vmul.f32 %v2989, %v3117
        %v3182 = vmul.f32 %v2990, %v3118
        %v3183 = vmul.f32 %v2991, %v3119
        %v3184 = vmul.f32 %v2992, %v3120
        %v3185 = vmul.f32 %v2993, %v3121
        %v3186 = vmul.f32 %v2994, %v3122
        %v3187 = vmul.f32 %v2995, %v3123
        %v3188 = vmul.f32 %v2996, %v3124
        %v3189 = vmul.f32 %v2997, %v3125
        %v3190 = vmul.f32 %v2998, %v3126
        %v3191 = vmul.f32 %v2999, %v3127
        %v3192 = vmul.f32 %v3000, %v3128
        %v3193 = vmul.f32 %v3001, %v3129
        %v3194 = vmul.f32 %v3002, %v3130
        %v3195 = vmul.f32 %v3003, %v3131
        %v3196 = vmul.f32 %v3004, %v3132
        %v3197 = vmul.f32 %v3005, %v3133
        %v3198 = vmul.f32 %v3006, %v3134
        %v3199 = vmul.f32 %v3007, %v3135
        %v3200 = vmul.f32 %v3008, %v3136
        %v3201 = vmul.f32 %v3009, %v3137
        %v3202 = vmul.f32 %v3010, %v3138
        %v3203 = vmul.f32 %v3011, %v3139
        %v3204 = vmul.f32 %v3012, %v3140
        %v3205 = vmul.f32 %v3013, %v3141
        %v3206 = vmul.f32 %v3014, %v3142
        %v3207 = vmul.f32 %v3015, %v3143
        %v3208 = vmul.f32 %v3016, %v3144
        %v3209 = vmul.f32 %v3017, %v3145
        %v3210 = vmul.f32 %v3018, %v3146
        %v3211 = vmul.f32 %v3019, %v3147
        %v3212 = vmul.f32 %v3020, %v3148
        %v3213 = vmul.f32 %v3021, %v3149
        %v3214 = vmul.f32 %v3022, %v3150
        %v3215 = vmul.f32 %v3023, %v3151
        %v3216 = vmul.f32 %v3024, %v3152
        %v3217 = vmul.f32 %v3025, %v3153
        %v3218 = vmul.f32 %v3026, %v3154
        %v3219 = vmul.f32 %v3027, %v3155
        %v3220 = vmul.f32 %v3028, %v3156
        %v3221 = vmul.f32 %v3029, %v3157
        %v3222 = vmul.f32 %v3030, %v3158
        %v3223 = vmul.f32 %v3031, %v3159
        %v3224 = vmul.f32 %v3032, %v3160
        %v3225 = vmul.f32 %v3033, %v3161
        %v3226 = vmul.f32 %v3034, %v3162
        %v3227 = vmul.f32 %v3035, %v3163
        %v3228 = vmul.f32 %v3036, %v3164
        %v3229 = vmul.f32 %v3037, %v3165
        %v3230 = vmul.f32 %v3038, %v3166
        %v3231 = vmul.f32 %v3039, %v3167
        %v3232 = vmul.f32 %v3040, %v3168
        %v3233 = vmul.f32 %v3041, %v3169
        %v3234 = vmul.f32 %v3042, %v3170
        %v3235 = vmul.f32 %v3043, %v3171
        %v3236 = vmul.f32 %v3044, %v3172
        %v3237 = vmul.f32 %v3045, %v3173
        %v3238 = vmul.f32 %v3046, %v3174
        %v3239 = vmul.f32 %v3047, %v3175
        %v3240 = vmul.f32 %v3048, %v3176
        %v3241 = vmul.f32 %v3049, %v3177
        %v3242 = vmul.f32 %v3050, %v3178
        %v3243 = vmul.f32 %v3051, %v3179
        %v3245 = vlaneseq
        %v3246 = vshrl.u32 %v3245, 7
        %v3247 = vsub.s32 0, %v3246
        %v3248 = vrot.slane %v2216, %v3247
        %v3250 = vmul.f32 %v3180, %v3248
        %v3251 = vmul.f32 %v3181, %v3248
        %v3252 = vmul.f32 %v3182, %v3248
        %v3253 = vmul.f32 %v3183, %v3248
        %v3254 = vmul.f32 %v3184, %v3248
        %v3255 = vmul.f32 %v3185, %v3248
        %v3256 = vmul.f32 %v3186, %v3248
        %v3257 = vmul.f32 %v3187, %v3248
        %v3258 = vmul.f32 %v3188, %v3248
        %v3259 = vmul.f32 %v3189, %v3248
        %v3260 = vmul.f32 %v3190, %v3248
        %v3261 = vmul.f32 %v3191, %v3248
        %v3262 = vmul.f32 %v3192, %v3248
        %v3263 = vmul.f32 %v3193, %v3248
        %v3264 = vmul.f32 %v3194, %v3248
        %v3265 = vmul.f32 %v3195, %v3248
        %v3266 = vmul.f32 %v3196, %v3248
        %v3267 = vmul.f32 %v3197, %v3248
        %v3268 = vmul.f32 %v3198, %v3248
        %v3269 = vmul.f32 %v3199, %v3248
        %v3270 = vmul.f32 %v3200, %v3248
        %v3271 = vmul.f32 %v3201, %v3248
        %v3272 = vmul.f32 %v3202, %v3248
        %v3273 = vmul.f32 %v3203, %v3248
        %v3274 = vmul.f32 %v3204, %v3248
        %v3275 = vmul.f32 %v3205, %v3248
        %v3276 = vmul.f32 %v3206, %v3248
        %v3277 = vmul.f32 %v3207, %v3248
        %v3278 = vmul.f32 %v3208, %v3248
        %v3279 = vmul.f32 %v3209, %v3248
        %v3280 = vmul.f32 %v3210, %v3248
        %v3281 = vmul.f32 %v3211, %v3248
        %v3282 = vmul.f32 %v3212, %v3248
        %v3283 = vmul.f32 %v3213, %v3248
        %v3284 = vmul.f32 %v3214, %v3248
        %v3285 = vmul.f32 %v3215, %v3248
        %v3286 = vmul.f32 %v3216, %v3248
        %v3287 = vmul.f32 %v3217, %v3248
        %v3288 = vmul.f32 %v3218, %v3248
        %v3289 = vmul.f32 %v3219, %v3248
        %v3290 = vmul.f32 %v3220, %v3248
        %v3291 = vmul.f32 %v3221, %v3248
        %v3292 = vmul.f32 %v3222, %v3248
        %v3293 = vmul.f32 %v3223, %v3248
        %v3294 = vmul.f32 %v3224, %v3248
        %v3295 = vmul.f32 %v3225, %v3248
        %v3296 = vmul.f32 %v3226, %v3248
        %v3297 = vmul.f32 %v3227, %v3248
        %v3298 = vmul.f32 %v3228, %v3248
        %v3299 = vmul.f32 %v3229, %v3248
        %v3300 = vmul.f32 %v3230, %v3248
        %v3301 = vmul.f32 %v3231, %v3248
        %v3302 = vmul.f32 %v3232, %v3248
        %v3303 = vmul.f32 %v3233, %v3248
        %v3304 = vmul.f32 %v3234, %v3248
        %v3305 = vmul.f32 %v3235, %v3248
        %v3306 = vmul.f32 %v3236, %v3248
        %v3307 = vmul.f32 %v3237, %v3248
        %v3308 = vmul.f32 %v3238, %v3248
        %v3309 = vmul.f32 %v3239, %v3248
        %v3310 = vmul.f32 %v3240, %v3248
        %v3311 = vmul.f32 %v3241, %v3248
        %v3312 = vmul.f32 %v3242, %v3248
        %v3313 = vmul.f32 %v3243, %v3248
        %v3315 = vlaneseq
        %v3316 = vshrl.u32 %v3315, 7
        %v3317 = vsub.s32 0, %v3316
        %v3318 = vrot.slane %v2217, %v3317
        %v3320 = vadd.f32 %v3250, %v3318
        %v3321 = vadd.f32 %v3251, %v3318
        %v3322 = vadd.f32 %v3252, %v3318
        %v3323 = vadd.f32 %v3253, %v3318
        %v3324 = vadd.f32 %v3254, %v3318
        %v3325 = vadd.f32 %v3255, %v3318
        %v3326 = vadd.f32 %v3256, %v3318
        %v3327 = vadd.f32 %v3257, %v3318
        %v3328 = vadd.f32 %v3258, %v3318
        %v3329 = vadd.f32 %v3259, %v3318
        %v3330 = vadd.f32 %v3260, %v3318
        %v3331 = vadd.f32 %v3261, %v3318
        %v3332 = vadd.f32 %v3262, %v3318
        %v3333 = vadd.f32 %v3263, %v3318
        %v3334 = vadd.f32 %v3264, %v3318
        %v3335 = vadd.f32 %v3265, %v3318
        %v3336 = vadd.f32 %v3266, %v3318
        %v3337 = vadd.f32 %v3267, %v3318
        %v3338 = vadd.f32 %v3268, %v3318
        %v3339 = vadd.f32 %v3269, %v3318
        %v3340 = vadd.f32 %v3270, %v3318
        %v3341 = vadd.f32 %v3271, %v3318
        %v3342 = vadd.f32 %v3272, %v3318
        %v3343 = vadd.f32 %v3273, %v3318
        %v3344 = vadd.f32 %v3274, %v3318
        %v3345 = vadd.f32 %v3275, %v3318
        %v3346 = vadd.f32 %v3276, %v3318
        %v3347 = vadd.f32 %v3277, %v3318
        %v3348 = vadd.f32 %v3278, %v3318
        %v3349 = vadd.f32 %v3279, %v3318
        %v3350 = vadd.f32 %v3280, %v3318
        %v3351 = vadd.f32 %v3281, %v3318
        %v3352 = vadd.f32 %v3282, %v3318
        %v3353 = vadd.f32 %v3283, %v3318
        %v3354 = vadd.f32 %v3284, %v3318
        %v3355 = vadd.f32 %v3285, %v3318
        %v3356 = vadd.f32 %v3286, %v3318
        %v3357 = vadd.f32 %v3287, %v3318
        %v3358 = vadd.f32 %v3288, %v3318
        %v3359 = vadd.f32 %v3289, %v3318
        %v3360 = vadd.f32 %v3290, %v3318
        %v3361 = vadd.f32 %v3291, %v3318
        %v3362 = vadd.f32 %v3292, %v3318
        %v3363 = vadd.f32 %v3293, %v3318
        %v3364 = vadd.f32 %v3294, %v3318
        %v3365 = vadd.f32 %v3295, %v3318
        %v3366 = vadd.f32 %v3296, %v3318
        %v3367 = vadd.f32 %v3297, %v3318
        %v3368 = vadd.f32 %v3298, %v3318
        %v3369 = vadd.f32 %v3299, %v3318
        %v3370 = vadd.f32 %v3300, %v3318
        %v3371 = vadd.f32 %v3301, %v3318
        %v3372 = vadd.f32 %v3302, %v3318
        %v3373 = vadd.f32 %v3303, %v3318
        %v3374 = vadd.f32 %v3304, %v3318
        %v3375 = vadd.f32 %v3305, %v3318
        %v3376 = vadd.f32 %v3306, %v3318
        %v3377 = vadd.f32 %v3307, %v3318
        %v3378 = vadd.f32 %v3308, %v3318
        %v3379 = vadd.f32 %v3309, %v3318
        %v3380 = vadd.f32 %v3310, %v3318
        %v3381 = vadd.f32 %v3311, %v3318
        %v3382 = vadd.f32 %v3312, %v3318
        %v3383 = vadd.f32 %v3313, %v3318
        %v3384 = vld [vmem:[%s7] sm:$0x1]
        %v3386 = vlaneseq
        %v3387 = vshrl.u32 %v3386, 7
        %v3388 = vsub.s32 0, %v3387
        %v3389 = vrot.slane %v3384, %v3388
        %v3391 = vadd.f32 %v3320, %v3389
        %v3392 = vadd.f32 %v3321, %v3389
        %v3393 = vadd.f32 %v3322, %v3389
        %v3394 = vadd.f32 %v3323, %v3389
        %v3395 = vadd.f32 %v3324, %v3389
        %v3396 = vadd.f32 %v3325, %v3389
        %v3397 = vadd.f32 %v3326, %v3389
        %v3398 = vadd.f32 %v3327, %v3389
        %v3399 = vadd.f32 %v3328, %v3389
        %v3400 = vadd.f32 %v3329, %v3389
        %v3401 = vadd.f32 %v3330, %v3389
        %v3402 = vadd.f32 %v3331, %v3389
        %v3403 = vadd.f32 %v3332, %v3389
        %v3404 = vadd.f32 %v3333, %v3389
        %v3405 = vadd.f32 %v3334, %v3389
        %v3406 = vadd.f32 %v3335, %v3389
        %v3407 = vadd.f32 %v3336, %v3389
        %v3408 = vadd.f32 %v3337, %v3389
        %v3409 = vadd.f32 %v3338, %v3389
        %v3410 = vadd.f32 %v3339, %v3389
        %v3411 = vadd.f32 %v3340, %v3389
        %v3412 = vadd.f32 %v3341, %v3389
        %v3413 = vadd.f32 %v3342, %v3389
        %v3414 = vadd.f32 %v3343, %v3389
        %v3415 = vadd.f32 %v3344, %v3389
        %v3416 = vadd.f32 %v3345, %v3389
        %v3417 = vadd.f32 %v3346, %v3389
        %v3418 = vadd.f32 %v3347, %v3389
        %v3419 = vadd.f32 %v3348, %v3389
        %v3420 = vadd.f32 %v3349, %v3389
        %v3421 = vadd.f32 %v3350, %v3389
        %v3422 = vadd.f32 %v3351, %v3389
        %v3423 = vadd.f32 %v3352, %v3389
        %v3424 = vadd.f32 %v3353, %v3389
        %v3425 = vadd.f32 %v3354, %v3389
        %v3426 = vadd.f32 %v3355, %v3389
        %v3427 = vadd.f32 %v3356, %v3389
        %v3428 = vadd.f32 %v3357, %v3389
        %v3429 = vadd.f32 %v3358, %v3389
        %v3430 = vadd.f32 %v3359, %v3389
        %v3431 = vadd.f32 %v3360, %v3389
        %v3432 = vadd.f32 %v3361, %v3389
        %v3433 = vadd.f32 %v3362, %v3389
        %v3434 = vadd.f32 %v3363, %v3389
        %v3435 = vadd.f32 %v3364, %v3389
        %v3436 = vadd.f32 %v3365, %v3389
        %v3437 = vadd.f32 %v3366, %v3389
        %v3438 = vadd.f32 %v3367, %v3389
        %v3439 = vadd.f32 %v3368, %v3389
        %v3440 = vadd.f32 %v3369, %v3389
        %v3441 = vadd.f32 %v3370, %v3389
        %v3442 = vadd.f32 %v3371, %v3389
        %v3443 = vadd.f32 %v3372, %v3389
        %v3444 = vadd.f32 %v3373, %v3389
        %v3445 = vadd.f32 %v3374, %v3389
        %v3446 = vadd.f32 %v3375, %v3389
        %v3447 = vadd.f32 %v3376, %v3389
        %v3448 = vadd.f32 %v3377, %v3389
        %v3449 = vadd.f32 %v3378, %v3389
        %v3450 = vadd.f32 %v3379, %v3389
        %v3451 = vadd.f32 %v3380, %v3389
        %v3452 = vadd.f32 %v3381, %v3389
        %v3453 = vadd.f32 %v3382, %v3389
        %v3454 = vadd.f32 %v3383, %v3389
        %v3455 = vld [vmem:[%s384] sm:$0x1]
        %v3457 = vlaneseq
        %v3458 = vshrl.u32 %v3457, 7
        %v3459 = vsub.s32 0, %v3458
        %v3460 = vrot.slane %v3455, %v3459
        %v3462 = vadd.f32 %v3391, %v3460
        %v3463 = vadd.f32 %v3392, %v3460
        %v3464 = vadd.f32 %v3393, %v3460
        %v3465 = vadd.f32 %v3394, %v3460
        %v3466 = vadd.f32 %v3395, %v3460
        %v3467 = vadd.f32 %v3396, %v3460
        %v3468 = vadd.f32 %v3397, %v3460
        %v3469 = vadd.f32 %v3398, %v3460
        %v3470 = vadd.f32 %v3399, %v3460
        %v3471 = vadd.f32 %v3400, %v3460
        %v3472 = vadd.f32 %v3401, %v3460
        %v3473 = vadd.f32 %v3402, %v3460
        %v3474 = vadd.f32 %v3403, %v3460
        %v3475 = vadd.f32 %v3404, %v3460
        %v3476 = vadd.f32 %v3405, %v3460
        %v3477 = vadd.f32 %v3406, %v3460
        %v3478 = vadd.f32 %v3407, %v3460
        %v3479 = vadd.f32 %v3408, %v3460
        %v3480 = vadd.f32 %v3409, %v3460
        %v3481 = vadd.f32 %v3410, %v3460
        %v3482 = vadd.f32 %v3411, %v3460
        %v3483 = vadd.f32 %v3412, %v3460
        %v3484 = vadd.f32 %v3413, %v3460
        %v3485 = vadd.f32 %v3414, %v3460
        %v3486 = vadd.f32 %v3415, %v3460
        %v3487 = vadd.f32 %v3416, %v3460
        %v3488 = vadd.f32 %v3417, %v3460
        %v3489 = vadd.f32 %v3418, %v3460
        %v3490 = vadd.f32 %v3419, %v3460
        %v3491 = vadd.f32 %v3420, %v3460
        %v3492 = vadd.f32 %v3421, %v3460
        %v3493 = vadd.f32 %v3422, %v3460
        %v3494 = vadd.f32 %v3423, %v3460
        %v3495 = vadd.f32 %v3424, %v3460
        %v3496 = vadd.f32 %v3425, %v3460
        %v3497 = vadd.f32 %v3426, %v3460
        %v3498 = vadd.f32 %v3427, %v3460
        %v3499 = vadd.f32 %v3428, %v3460
        %v3500 = vadd.f32 %v3429, %v3460
        %v3501 = vadd.f32 %v3430, %v3460
        %v3502 = vadd.f32 %v3431, %v3460
        %v3503 = vadd.f32 %v3432, %v3460
        %v3504 = vadd.f32 %v3433, %v3460
        %v3505 = vadd.f32 %v3434, %v3460
        %v3506 = vadd.f32 %v3435, %v3460
        %v3507 = vadd.f32 %v3436, %v3460
        %v3508 = vadd.f32 %v3437, %v3460
        %v3509 = vadd.f32 %v3438, %v3460
        %v3510 = vadd.f32 %v3439, %v3460
        %v3511 = vadd.f32 %v3440, %v3460
        %v3512 = vadd.f32 %v3441, %v3460
        %v3513 = vadd.f32 %v3442, %v3460
        %v3514 = vadd.f32 %v3443, %v3460
        %v3515 = vadd.f32 %v3444, %v3460
        %v3516 = vadd.f32 %v3445, %v3460
        %v3517 = vadd.f32 %v3446, %v3460
        %v3518 = vadd.f32 %v3447, %v3460
        %v3519 = vadd.f32 %v3448, %v3460
        %v3520 = vadd.f32 %v3449, %v3460
        %v3521 = vadd.f32 %v3450, %v3460
        %v3522 = vadd.f32 %v3451, %v3460
        %v3523 = vadd.f32 %v3452, %v3460
        %v3524 = vadd.f32 %v3453, %v3460
        %v3525 = vadd.f32 %v3454, %v3460
        %3526 = vst.msk [vmem:[%s393] sm:$0xff] %vm2218, %v3462
        %3527 = vst.msk [vmem:[%s393 + $0x8] sm:$0xff] %vm2218, %v3463
        %3528 = vst.msk [vmem:[%s393 + $0x10] sm:$0xff] %vm2218, %v3464
        %3529 = vst.msk [vmem:[%s393 + $0x18] sm:$0xff] %vm2218, %v3465
        %3530 = vst.msk [vmem:[%s393 + $0x20] sm:$0xff] %vm2218, %v3466
        %3531 = vst.msk [vmem:[%s393 + $0x28] sm:$0xff] %vm2218, %v3467
        %3532 = vst.msk [vmem:[%s393 + $0x30] sm:$0xff] %vm2218, %v3468
        %3533 = vst.msk [vmem:[%s393 + $0x38] sm:$0xff] %vm2218, %v3469
        %3534 = vst.msk [vmem:[%s393 + $0x40] sm:$0xff] %vm2218, %v3470
        %3535 = vst.msk [vmem:[%s393 + $0x48] sm:$0xff] %vm2218, %v3471
        %3536 = vst.msk [vmem:[%s393 + $0x50] sm:$0xff] %vm2218, %v3472
        %3537 = vst.msk [vmem:[%s393 + $0x58] sm:$0xff] %vm2218, %v3473
        %3538 = vst.msk [vmem:[%s393 + $0x60] sm:$0xff] %vm2218, %v3474
        %3539 = vst.msk [vmem:[%s393 + $0x68] sm:$0xff] %vm2218, %v3475
        %3540 = vst.msk [vmem:[%s393 + $0x70] sm:$0xff] %vm2218, %v3476
        %3541 = vst.msk [vmem:[%s393 + $0x78] sm:$0xff] %vm2218, %v3477
        %3542 = vst.msk [vmem:[%s393 + $0x80] sm:$0xff] %vm2218, %v3478
        %3543 = vst.msk [vmem:[%s393 + $0x88] sm:$0xff] %vm2218, %v3479
        %3544 = vst.msk [vmem:[%s393 + $0x90] sm:$0xff] %vm2218, %v3480
        %3545 = vst.msk [vmem:[%s393 + $0x98] sm:$0xff] %vm2218, %v3481
        %3546 = vst.msk [vmem:[%s393 + $0xa0] sm:$0xff] %vm2218, %v3482
        %3547 = vst.msk [vmem:[%s393 + $0xa8] sm:$0xff] %vm2218, %v3483
        %3548 = vst.msk [vmem:[%s393 + $0xb0] sm:$0xff] %vm2218, %v3484
        %3549 = vst.msk [vmem:[%s393 + $0xb8] sm:$0xff] %vm2218, %v3485
        %3550 = vst.msk [vmem:[%s393 + $0xc0] sm:$0xff] %vm2218, %v3486
        %3551 = vst.msk [vmem:[%s393 + $0xc8] sm:$0xff] %vm2218, %v3487
        %3552 = vst.msk [vmem:[%s393 + $0xd0] sm:$0xff] %vm2218, %v3488
        %3553 = vst.msk [vmem:[%s393 + $0xd8] sm:$0xff] %vm2218, %v3489
        %3554 = vst.msk [vmem:[%s393 + $0xe0] sm:$0xff] %vm2218, %v3490
        %3555 = vst.msk [vmem:[%s393 + $0xe8] sm:$0xff] %vm2218, %v3491
        %3556 = vst.msk [vmem:[%s393 + $0xf0] sm:$0xff] %vm2218, %v3492
        %3557 = vst.msk [vmem:[%s393 + $0xf8] sm:$0xff] %vm2218, %v3493
        %3558 = vst.msk [vmem:[%s393 + $0x100] sm:$0xff] %vm2218, %v3494
        %3559 = vst.msk [vmem:[%s393 + $0x108] sm:$0xff] %vm2218, %v3495
        %3560 = vst.msk [vmem:[%s393 + $0x110] sm:$0xff] %vm2218, %v3496
        %3561 = vst.msk [vmem:[%s393 + $0x118] sm:$0xff] %vm2218, %v3497
        %3562 = vst.msk [vmem:[%s393 + $0x120] sm:$0xff] %vm2218, %v3498
        %3563 = vst.msk [vmem:[%s393 + $0x128] sm:$0xff] %vm2218, %v3499
        %3564 = vst.msk [vmem:[%s393 + $0x130] sm:$0xff] %vm2218, %v3500
        %3565 = vst.msk [vmem:[%s393 + $0x138] sm:$0xff] %vm2218, %v3501
        %3566 = vst.msk [vmem:[%s393 + $0x140] sm:$0xff] %vm2218, %v3502
        %3567 = vst.msk [vmem:[%s393 + $0x148] sm:$0xff] %vm2218, %v3503
        %3568 = vst.msk [vmem:[%s393 + $0x150] sm:$0xff] %vm2218, %v3504
        %3569 = vst.msk [vmem:[%s393 + $0x158] sm:$0xff] %vm2218, %v3505
        %3570 = vst.msk [vmem:[%s393 + $0x160] sm:$0xff] %vm2218, %v3506
        %3571 = vst.msk [vmem:[%s393 + $0x168] sm:$0xff] %vm2218, %v3507
        %3572 = vst.msk [vmem:[%s393 + $0x170] sm:$0xff] %vm2218, %v3508
        %3573 = vst.msk [vmem:[%s393 + $0x178] sm:$0xff] %vm2218, %v3509
        %3574 = vst.msk [vmem:[%s393 + $0x180] sm:$0xff] %vm2218, %v3510
        %3575 = vst.msk [vmem:[%s393 + $0x188] sm:$0xff] %vm2218, %v3511
        %3576 = vst.msk [vmem:[%s393 + $0x190] sm:$0xff] %vm2218, %v3512
        %3577 = vst.msk [vmem:[%s393 + $0x198] sm:$0xff] %vm2218, %v3513
        %3578 = vst.msk [vmem:[%s393 + $0x1a0] sm:$0xff] %vm2218, %v3514
        %3579 = vst.msk [vmem:[%s393 + $0x1a8] sm:$0xff] %vm2218, %v3515
        %3580 = vst.msk [vmem:[%s393 + $0x1b0] sm:$0xff] %vm2218, %v3516
        %3581 = vst.msk [vmem:[%s393 + $0x1b8] sm:$0xff] %vm2218, %v3517
        %3582 = vst.msk [vmem:[%s393 + $0x1c0] sm:$0xff] %vm2218, %v3518
        %3583 = vst.msk [vmem:[%s393 + $0x1c8] sm:$0xff] %vm2218, %v3519
        %3584 = vst.msk [vmem:[%s393 + $0x1d0] sm:$0xff] %vm2218, %v3520
        %3585 = vst.msk [vmem:[%s393 + $0x1d8] sm:$0xff] %vm2218, %v3521
        %3586 = vst.msk [vmem:[%s393 + $0x1e0] sm:$0xff] %vm2218, %v3522
        %3587 = vst.msk [vmem:[%s393 + $0x1e8] sm:$0xff] %vm2218, %v3523
        %3588 = vst.msk [vmem:[%s393 + $0x1f0] sm:$0xff] %vm2218, %v3524
        %3589 = vst.msk [vmem:[%s393 + $0x1f8] sm:$0xff] %vm2218, %v3525
        %s3590 = smul.u32 64, %s28
        %p3591 = scmp.lt.s32.totalorder %s27, 1
        %s3592 = scalar_select %p3591, %s27, 1
        %p3593 = scmp.lt.s32.totalorder %s3590, 2367
        %s3594 = scalar_select %p3593, %s3590, 2367
        %s3595 = smul.addr %s3592, 2368
        %s3596 = sadd.s32 %s3594, %s3595
        %s3597 = smul.addr %s3596, 8
        %s3598 = scalar_lea.vmem %s9, %s3597
        // Predicated region
        $region61: #{tpu_custom_call.1} parent=55 // pred_check
          %p3599 = pneg %p256
        $region62: #{tpu_custom_call.1} parent=55 // pred_check_branch
          %3601 = sbr.rel (%p3599) target = $region64
        $region63: #{tpu_custom_call.1} parent=55 // pred_region
          %s3602 = smul.u32 64, %s28
        $region64: #{tpu_custom_call.1} parent=55 // pred_fallthru
          _
      $region56: #{tpu_custom_call.1} parent=5 // pred_fallthru
        _
      %p3603 = scmp.le.s32.totalorder 2, %s18
      // Predicated region
      $region65: #{tpu_custom_call.1} parent=5 // pred_check
        %p3604 = pneg %p3603
      $region66: #{tpu_custom_call.1} parent=5 // pred_check_branch
        %3606 = sbr.rel (%p3604) target = $region68
      $region67: #{tpu_custom_call.1} parent=5 // pred_region
        %s3607 = ssub.s32 %s18, 2
        // Predicated region
        $region69: #{tpu_custom_call.1} parent=67 // pred_check
          %p3608 = pneg %p262
        $region70: #{tpu_custom_call.1} parent=67 // pred_check_branch
          %3610 = sbr.rel (%p3608) target = $region72
        $region71: #{tpu_custom_call.1} parent=67 // pred_region
          %s3611 = smul.u32 64, %s30
          %p3612 = scmp.lt.s32.totalorder %s29, 1
          %s3613 = scalar_select %p3612, %s29, 1
          %p3614 = scmp.lt.s32.totalorder %s3611, 2367
          %s3615 = scalar_select %p3614, %s3611, 2367
          %s3616 = smul.addr %s3613, 2368
          %s3617 = sadd.s32 %s3615, %s3616
          %s3618 = smul.addr %s3617, 8
          %s3619 = scalar_lea.vmem %s9, %s3618
        $region72: #{tpu_custom_call.1} parent=67 // pred_fallthru
          _
      $region68: #{tpu_custom_call.1} parent=5 // pred_fallthru
        _
    $region6: #{tpu_custom_call.1} parent=1 // loop_footer
      %s22 = sadd.s32 1, %s18
    $region7: #{tpu_custom_call.1} parent=1 // loop_footer_branch
      %17 = sbr.rel target = $region3
    $region8: #{tpu_custom_call.1} parent=1 // loop_exit
      _
    %3620 = vsyncpa [#allocation3], 1
    %s3621 = scalar_lea.sflag [#allocation3], 1
    %3622 = vsyncpa %s3621, 1

</llo_original>
